<compile_context>
chip_gen: v5e
topology: v5e:2x2
jax: 0.10.0
libtpu: 0.0.40
codegen_flags: <defaults>
</compile_context>

<pallas_src>
import functools

import numpy as np
import jax
import jax.numpy as jnp
from jax.experimental import pallas as pl
from jax.experimental.pallas import tpu as pltpu


# ---------------------------------------------------------------------------
# Fused Pallas kernel: bilinear-upsample -> (conv3x3+BN+ReLU) x2
# ---------------------------------------------------------------------------
def _up_double_conv_kernel(x_ref, u_ref, w1_ref, s1_ref, b1_ref,
                           w2_ref, s2_ref, b2_ref, o_ref,
                           xu_pad, p1, h1_pad, p2):
    """One batch element per grid step.

    x_ref : (1, H*W, Cin)        flattened NHWC input (pre-upsample)
    u_ref : (H2*W2, H*W)         bilinear interpolation matrix kron(A_h, A_w)
    w1_ref: (9*Cin, Cmid)        conv1 weights, tap-major im2col layout
    s1/b1 : (1, Cmid)            folded BN scale / (conv-bias + BN) bias
    w2_ref: (9*Cmid, Cout)       conv2 weights
    s2/b2 : (1, Cout)
    o_ref : (1, H2*W2, Cout)     output (flattened NHWC)

    scratch:
    xu_pad: (H2+2, W2+2, Cin)    zero-padded upsampled activation
    p1    : (H2*W2, 9*Cin)       im2col for conv1
    h1_pad: (H2+2, W2+2, Cmid)   zero-padded conv1 output
    p2    : (H2*W2, 9*Cmid)      im2col for conv2
    """
    Hp, Wp, Cin = xu_pad.shape
    H2, W2 = Hp - 2, Wp - 2
    Cmid = h1_pad.shape[-1]
    Cout = o_ref.shape[-1]
    M = H2 * W2

    # --- bilinear upsample (align_corners=True): one MXU matmul -------------
    xu = jnp.dot(u_ref[...], x_ref[0],
                 preferred_element_type=jnp.float32)          # (H2*W2, Cin)

    # zero-padded copy for the 'padding=1' convolution
    xu_pad[...] = jnp.zeros_like(xu_pad)
    xu_pad[1:H2 + 1, 1:W2 + 1, :] = xu.reshape(H2, W2, Cin)

    # --- conv1: tap-major im2col + single wide-K matmul + BN + ReLU ---------
    for t in range(9):                                        # static unroll
        dy, dx = t // 3, t % 3
        p1[:, t * Cin:(t + 1) * Cin] = (
            xu_pad[dy:dy + H2, dx:dx + W2, :].reshape(M, Cin))
    h1 = jnp.dot(p1[...], w1_ref[...],
                 preferred_element_type=jnp.float32)          # (M, Cmid), K=9*Cin
    h1 = jnp.maximum(h1 * s1_ref[...] + b1_ref[...], 0.0)     # folded BN + ReLU

    h1_pad[...] = jnp.zeros_like(h1_pad)
    h1_pad[1:H2 + 1, 1:W2 + 1, :] = h1.reshape(H2, W2, Cmid)

    # --- conv2: tap-major im2col + single wide-K matmul + BN + ReLU ---------
    for t in range(9):
        dy, dx = t // 3, t % 3
        p2[:, t * Cmid:(t + 1) * Cmid] = (
            h1_pad[dy:dy + H2, dx:dx + W2, :].reshape(M, Cmid))
    y = jnp.dot(p2[...], w2_ref[...],
                preferred_element_type=jnp.float32)           # (M, Cout), K=9*Cmid
    y = jnp.maximum(y * s2_ref[...] + b2_ref[...], 0.0)

    o_ref[...] = y.reshape(1, M, Cout).astype(o_ref.dtype)


# ---------------------------------------------------------------------------
# Static bilinear interpolation matrices (align_corners=True, scale factor 2)
# ---------------------------------------------------------------------------
def _bilinear_matrix(n_out, n_in):
    a = np.zeros((n_out, n_in), np.float32)
    if n_in == 1:
        a[:, 0] = 1.0
        return a
    for o in range(n_out):
        src = o * (n_in - 1) / (n_out - 1)        # align_corners=True mapping
        lo = min(int(np.floor(src)), n_in - 2)
        frac = src - lo
        a[o, lo] += 1.0 - frac
        a[o, lo + 1] += frac
    return a


# ---------------------------------------------------------------------------
# Wrapper (NCHW in/out, matches the PyTorch module)
# ---------------------------------------------------------------------------
def up_forward(params, x1_nchw, x2_nchw=None):
    layer1, layer2 = params
    if x2_nchw is not None:
        x = jnp.concatenate([x2_nchw, x1_nchw], axis=1)       # channel concat
    else:
        x = x1_nchw
    x = jnp.transpose(x, (0, 2, 3, 1)).astype(jnp.float32)    # NCHW -> NHWC
    N, H, W, Cin = x.shape
    H2, W2 = 2 * H, 2 * W
    Cmid = layer1["w_mat"].shape[1]
    Cout = layer2["w_mat"].shape[1]
    assert layer1["w_mat"].shape[0] == 9 * Cin, "channel mismatch with params"

    # upsample operator as one matrix (separable bilinear => Kronecker product)
    u = jnp.asarray(np.kron(_bilinear_matrix(H2, H), _bilinear_matrix(W2, W)))

    x_flat = x.reshape(N, H * W, Cin)

    out = pl.pallas_call(
        _up_double_conv_kernel,
        out_shape=jax.ShapeDtypeStruct((N, H2 * W2, Cout), jnp.float32),
        grid_spec=pltpu.PrefetchScalarGridSpec(
            num_scalar_prefetch=0,
            grid=(N,),
            in_specs=[
                pl.BlockSpec((1, H * W, Cin), lambda n: (n, 0, 0)),   # x
                pl.BlockSpec((H2 * W2, H * W), lambda n: (0, 0)),     # U
                pl.BlockSpec((9 * Cin, Cmid), lambda n: (0, 0)),      # w1
                pl.BlockSpec((1, Cmid), lambda n: (0, 0)),            # s1
                pl.BlockSpec((1, Cmid), lambda n: (0, 0)),            # b1
                pl.BlockSpec((9 * Cmid, Cout), lambda n: (0, 0)),     # w2
                pl.BlockSpec((1, Cout), lambda n: (0, 0)),            # s2
                pl.BlockSpec((1, Cout), lambda n: (0, 0)),            # b2
            ],
            out_specs=pl.BlockSpec((1, H2 * W2, Cout), lambda n: (n, 0, 0)),
            scratch_shapes=[
                pltpu.VMEM((H2 + 2, W2 + 2, Cin), jnp.float32),       # xu_pad
                pltpu.VMEM((H2 * W2, 9 * Cin), jnp.float32),          # p1
                pltpu.VMEM((H2 + 2, W2 + 2, Cmid), jnp.float32),      # h1_pad
                pltpu.VMEM((H2 * W2, 9 * Cmid), jnp.float32),         # p2
            ],
        ),
        compiler_params=pltpu.CompilerParams(
            dimension_semantics=("parallel",),       # batch shards over v7x's 2 TCs
            vmem_limit_bytes=32 * 1024 * 1024,
        ),
    )(x_flat, u,
      layer1["w_mat"], layer1["scale"].reshape(1, Cmid), layer1["bias"].reshape(1, Cmid),
      layer2["w_mat"], layer2["scale"].reshape(1, Cout), layer2["bias"].reshape(1, Cout))

    out = out.reshape(N, H2, W2, Cout)
    return jnp.transpose(out, (0, 3, 1, 2))                   # NHWC -> NCHW


up_forward_jit = jax.jit(up_forward)


# ---------------------------------------------------------------------------
# Deterministic synthetic parameters (eval-mode BN folded into scale/bias)
# ---------------------------------------------------------------------------
def _make_conv_bn(key, cin, cout, eps=1e-5):
    kw, kb, kg, kbe, km, kv = jax.random.split(key, 6)
    fan_in = 9 * cin
    w = jax.random.normal(kw, (3, 3, cin, cout), jnp.float32) / jnp.sqrt(fan_in)
    b_conv = 0.01 * jax.random.normal(kb, (cout,), jnp.float32)
    gamma = 1.0 + 0.1 * jax.random.normal(kg, (cout,), jnp.float32)
    beta = 0.1 * jax.random.normal(kbe, (cout,), jnp.float32)
    r_mean = 0.1 * jax.random.normal(km, (cout,), jnp.float32)
    r_var = 0.5 + 0.5 * jnp.abs(jax.random.normal(kv, (cout,), jnp.float32))
    scale = gamma / jnp.sqrt(r_var + eps)
    bias = beta + (b_conv - r_mean) * scale
    return {"w_hwio": w,                              # (3,3,Cin,Cout) for reference
            "w_mat": w.reshape(9 * cin, cout),        # tap-major im2col layout
            "scale": scale, "bias": bias}


def make_up_params(key, in_channels, out_channels, mid_channels=None):
    if mid_channels is None:
        mid_channels = in_channels // 2               # PyTorch Up default
    k1, k2 = jax.random.split(key)
    return (_make_conv_bn(k1, in_channels, mid_channels),
            _make_conv_bn(k2, mid_channels, out_channels))


# ---------------------------------------------------------------------------
# Pure-JAX reference (for correctness check)
# ---------------------------------------------------------------------------
def _up_reference(params, x1_nchw, x2_nchw=None):
    hi = jax.lax.Precision.HIGHEST
    x = x1_nchw if x2_nchw is None else jnp.concatenate([x2_nchw, x1_nchw], axis=1)
    x = jnp.transpose(x, (0, 2, 3, 1)).astype(jnp.float32)
    N, H, W, _ = x.shape
    ah = jnp.asarray(_bilinear_matrix(2 * H, H))
    aw = jnp.asarray(_bilinear_matrix(2 * W, W))
    x = jnp.einsum("oh,nhwc->nowc", ah, x, precision=hi)
    x = jnp.einsum("ow,nhwc->nhoc", aw, x, precision=hi)
    for layer in params:
        y = jax.lax.conv_general_dilated(
            x, layer["w_hwio"], (1, 1), "SAME",
            dimension_numbers=("NHWC", "HWIO", "NHWC"), precision=hi)
        x = jnp.maximum(y * layer["scale"] + layer["bias"], 0.0)
    return jnp.transpose(x, (0, 3, 1, 2))


# ---------------------------------------------------------------------------
if __name__ == "__main__":
    key = jax.random.PRNGKey(0)
    kp, kx1, kx2, kxb = jax.random.split(key, 4)

    in_channels, out_channels = 128, 64               # mid = in//2 = 64 (default)
    params = make_up_params(kp, in_channels, out_channels)

    # Path 1: forward(x1, x2) -> concat(128ch) -> upsample -> DoubleConv
    x1 = jax.random.normal(kx1, (2, 64, 8, 8), jnp.float32)
    x2 = jax.random.normal(kx2, (2, 64, 8, 8), jnp.float32)
    y = up_forward_jit(params, x1, x2)
    jax.block_until_ready(y)
    assert y.shape == (2, out_channels, 16, 16), y.shape

    # Path 2: forward(x1) -> upsample -> DoubleConv
    xb = jax.random.normal(kxb, (2, in_channels, 8, 8), jnp.float32)
    yb = up_forward_jit(params, xb, None)
    jax.block_until_ready(yb)
    assert yb.shape == (2, out_channels, 16, 16), yb.shape

    # Correctness vs pure-JAX reference (relative max-abs error)
    for got, args in ((y, (x1, x2)), (yb, (xb, None))):
        ref = _up_reference(params, *args)
        err = float(jnp.max(jnp.abs(got - ref)) / (jnp.max(jnp.abs(ref)) + 1e-6))
        assert err < 2e-2, f"kernel/reference mismatch: rel err {err}"

    print("KERNEL_OK")
</pallas_src>

<mosaic_0001>
module attributes {stable_mosaic.version = 11 : i64} {
  func.func @_up_double_conv_kernel(%arg0: i32, %arg1: memref<1x64x128xf32, #tpu.memory_space<vmem>>, %arg2: memref<256x64xf32, #tpu.memory_space<vmem>>, %arg3: memref<1152x64xf32, #tpu.memory_space<vmem>>, %arg4: memref<1x64xf32, #tpu.memory_space<vmem>>, %arg5: memref<1x64xf32, #tpu.memory_space<vmem>>, %arg6: memref<576x64xf32, #tpu.memory_space<vmem>>, %arg7: memref<1x64xf32, #tpu.memory_space<vmem>>, %arg8: memref<1x64xf32, #tpu.memory_space<vmem>>, %arg9: memref<1x256x64xf32, #tpu.memory_space<vmem>>, %arg10: memref<18x18x128xf32, #tpu.memory_space<vmem>>, %arg11: memref<256x1152xf32, #tpu.memory_space<vmem>>, %arg12: memref<18x18x64xf32, #tpu.memory_space<vmem>>, %arg13: memref<256x576xf32, #tpu.memory_space<vmem>>) attributes {dimension_semantics = [#tpu.dimension_semantics<parallel>], iteration_bounds = array<i64: 2>, scalar_prefetch = 0 : i64, scratch_operands = 4 : i64, tpu.core_type = #tpu.core_type<tc>, window_params = [{transform_indices = @transform_0, window_bounds = array<i64: 1, 64, 128>}, {pipeline_mode = #tpu.pipeline_mode<synchronous>, transform_indices = @transform_1, window_bounds = array<i64: 256, 64>}, {pipeline_mode = #tpu.pipeline_mode<synchronous>, transform_indices = @transform_2, window_bounds = array<i64: 1152, 64>}, {pipeline_mode = #tpu.pipeline_mode<synchronous>, transform_indices = @transform_3, window_bounds = array<i64: 1, 64>}, {pipeline_mode = #tpu.pipeline_mode<synchronous>, transform_indices = @transform_4, window_bounds = array<i64: 1, 64>}, {pipeline_mode = #tpu.pipeline_mode<synchronous>, transform_indices = @transform_5, window_bounds = array<i64: 576, 64>}, {pipeline_mode = #tpu.pipeline_mode<synchronous>, transform_indices = @transform_6, window_bounds = array<i64: 1, 64>}, {pipeline_mode = #tpu.pipeline_mode<synchronous>, transform_indices = @transform_7, window_bounds = array<i64: 1, 64>}, {transform_indices = @transform_8, window_bounds = array<i64: 1, 256, 64>}]} {
    %c0 = arith.constant 0 : index
    %c0_0 = arith.constant 0 : index
    %0 = vector.load %arg2[%c0, %c0_0] : memref<256x64xf32, #tpu.memory_space<vmem>>, vector<256x64xf32>
    %c0_1 = arith.constant 0 : index
    %c0_2 = arith.constant 0 : index
    %c0_3 = arith.constant 0 : index
    %1 = vector.load %arg1[%c0_1, %c0_2, %c0_3] : memref<1x64x128xf32, #tpu.memory_space<vmem>>, vector<1x64x128xf32>
    %2 = vector.shape_cast %1 : vector<1x64x128xf32> to vector<64x128xf32>
    %cst = arith.constant dense<0.000000e+00> : vector<256x128xf32>
    %3 = tpu.matmul %0, %2, %cst {dimension_numbers = #tpu.dot_dimension_numbers<[1], [0], [0], [1], [0, 0, 1, 1], [], []>} : vector<256x64xf32>, vector<64x128xf32>, vector<256x128xf32> -> vector<256x128xf32>
    %cst_4 = arith.constant 0.000000e+00 : f32
    %4 = vector.broadcast %cst_4 : f32 to vector<18x18x128xf32>
    %c0_5 = arith.constant 0 : index
    %c0_6 = arith.constant 0 : index
    %c0_7 = arith.constant 0 : index
    %5 = vector.load %arg10[%c0_5, %c0_6, %c0_7] : memref<18x18x128xf32, #tpu.memory_space<vmem>>, vector<18x18x128xf32>
    tpu.vector_store %arg10[%c0_5, %c0_6, %c0_7], %4 {strides = array<i32>} : memref<18x18x128xf32, #tpu.memory_space<vmem>>, vector<18x18x128xf32>,
    %6 = vector.shape_cast %3 : vector<256x128xf32> to vector<16x16x128xf32>
    %c1 = arith.constant 1 : index
    %c1_8 = arith.constant 1 : index
    %c0_9 = arith.constant 0 : index
    %7 = vector.load %arg10[%c1, %c1_8, %c0_9] : memref<18x18x128xf32, #tpu.memory_space<vmem>>, vector<16x16x128xf32>
    tpu.vector_store %arg10[%c1, %c1_8, %c0_9], %6 {strides = array<i32>} : memref<18x18x128xf32, #tpu.memory_space<vmem>>, vector<16x16x128xf32>,
    %c0_10 = arith.constant 0 : index
    %c0_11 = arith.constant 0 : index
    %c0_12 = arith.constant 0 : index
    %8 = vector.load %arg10[%c0_10, %c0_11, %c0_12] : memref<18x18x128xf32, #tpu.memory_space<vmem>>, vector<16x16x128xf32>
    %9 = vector.shape_cast %8 : vector<16x16x128xf32> to vector<256x128xf32>
    %c0_13 = arith.constant 0 : index
    %c0_14 = arith.constant 0 : index
    %10 = vector.load %arg11[%c0_13, %c0_14] : memref<256x1152xf32, #tpu.memory_space<vmem>>, vector<256x128xf32>
    tpu.vector_store %arg11[%c0_13, %c0_14], %9 {strides = array<i32>} : memref<256x1152xf32, #tpu.memory_space<vmem>>, vector<256x128xf32>,
    %c0_15 = arith.constant 0 : index
    %c1_16 = arith.constant 1 : index
    %c0_17 = arith.constant 0 : index
    %11 = vector.load %arg10[%c0_15, %c1_16, %c0_17] : memref<18x18x128xf32, #tpu.memory_space<vmem>>, vector<16x16x128xf32>
    %12 = vector.shape_cast %11 : vector<16x16x128xf32> to vector<256x128xf32>
    %c0_18 = arith.constant 0 : index
    %c128 = arith.constant 128 : index
    %13 = vector.load %arg11[%c0_18, %c128] : memref<256x1152xf32, #tpu.memory_space<vmem>>, vector<256x128xf32>
    tpu.vector_store %arg11[%c0_18, %c128], %12 {strides = array<i32>} : memref<256x1152xf32, #tpu.memory_space<vmem>>, vector<256x128xf32>,
    %c0_19 = arith.constant 0 : index
    %c2 = arith.constant 2 : index
    %c0_20 = arith.constant 0 : index
    %14 = vector.load %arg10[%c0_19, %c2, %c0_20] : memref<18x18x128xf32, #tpu.memory_space<vmem>>, vector<16x16x128xf32>
    %15 = vector.shape_cast %14 : vector<16x16x128xf32> to vector<256x128xf32>
    %c0_21 = arith.constant 0 : index
    %c256 = arith.constant 256 : index
    %16 = vector.load %arg11[%c0_21, %c256] : memref<256x1152xf32, #tpu.memory_space<vmem>>, vector<256x128xf32>
    tpu.vector_store %arg11[%c0_21, %c256], %15 {strides = array<i32>} : memref<256x1152xf32, #tpu.memory_space<vmem>>, vector<256x128xf32>,
    %c1_22 = arith.constant 1 : index
    %c0_23 = arith.constant 0 : index
    %c0_24 = arith.constant 0 : index
    %17 = vector.load %arg10[%c1_22, %c0_23, %c0_24] : memref<18x18x128xf32, #tpu.memory_space<vmem>>, vector<16x16x128xf32>
    %18 = vector.shape_cast %17 : vector<16x16x128xf32> to vector<256x128xf32>
    %c0_25 = arith.constant 0 : index
    %c384 = arith.constant 384 : index
    %19 = vector.load %arg11[%c0_25, %c384] : memref<256x1152xf32, #tpu.memory_space<vmem>>, vector<256x128xf32>
    tpu.vector_store %arg11[%c0_25, %c384], %18 {strides = array<i32>} : memref<256x1152xf32, #tpu.memory_space<vmem>>, vector<256x128xf32>,
    %c1_26 = arith.constant 1 : index
    %c1_27 = arith.constant 1 : index
    %c0_28 = arith.constant 0 : index
    %20 = vector.load %arg10[%c1_26, %c1_27, %c0_28] : memref<18x18x128xf32, #tpu.memory_space<vmem>>, vector<16x16x128xf32>
    %21 = vector.shape_cast %20 : vector<16x16x128xf32> to vector<256x128xf32>
    %c0_29 = arith.constant 0 : index
    %c512 = arith.constant 512 : index
    %22 = vector.load %arg11[%c0_29, %c512] : memref<256x1152xf32, #tpu.memory_space<vmem>>, vector<256x128xf32>
    tpu.vector_store %arg11[%c0_29, %c512], %21 {strides = array<i32>} : memref<256x1152xf32, #tpu.memory_space<vmem>>, vector<256x128xf32>,
    %c1_30 = arith.constant 1 : index
    %c2_31 = arith.constant 2 : index
    %c0_32 = arith.constant 0 : index
    %23 = vector.load %arg10[%c1_30, %c2_31, %c0_32] : memref<18x18x128xf32, #tpu.memory_space<vmem>>, vector<16x16x128xf32>
    %24 = vector.shape_cast %23 : vector<16x16x128xf32> to vector<256x128xf32>
    %c0_33 = arith.constant 0 : index
    %c640 = arith.constant 640 : index
    %25 = vector.load %arg11[%c0_33, %c640] : memref<256x1152xf32, #tpu.memory_space<vmem>>, vector<256x128xf32>
    tpu.vector_store %arg11[%c0_33, %c640], %24 {strides = array<i32>} : memref<256x1152xf32, #tpu.memory_space<vmem>>, vector<256x128xf32>,
    %c2_34 = arith.constant 2 : index
    %c0_35 = arith.constant 0 : index
    %c0_36 = arith.constant 0 : index
    %26 = vector.load %arg10[%c2_34, %c0_35, %c0_36] : memref<18x18x128xf32, #tpu.memory_space<vmem>>, vector<16x16x128xf32>
    %27 = vector.shape_cast %26 : vector<16x16x128xf32> to vector<256x128xf32>
    %c0_37 = arith.constant 0 : index
    %c768 = arith.constant 768 : index
    %28 = vector.load %arg11[%c0_37, %c768] : memref<256x1152xf32, #tpu.memory_space<vmem>>, vector<256x128xf32>
    tpu.vector_store %arg11[%c0_37, %c768], %27 {strides = array<i32>} : memref<256x1152xf32, #tpu.memory_space<vmem>>, vector<256x128xf32>,
    %c2_38 = arith.constant 2 : index
    %c1_39 = arith.constant 1 : index
    %c0_40 = arith.constant 0 : index
    %29 = vector.load %arg10[%c2_38, %c1_39, %c0_40] : memref<18x18x128xf32, #tpu.memory_space<vmem>>, vector<16x16x128xf32>
    %30 = vector.shape_cast %29 : vector<16x16x128xf32> to vector<256x128xf32>
    %c0_41 = arith.constant 0 : index
    %c896 = arith.constant 896 : index
    %31 = vector.load %arg11[%c0_41, %c896] : memref<256x1152xf32, #tpu.memory_space<vmem>>, vector<256x128xf32>
    tpu.vector_store %arg11[%c0_41, %c896], %30 {strides = array<i32>} : memref<256x1152xf32, #tpu.memory_space<vmem>>, vector<256x128xf32>,
    %c2_42 = arith.constant 2 : index
    %c2_43 = arith.constant 2 : index
    %c0_44 = arith.constant 0 : index
    %32 = vector.load %arg10[%c2_42, %c2_43, %c0_44] : memref<18x18x128xf32, #tpu.memory_space<vmem>>, vector<16x16x128xf32>
    %33 = vector.shape_cast %32 : vector<16x16x128xf32> to vector<256x128xf32>
    %c0_45 = arith.constant 0 : index
    %c1024 = arith.constant 1024 : index
    %34 = vector.load %arg11[%c0_45, %c1024] : memref<256x1152xf32, #tpu.memory_space<vmem>>, vector<256x128xf32>
    tpu.vector_store %arg11[%c0_45, %c1024], %33 {strides = array<i32>} : memref<256x1152xf32, #tpu.memory_space<vmem>>, vector<256x128xf32>,
    %c0_46 = arith.constant 0 : index
    %c0_47 = arith.constant 0 : index
    %35 = vector.load %arg11[%c0_46, %c0_47] : memref<256x1152xf32, #tpu.memory_space<vmem>>, vector<256x1152xf32>
    %c0_48 = arith.constant 0 : index
    %c0_49 = arith.constant 0 : index
    %36 = vector.load %arg3[%c0_48, %c0_49] : memref<1152x64xf32, #tpu.memory_space<vmem>>, vector<1152x64xf32>
    %cst_50 = arith.constant dense<0.000000e+00> : vector<256x64xf32>
    %37 = tpu.matmul %35, %36, %cst_50 {dimension_numbers = #tpu.dot_dimension_numbers<[1], [0], [0], [1], [0, 0, 1, 1], [], []>} : vector<256x1152xf32>, vector<1152x64xf32>, vector<256x64xf32> -> vector<256x64xf32>
    %c0_51 = arith.constant 0 : index
    %c0_52 = arith.constant 0 : index
    %38 = vector.load %arg4[%c0_51, %c0_52] : memref<1x64xf32, #tpu.memory_space<vmem>>, vector<1x64xf32>
    %39 = vector.broadcast %38 : vector<1x64xf32> to vector<256x64xf32>
    %40 = arith.mulf %37, %39 : vector<256x64xf32>
    %c0_53 = arith.constant 0 : index
    %c0_54 = arith.constant 0 : index
    %41 = vector.load %arg5[%c0_53, %c0_54] : memref<1x64xf32, #tpu.memory_space<vmem>>, vector<1x64xf32>
    %42 = vector.broadcast %41 : vector<1x64xf32> to vector<256x64xf32>
    %43 = arith.addf %40, %42 : vector<256x64xf32>
    %cst_55 = arith.constant 0.000000e+00 : f32
    %44 = vector.broadcast %cst_55 : f32 to vector<256x64xf32>
    %45 = arith.maximumf %43, %44 : vector<256x64xf32>
    %cst_56 = arith.constant 0.000000e+00 : f32
    %46 = vector.broadcast %cst_56 : f32 to vector<18x18x64xf32>
    %c0_57 = arith.constant 0 : index
    %c0_58 = arith.constant 0 : index
    %c0_59 = arith.constant 0 : index
    %47 = vector.load %arg12[%c0_57, %c0_58, %c0_59] : memref<18x18x64xf32, #tpu.memory_space<vmem>>, vector<18x18x64xf32>
    tpu.vector_store %arg12[%c0_57, %c0_58, %c0_59], %46 {strides = array<i32>} : memref<18x18x64xf32, #tpu.memory_space<vmem>>, vector<18x18x64xf32>,
    %48 = vector.shape_cast %45 : vector<256x64xf32> to vector<16x16x64xf32>
    %c1_60 = arith.constant 1 : index
    %c1_61 = arith.constant 1 : index
    %c0_62 = arith.constant 0 : index
    %49 = vector.load %arg12[%c1_60, %c1_61, %c0_62] : memref<18x18x64xf32, #tpu.memory_space<vmem>>, vector<16x16x64xf32>
    tpu.vector_store %arg12[%c1_60, %c1_61, %c0_62], %48 {strides = array<i32>} : memref<18x18x64xf32, #tpu.memory_space<vmem>>, vector<16x16x64xf32>,
    %c0_63 = arith.constant 0 : index
    %c0_64 = arith.constant 0 : index
    %c0_65 = arith.constant 0 : index
    %50 = vector.load %arg12[%c0_63, %c0_64, %c0_65] : memref<18x18x64xf32, #tpu.memory_space<vmem>>, vector<16x16x64xf32>
    %51 = vector.shape_cast %50 : vector<16x16x64xf32> to vector<256x64xf32>
    %c0_66 = arith.constant 0 : index
    %c0_67 = arith.constant 0 : index
    %52 = vector.load %arg13[%c0_66, %c0_67] : memref<256x576xf32, #tpu.memory_space<vmem>>, vector<256x64xf32>
    tpu.vector_store %arg13[%c0_66, %c0_67], %51 {strides = array<i32>} : memref<256x576xf32, #tpu.memory_space<vmem>>, vector<256x64xf32>,
    %c0_68 = arith.constant 0 : index
    %c1_69 = arith.constant 1 : index
    %c0_70 = arith.constant 0 : index
    %53 = vector.load %arg12[%c0_68, %c1_69, %c0_70] : memref<18x18x64xf32, #tpu.memory_space<vmem>>, vector<16x16x64xf32>
    %54 = vector.shape_cast %53 : vector<16x16x64xf32> to vector<256x64xf32>
    %c0_71 = arith.constant 0 : index
    %c64 = arith.constant 64 : index
    %55 = vector.load %arg13[%c0_71, %c64] : memref<256x576xf32, #tpu.memory_space<vmem>>, vector<256x64xf32>
    tpu.vector_store %arg13[%c0_71, %c64], %54 {strides = array<i32>} : memref<256x576xf32, #tpu.memory_space<vmem>>, vector<256x64xf32>,
    %c0_72 = arith.constant 0 : index
    %c2_73 = arith.constant 2 : index
    %c0_74 = arith.constant 0 : index
    %56 = vector.load %arg12[%c0_72, %c2_73, %c0_74] : memref<18x18x64xf32, #tpu.memory_space<vmem>>, vector<16x16x64xf32>
    %57 = vector.shape_cast %56 : vector<16x16x64xf32> to vector<256x64xf32>
    %c0_75 = arith.constant 0 : index
    %c128_76 = arith.constant 128 : index
    %58 = vector.load %arg13[%c0_75, %c128_76] : memref<256x576xf32, #tpu.memory_space<vmem>>, vector<256x64xf32>
    tpu.vector_store %arg13[%c0_75, %c128_76], %57 {strides = array<i32>} : memref<256x576xf32, #tpu.memory_space<vmem>>, vector<256x64xf32>,
    %c1_77 = arith.constant 1 : index
    %c0_78 = arith.constant 0 : index
    %c0_79 = arith.constant 0 : index
    %59 = vector.load %arg12[%c1_77, %c0_78, %c0_79] : memref<18x18x64xf32, #tpu.memory_space<vmem>>, vector<16x16x64xf32>
    %60 = vector.shape_cast %59 : vector<16x16x64xf32> to vector<256x64xf32>
    %c0_80 = arith.constant 0 : index
    %c192 = arith.constant 192 : index
    %61 = vector.load %arg13[%c0_80, %c192] : memref<256x576xf32, #tpu.memory_space<vmem>>, vector<256x64xf32>
    tpu.vector_store %arg13[%c0_80, %c192], %60 {strides = array<i32>} : memref<256x576xf32, #tpu.memory_space<vmem>>, vector<256x64xf32>,
    %c1_81 = arith.constant 1 : index
    %c1_82 = arith.constant 1 : index
    %c0_83 = arith.constant 0 : index
    %62 = vector.load %arg12[%c1_81, %c1_82, %c0_83] : memref<18x18x64xf32, #tpu.memory_space<vmem>>, vector<16x16x64xf32>
    %63 = vector.shape_cast %62 : vector<16x16x64xf32> to vector<256x64xf32>
    %c0_84 = arith.constant 0 : index
    %c256_85 = arith.constant 256 : index
    %64 = vector.load %arg13[%c0_84, %c256_85] : memref<256x576xf32, #tpu.memory_space<vmem>>, vector<256x64xf32>
    tpu.vector_store %arg13[%c0_84, %c256_85], %63 {strides = array<i32>} : memref<256x576xf32, #tpu.memory_space<vmem>>, vector<256x64xf32>,
    %c1_86 = arith.constant 1 : index
    %c2_87 = arith.constant 2 : index
    %c0_88 = arith.constant 0 : index
    %65 = vector.load %arg12[%c1_86, %c2_87, %c0_88] : memref<18x18x64xf32, #tpu.memory_space<vmem>>, vector<16x16x64xf32>
    %66 = vector.shape_cast %65 : vector<16x16x64xf32> to vector<256x64xf32>
    %c0_89 = arith.constant 0 : index
    %c320 = arith.constant 320 : index
    %67 = vector.load %arg13[%c0_89, %c320] : memref<256x576xf32, #tpu.memory_space<vmem>>, vector<256x64xf32>
    tpu.vector_store %arg13[%c0_89, %c320], %66 {strides = array<i32>} : memref<256x576xf32, #tpu.memory_space<vmem>>, vector<256x64xf32>,
    %c2_90 = arith.constant 2 : index
    %c0_91 = arith.constant 0 : index
    %c0_92 = arith.constant 0 : index
    %68 = vector.load %arg12[%c2_90, %c0_91, %c0_92] : memref<18x18x64xf32, #tpu.memory_space<vmem>>, vector<16x16x64xf32>
    %69 = vector.shape_cast %68 : vector<16x16x64xf32> to vector<256x64xf32>
    %c0_93 = arith.constant 0 : index
    %c384_94 = arith.constant 384 : index
    %70 = vector.load %arg13[%c0_93, %c384_94] : memref<256x576xf32, #tpu.memory_space<vmem>>, vector<256x64xf32>
    tpu.vector_store %arg13[%c0_93, %c384_94], %69 {strides = array<i32>} : memref<256x576xf32, #tpu.memory_space<vmem>>, vector<256x64xf32>,
    %c2_95 = arith.constant 2 : index
    %c1_96 = arith.constant 1 : index
    %c0_97 = arith.constant 0 : index
    %71 = vector.load %arg12[%c2_95, %c1_96, %c0_97] : memref<18x18x64xf32, #tpu.memory_space<vmem>>, vector<16x16x64xf32>
    %72 = vector.shape_cast %71 : vector<16x16x64xf32> to vector<256x64xf32>
    %c0_98 = arith.constant 0 : index
    %c448 = arith.constant 448 : index
    %73 = vector.load %arg13[%c0_98, %c448] : memref<256x576xf32, #tpu.memory_space<vmem>>, vector<256x64xf32>
    tpu.vector_store %arg13[%c0_98, %c448], %72 {strides = array<i32>} : memref<256x576xf32, #tpu.memory_space<vmem>>, vector<256x64xf32>,
    %c2_99 = arith.constant 2 : index
    %c2_100 = arith.constant 2 : index
    %c0_101 = arith.constant 0 : index
    %74 = vector.load %arg12[%c2_99, %c2_100, %c0_101] : memref<18x18x64xf32, #tpu.memory_space<vmem>>, vector<16x16x64xf32>
    %75 = vector.shape_cast %74 : vector<16x16x64xf32> to vector<256x64xf32>
    %c0_102 = arith.constant 0 : index
    %c512_103 = arith.constant 512 : index
    %76 = vector.load %arg13[%c0_102, %c512_103] : memref<256x576xf32, #tpu.memory_space<vmem>>, vector<256x64xf32>
    tpu.vector_store %arg13[%c0_102, %c512_103], %75 {strides = array<i32>} : memref<256x576xf32, #tpu.memory_space<vmem>>, vector<256x64xf32>,
    %c0_104 = arith.constant 0 : index
    %c0_105 = arith.constant 0 : index
    %77 = vector.load %arg13[%c0_104, %c0_105] : memref<256x576xf32, #tpu.memory_space<vmem>>, vector<256x576xf32>
    %c0_106 = arith.constant 0 : index
    %c0_107 = arith.constant 0 : index
    %78 = vector.load %arg6[%c0_106, %c0_107] : memref<576x64xf32, #tpu.memory_space<vmem>>, vector<576x64xf32>
    %cst_108 = arith.constant dense<0.000000e+00> : vector<256x64xf32>
    %79 = tpu.matmul %77, %78, %cst_108 {dimension_numbers = #tpu.dot_dimension_numbers<[1], [0], [0], [1], [0, 0, 1, 1], [], []>} : vector<256x576xf32>, vector<576x64xf32>, vector<256x64xf32> -> vector<256x64xf32>
    %c0_109 = arith.constant 0 : index
    %c0_110 = arith.constant 0 : index
    %80 = vector.load %arg7[%c0_109, %c0_110] : memref<1x64xf32, #tpu.memory_space<vmem>>, vector<1x64xf32>
    %81 = vector.broadcast %80 : vector<1x64xf32> to vector<256x64xf32>
    %82 = arith.mulf %79, %81 : vector<256x64xf32>
    %c0_111 = arith.constant 0 : index
    %c0_112 = arith.constant 0 : index
    %83 = vector.load %arg8[%c0_111, %c0_112] : memref<1x64xf32, #tpu.memory_space<vmem>>, vector<1x64xf32>
    %84 = vector.broadcast %83 : vector<1x64xf32> to vector<256x64xf32>
    %85 = arith.addf %82, %84 : vector<256x64xf32>
    %cst_113 = arith.constant 0.000000e+00 : f32
    %86 = vector.broadcast %cst_113 : f32 to vector<256x64xf32>
    %87 = arith.maximumf %85, %86 : vector<256x64xf32>
    %88 = vector.shape_cast %87 : vector<256x64xf32> to vector<1x256x64xf32>
    %c0_114 = arith.constant 0 : index
    %c0_115 = arith.constant 0 : index
    %c0_116 = arith.constant 0 : index
    %89 = vector.load %arg9[%c0_114, %c0_115, %c0_116] : memref<1x256x64xf32, #tpu.memory_space<vmem>>, vector<1x256x64xf32>
    tpu.vector_store %arg9[%c0_114, %c0_115, %c0_116], %88 {strides = array<i32>} : memref<1x256x64xf32, #tpu.memory_space<vmem>>, vector<1x256x64xf32>,
    return
  }
  func.func @transform_0(%arg0: i32) -> (i32, i32, i32) {
    %c0_i32 = arith.constant 0 : i32
    %c0_i32_0 = arith.constant 0 : i32
    %c0_i32_1 = arith.constant 0 : i32
    return %arg0, %c0_i32, %c0_i32_0 : i32, i32, i32
  }
  func.func @transform_1(%arg0: i32) -> (i32, i32) {
    %c0_i32 = arith.constant 0 : i32
    %c0_i32_0 = arith.constant 0 : i32
    %c0_i32_1 = arith.constant 0 : i32
    return %c0_i32, %c0_i32_0 : i32, i32
  }
  func.func @transform_2(%arg0: i32) -> (i32, i32) {
    %c0_i32 = arith.constant 0 : i32
    %c0_i32_0 = arith.constant 0 : i32
    %c0_i32_1 = arith.constant 0 : i32
    return %c0_i32, %c0_i32_0 : i32, i32
  }
  func.func @transform_3(%arg0: i32) -> (i32, i32) {
    %c0_i32 = arith.constant 0 : i32
    %c0_i32_0 = arith.constant 0 : i32
    %c0_i32_1 = arith.constant 0 : i32
    return %c0_i32, %c0_i32_0 : i32, i32
  }
  func.func @transform_4(%arg0: i32) -> (i32, i32) {
    %c0_i32 = arith.constant 0 : i32
    %c0_i32_0 = arith.constant 0 : i32
    %c0_i32_1 = arith.constant 0 : i32
    return %c0_i32, %c0_i32_0 : i32, i32
  }
  func.func @transform_5(%arg0: i32) -> (i32, i32) {
    %c0_i32 = arith.constant 0 : i32
    %c0_i32_0 = arith.constant 0 : i32
    %c0_i32_1 = arith.constant 0 : i32
    return %c0_i32, %c0_i32_0 : i32, i32
  }
  func.func @transform_6(%arg0: i32) -> (i32, i32) {
    %c0_i32 = arith.constant 0 : i32
    %c0_i32_0 = arith.constant 0 : i32
    %c0_i32_1 = arith.constant 0 : i32
    return %c0_i32, %c0_i32_0 : i32, i32
  }
  func.func @transform_7(%arg0: i32) -> (i32, i32) {
    %c0_i32 = arith.constant 0 : i32
    %c0_i32_0 = arith.constant 0 : i32
    %c0_i32_1 = arith.constant 0 : i32
    return %c0_i32, %c0_i32_0 : i32, i32
  }
  func.func @transform_8(%arg0: i32) -> (i32, i32, i32) {
    %c0_i32 = arith.constant 0 : i32
    %c0_i32_0 = arith.constant 0 : i32
    %c0_i32_1 = arith.constant 0 : i32
    return %arg0, %c0_i32, %c0_i32_0 : i32, i32, i32
  }
}

</mosaic_0001>

<llo_original>
// kernel: up_forward.1
$region0: #{up_forward.1}
  #allocation0 [shape = 'u32[]', space=smem, size = 0x4, offset = 0x4, fixed_abs, tag = 'smem constant byte address 0x4 - core index']
  #allocation1 [shape = 'u32[72,128]{1,0:T(1,128)}', space=vmem, size = 0x9000, scoped, tag = 'internal scratch']
  #allocation2 [shape = 'f32[18,18,128]{2,1,0:T(8,128)}', space=vmem, size = 0x36000, scoped, tag = 'scratch operand']
  #allocation3 [shape = 'f32[256,1152]{1,0:T(8,128)}', space=vmem, size = 0x120000, scoped, tag = 'scratch operand']
  #allocation4 [shape = 'f32[18,18,64]{2,1,0:T(8,128)}', space=vmem, size = 0x36000, scoped, tag = 'scratch operand']
  #allocation5 [shape = 'f32[256,576]{1,0:T(8,128)}', space=vmem, size = 0xa0000, scoped, tag = 'scratch operand']
  %s0 = inlined_call_operand.vmem [shape: f32[2,64,128], index: 0, kind: input, shape index: {}]
  %s1 = inlined_call_operand.vmem [shape: f32[256,64], index: 1, kind: input, shape index: {}]
  %s2 = inlined_call_operand.vmem [shape: f32[1152,64], index: 2, kind: input, shape index: {}]
  %s3 = inlined_call_operand.vmem [shape: f32[1,64], index: 3, kind: input, shape index: {}]
  %s4 = inlined_call_operand.vmem [shape: f32[1,64], index: 4, kind: input, shape index: {}]
  %s5 = inlined_call_operand.vmem [shape: f32[576,64], index: 5, kind: input, shape index: {}]
  %s6 = inlined_call_operand.vmem [shape: f32[1,64], index: 6, kind: input, shape index: {}]
  %s7 = inlined_call_operand.vmem [shape: f32[1,64], index: 7, kind: input, shape index: {}]
  %s8 = inlined_call_operand.hbm [shape: f32[2,256,64], index: 8, kind: output, shape index: {}]
  %s9 = sld [smem:[#allocation0]]
  $region65: #{up_forward.1} parent=0
    _
  %s11 = ssub.s32 1, %s9
  %s12 = scalar_select 0, %s11, %s9
  $region1: #{up_forward.1} parent=0
    #allocation6 [shape = 'u8[262144]{0}', space=vmem, size = 0x40000, scoped, tag = 'output window, operand 0']
    #allocation7 [shape = 's32[2]{0}', space=sflag, size = 0x8, scoped, tag = 'scoped memory for up_forward.1']
    %13 = vsyncpa [#allocation7], 0
    %s14 = scalar_lea.sflag [#allocation7], 1
    %15 = vsyncpa %s14, 0
    loop: start=0, step=1, limit=4
    $region2: #{up_forward.1} parent=1 // loop_pre_header
      _
    $region3: #{up_forward.1} parent=1 // loop_header
      %s17 = sphi 0, %s21
      %p18 = scmp.ge.s32.totalorder %s17, 4
      %s27 = sphi 0, %s29
      %s30 = sphi 0, %s27
      %s31 = sphi 0, %s30
      %s47 = sphi 0, %s31
      %s51 = sphi 0, %s51
      %s53 = sphi 0, %s51
      %s54 = sphi 0, %s53
      %s68 = sphi 0, %s54
      %s72 = sphi 0, %s72
      %s74 = sphi 0, %s72
      %s75 = sphi 0, %s74
      %s89 = sphi 0, %s75
      %s93 = sphi 0, %s93
      %s95 = sphi 0, %s93
      %s96 = sphi 0, %s95
      %s110 = sphi 0, %s96
      %s114 = sphi 0, %s114
      %s116 = sphi 0, %s114
      %s117 = sphi 0, %s116
      %s131 = sphi 0, %s117
      %s135 = sphi 0, %s135
      %s137 = sphi 0, %s135
      %s138 = sphi 0, %s137
      %s152 = sphi 0, %s138
      %s156 = sphi 0, %s156
      %s158 = sphi 0, %s156
      %s159 = sphi 0, %s158
      %s173 = sphi 0, %s159
      %s177 = sphi 0, %s177
      %s179 = sphi 0, %s177
      %s180 = sphi 0, %s179
      %s194 = sphi 0, %s180
      %s200 = sphi 0, %s202
      %s203 = sphi 0, %s200
      %s204 = sphi 0, %s203
      %s220 = sphi 0, %s204
    $region4: #{up_forward.1} parent=1 // loop_header_branch
      %20 = sbr.rel (%p18) target = $region8
    $region5: #{up_forward.1} parent=1 // loop_body
      %s22 = ssub.s32 %s17, 1
      %s23 = ssub.s32 %s17, 2
      %s24 = sadd.s32 %s17, 1
      %s25 = ssub.s32 %s17, %s24
      %p26 = scmp.eq.s32.totalorder %s25, 0
      %s28 = sadd.s32 %s27, 1
      %s29 = scalar_select %p26, %s27, %s28
      %p32 = pneg %p26
      %p33 = scmp.eq.s32.totalorder %s17, 1
      %p34 = por %p32, %p33
      %p35 = scmp.ne.s32.totalorder %s27, %s30
      %p36 = scmp.eq.s32.totalorder %s17, 0
      %p37 = por %p35, %p36
      %p38 = scmp.ne.s32.totalorder %s27, %s30
      %p39 = scmp.eq.s32.totalorder %s22, 1
      %p40 = por %p38, %p39
      %p41 = scmp.ne.s32.totalorder %s30, %s31
      %p42 = scmp.eq.s32.totalorder %s22, 0
      %p43 = por %p41, %p42
      %p44 = scmp.ne.s32.totalorder %s30, %s31
      %p45 = scmp.eq.s32.totalorder %s23, 1
      %p46 = por %p44, %p45
      %p48 = scmp.ne.s32.totalorder %s31, %s47
      %p49 = scmp.eq.s32.totalorder %s23, 0
      %p50 = por %p48, %p49
      %s52 = sadd.s32 %s51, 1
      %p55 = scmp.eq.s32.totalorder %s17, 1
      %p56 = scmp.ne.s32.totalorder %s51, %s53
      %p57 = scmp.eq.s32.totalorder %s17, 0
      %p58 = por %p56, %p57
      %p59 = scmp.ne.s32.totalorder %s51, %s53
      %p60 = scmp.eq.s32.totalorder %s22, 1
      %p61 = por %p59, %p60
      %p62 = scmp.ne.s32.totalorder %s53, %s54
      %p63 = scmp.eq.s32.totalorder %s22, 0
      %p64 = por %p62, %p63
      %p65 = scmp.ne.s32.totalorder %s53, %s54
      %p66 = scmp.eq.s32.totalorder %s23, 1
      %p67 = por %p65, %p66
      %p69 = scmp.ne.s32.totalorder %s54, %s68
      %p70 = scmp.eq.s32.totalorder %s23, 0
      %p71 = por %p69, %p70
      %s73 = sadd.s32 %s72, 1
      %p76 = scmp.eq.s32.totalorder %s17, 1
      %p77 = scmp.ne.s32.totalorder %s72, %s74
      %p78 = scmp.eq.s32.totalorder %s17, 0
      %p79 = por %p77, %p78
      %p80 = scmp.ne.s32.totalorder %s72, %s74
      %p81 = scmp.eq.s32.totalorder %s22, 1
      %p82 = por %p80, %p81
      %p83 = scmp.ne.s32.totalorder %s74, %s75
      %p84 = scmp.eq.s32.totalorder %s22, 0
      %p85 = por %p83, %p84
      %p86 = scmp.ne.s32.totalorder %s74, %s75
      %p87 = scmp.eq.s32.totalorder %s23, 1
      %p88 = por %p86, %p87
      %p90 = scmp.ne.s32.totalorder %s75, %s89
      %p91 = scmp.eq.s32.totalorder %s23, 0
      %p92 = por %p90, %p91
      %s94 = sadd.s32 %s93, 1
      %p97 = scmp.eq.s32.totalorder %s17, 1
      %p98 = scmp.ne.s32.totalorder %s93, %s95
      %p99 = scmp.eq.s32.totalorder %s17, 0
      %p100 = por %p98, %p99
      %p101 = scmp.ne.s32.totalorder %s93, %s95
      %p102 = scmp.eq.s32.totalorder %s22, 1
      %p103 = por %p101, %p102
      %p104 = scmp.ne.s32.totalorder %s95, %s96
      %p105 = scmp.eq.s32.totalorder %s22, 0
      %p106 = por %p104, %p105
      %p107 = scmp.ne.s32.totalorder %s95, %s96
      %p108 = scmp.eq.s32.totalorder %s23, 1
      %p109 = por %p107, %p108
      %p111 = scmp.ne.s32.totalorder %s96, %s110
      %p112 = scmp.eq.s32.totalorder %s23, 0
      %p113 = por %p111, %p112
      %s115 = sadd.s32 %s114, 1
      %p118 = scmp.eq.s32.totalorder %s17, 1
      %p119 = scmp.ne.s32.totalorder %s114, %s116
      %p120 = scmp.eq.s32.totalorder %s17, 0
      %p121 = por %p119, %p120
      %p122 = scmp.ne.s32.totalorder %s114, %s116
      %p123 = scmp.eq.s32.totalorder %s22, 1
      %p124 = por %p122, %p123
      %p125 = scmp.ne.s32.totalorder %s116, %s117
      %p126 = scmp.eq.s32.totalorder %s22, 0
      %p127 = por %p125, %p126
      %p128 = scmp.ne.s32.totalorder %s116, %s117
      %p129 = scmp.eq.s32.totalorder %s23, 1
      %p130 = por %p128, %p129
      %p132 = scmp.ne.s32.totalorder %s117, %s131
      %p133 = scmp.eq.s32.totalorder %s23, 0
      %p134 = por %p132, %p133
      %s136 = sadd.s32 %s135, 1
      %p139 = scmp.eq.s32.totalorder %s17, 1
      %p140 = scmp.ne.s32.totalorder %s135, %s137
      %p141 = scmp.eq.s32.totalorder %s17, 0
      %p142 = por %p140, %p141
      %p143 = scmp.ne.s32.totalorder %s135, %s137
      %p144 = scmp.eq.s32.totalorder %s22, 1
      %p145 = por %p143, %p144
      %p146 = scmp.ne.s32.totalorder %s137, %s138
      %p147 = scmp.eq.s32.totalorder %s22, 0
      %p148 = por %p146, %p147
      %p149 = scmp.ne.s32.totalorder %s137, %s138
      %p150 = scmp.eq.s32.totalorder %s23, 1
      %p151 = por %p149, %p150
      %p153 = scmp.ne.s32.totalorder %s138, %s152
      %p154 = scmp.eq.s32.totalorder %s23, 0
      %p155 = por %p153, %p154
      %s157 = sadd.s32 %s156, 1
      %p160 = scmp.eq.s32.totalorder %s17, 1
      %p161 = scmp.ne.s32.totalorder %s156, %s158
      %p162 = scmp.eq.s32.totalorder %s17, 0
      %p163 = por %p161, %p162
      %p164 = scmp.ne.s32.totalorder %s156, %s158
      %p165 = scmp.eq.s32.totalorder %s22, 1
      %p166 = por %p164, %p165
      %p167 = scmp.ne.s32.totalorder %s158, %s159
      %p168 = scmp.eq.s32.totalorder %s22, 0
      %p169 = por %p167, %p168
      %p170 = scmp.ne.s32.totalorder %s158, %s159
      %p171 = scmp.eq.s32.totalorder %s23, 1
      %p172 = por %p170, %p171
      %p174 = scmp.ne.s32.totalorder %s159, %s173
      %p175 = scmp.eq.s32.totalorder %s23, 0
      %p176 = por %p174, %p175
      %s178 = sadd.s32 %s177, 1
      %p181 = scmp.eq.s32.totalorder %s17, 1
      %p182 = scmp.ne.s32.totalorder %s177, %s179
      %p183 = scmp.eq.s32.totalorder %s17, 0
      %p184 = por %p182, %p183
      %p185 = scmp.ne.s32.totalorder %s177, %s179
      %p186 = scmp.eq.s32.totalorder %s22, 1
      %p187 = por %p185, %p186
      %p188 = scmp.ne.s32.totalorder %s179, %s180
      %p189 = scmp.eq.s32.totalorder %s22, 0
      %p190 = por %p188, %p189
      %p191 = scmp.ne.s32.totalorder %s179, %s180
      %p192 = scmp.eq.s32.totalorder %s23, 1
      %p193 = por %p191, %p192
      %p195 = scmp.ne.s32.totalorder %s180, %s194
      %p196 = scmp.eq.s32.totalorder %s23, 0
      %p197 = por %p195, %p196
      %s198 = ssub.s32 %s17, %s24
      %p199 = scmp.eq.s32.totalorder %s198, 0
      %s201 = sadd.s32 %s200, 1
      %s202 = scalar_select %p199, %s200, %s201
      %p205 = pneg %p199
      %p206 = scmp.eq.s32.totalorder %s17, 1
      %p207 = por %p205, %p206
      %p208 = scmp.ne.s32.totalorder %s200, %s203
      %p209 = scmp.eq.s32.totalorder %s17, 0
      %p210 = por %p208, %p209
      %p211 = scmp.ne.s32.totalorder %s200, %s203
      %p212 = scmp.eq.s32.totalorder %s22, 1
      %p213 = por %p211, %p212
      %p214 = scmp.ne.s32.totalorder %s203, %s204
      %p215 = scmp.eq.s32.totalorder %s22, 0
      %p216 = por %p214, %p215
      %p217 = scmp.ne.s32.totalorder %s203, %s204
      %p218 = scmp.eq.s32.totalorder %s23, 1
      %p219 = por %p217, %p218
      %p221 = scmp.ne.s32.totalorder %s204, %s220
      %p222 = scmp.eq.s32.totalorder %s23, 0
      %p223 = por %p221, %p222
      %p224 = scmp.le.s32.totalorder 1, %s17
      %p225 = scmp.lt.s32.totalorder %s17, 3
      %p226 = pnand %p224, %p225
      %p227 = pneg %p226
      // Predicated region
      $region9: #{up_forward.1} parent=5 // pred_check
        _
      $region10: #{up_forward.1} parent=5 // pred_check_branch
        %229 = sbr.rel (%p226) target = $region12
      $region11: #{up_forward.1} parent=5 // pred_region
        %s230 = ssub.s32 %s17, 1
        // Predicated region
        $region13: #{up_forward.1} parent=11 // pred_check
          %p231 = pneg %p64
        $region14: #{up_forward.1} parent=11 // pred_check_branch
          %233 = sbr.rel (%p231) target = $region16
        $region15: #{up_forward.1} parent=11 // pred_region
          _
        $region16: #{up_forward.1} parent=11 // pred_fallthru
          _
        // Predicated region
        $region17: #{up_forward.1} parent=11 // pred_check
          %p234 = pneg %p85
        $region18: #{up_forward.1} parent=11 // pred_check_branch
          %236 = sbr.rel (%p234) target = $region20
        $region19: #{up_forward.1} parent=11 // pred_region
          _
        $region20: #{up_forward.1} parent=11 // pred_fallthru
          _
        // Predicated region
        $region21: #{up_forward.1} parent=11 // pred_check
          %p237 = pneg %p106
        $region22: #{up_forward.1} parent=11 // pred_check_branch
          %239 = sbr.rel (%p237) target = $region24
        $region23: #{up_forward.1} parent=11 // pred_region
          _
        $region24: #{up_forward.1} parent=11 // pred_fallthru
          _
        // Predicated region
        $region25: #{up_forward.1} parent=11 // pred_check
          %p240 = pneg %p127
        $region26: #{up_forward.1} parent=11 // pred_check_branch
          %242 = sbr.rel (%p240) target = $region28
        $region27: #{up_forward.1} parent=11 // pred_region
          _
        $region28: #{up_forward.1} parent=11 // pred_fallthru
          _
        // Predicated region
        $region29: #{up_forward.1} parent=11 // pred_check
          %p243 = pneg %p148
        $region30: #{up_forward.1} parent=11 // pred_check_branch
          %245 = sbr.rel (%p243) target = $region32
        $region31: #{up_forward.1} parent=11 // pred_region
          _
        $region32: #{up_forward.1} parent=11 // pred_fallthru
          _
        // Predicated region
        $region33: #{up_forward.1} parent=11 // pred_check
          %p246 = pneg %p169
        $region34: #{up_forward.1} parent=11 // pred_check_branch
          %248 = sbr.rel (%p246) target = $region36
        $region35: #{up_forward.1} parent=11 // pred_region
          _
        $region36: #{up_forward.1} parent=11 // pred_fallthru
          _
        // Predicated region
        $region37: #{up_forward.1} parent=11 // pred_check
          %p249 = pneg %p190
        $region38: #{up_forward.1} parent=11 // pred_check_branch
          %251 = sbr.rel (%p249) target = $region40
        $region39: #{up_forward.1} parent=11 // pred_region
          _
        $region40: #{up_forward.1} parent=11 // pred_fallthru
          _
      $region12: #{up_forward.1} parent=5 // pred_fallthru
        _
      %p252 = scmp.lt.s32.totalorder %s17, 2
      // Predicated region
      $region41: #{up_forward.1} parent=5 // pred_check
        %p253 = pneg %p252
      $region42: #{up_forward.1} parent=5 // pred_check_branch
        %255 = sbr.rel (%p253) target = $region44
      $region43: #{up_forward.1} parent=5 // pred_region
        // Predicated region
        $region45: #{up_forward.1} parent=43 // pred_check
          %p256 = pneg %p37
        $region46: #{up_forward.1} parent=43 // pred_check_branch
          %258 = sbr.rel (%p256) target = $region48
        $region47: #{up_forward.1} parent=43 // pred_region
          %p259 = scmp.lt.s32.totalorder %s17, 1
          %s260 = scalar_select %p259, %s17, 1
          %s261 = smul.addr %s260, 8
          %s262 = smul.addr %s261, 8
          %s263 = scalar_lea.vmem %s0, %s262
        $region48: #{up_forward.1} parent=43 // pred_fallthru
          _
      $region44: #{up_forward.1} parent=5 // pred_fallthru
        _
      %p264 = scmp.le.s32.totalorder 1, %s17
      %p265 = scmp.lt.s32.totalorder %s17, 3
      %p266 = pnand %p264, %p265
      %p267 = pneg %p266
      // Predicated region
      $region49: #{up_forward.1} parent=5 // pred_check
        _
      $region50: #{up_forward.1} parent=5 // pred_check_branch
        %269 = sbr.rel (%p266) target = $region52
      $region51: #{up_forward.1} parent=5 // pred_region
        %s270 = ssub.s32 %s17, 1
        %p271 = scmp.lt.s32.totalorder %s22, 1
        %s272 = scalar_select %p271, %s22, 1
        %s273 = smul.addr %s272, 8
        %s274 = smul.addr %s273, 8
        %s275 = scalar_lea.vmem %s0, %s274
        %p276 = pneg %p43
        %p277 = pneg %p40
        %p278 = pneg %p64
        %p279 = pneg %p61
        %p280 = pneg %p85
        %p281 = pneg %p82
        %p282 = pneg %p106
        %p283 = pneg %p103
        %p284 = pneg %p127
        %p285 = pneg %p124
        %p286 = pneg %p148
        %p287 = pneg %p145
        %p288 = pneg %p169
        %p289 = pneg %p166
        %p290 = pneg %p190
        %p291 = pneg %p187
        %p292 = pneg %p216
        %p293 = pneg %p213
        %s294 = sand.u32 %s203, 1
        %s295 = scalar_lea.sflag [#allocation7], %s294
        %s296 = sand.u32 %s203, 1
        %s297 = smul.addr %s296, 256
        %s298 = scalar_lea.vmem [#allocation6], %s297
        %p299 = scmp.lt.s32.totalorder %s22, 1
        %s300 = scalar_select %p299, %s22, 1
        %s301 = smul.addr %s300, 8
        %s302 = smul.addr %s301, 8
        %s303 = scalar_lea.vmem %s0, %s302
        %v304 = vld [vmem:[%s1] sm:$0xff]
        %v305 = vld [vmem:[%s1 + $0x8] sm:$0xff]
        %v306 = vld [vmem:[%s1 + $0x10] sm:$0xff]
        %v307 = vld [vmem:[%s1 + $0x18] sm:$0xff]
        %v308 = vld [vmem:[%s1 + $0x20] sm:$0xff]
        %v309 = vld [vmem:[%s1 + $0x28] sm:$0xff]
        %v310 = vld [vmem:[%s1 + $0x30] sm:$0xff]
        %v311 = vld [vmem:[%s1 + $0x38] sm:$0xff]
        %v312 = vld [vmem:[%s1 + $0x40] sm:$0xff]
        %v313 = vld [vmem:[%s1 + $0x48] sm:$0xff]
        %v314 = vld [vmem:[%s1 + $0x50] sm:$0xff]
        %v315 = vld [vmem:[%s1 + $0x58] sm:$0xff]
        %v316 = vld [vmem:[%s1 + $0x60] sm:$0xff]
        %v317 = vld [vmem:[%s1 + $0x68] sm:$0xff]
        %v318 = vld [vmem:[%s1 + $0x70] sm:$0xff]
        %v319 = vld [vmem:[%s1 + $0x78] sm:$0xff]
        %v320 = vld [vmem:[%s1 + $0x80] sm:$0xff]
        %v321 = vld [vmem:[%s1 + $0x88] sm:$0xff]
        %v322 = vld [vmem:[%s1 + $0x90] sm:$0xff]
        %v323 = vld [vmem:[%s1 + $0x98] sm:$0xff]
        %v324 = vld [vmem:[%s1 + $0xa0] sm:$0xff]
        %v325 = vld [vmem:[%s1 + $0xa8] sm:$0xff]
        %v326 = vld [vmem:[%s1 + $0xb0] sm:$0xff]
        %v327 = vld [vmem:[%s1 + $0xb8] sm:$0xff]
        %v328 = vld [vmem:[%s1 + $0xc0] sm:$0xff]
        %v329 = vld [vmem:[%s1 + $0xc8] sm:$0xff]
        %v330 = vld [vmem:[%s1 + $0xd0] sm:$0xff]
        %v331 = vld [vmem:[%s1 + $0xd8] sm:$0xff]
        %v332 = vld [vmem:[%s1 + $0xe0] sm:$0xff]
        %v333 = vld [vmem:[%s1 + $0xe8] sm:$0xff]
        %v334 = vld [vmem:[%s1 + $0xf0] sm:$0xff]
        %v335 = vld [vmem:[%s1 + $0xf8] sm:$0xff]
        %v336 = vld [vmem:[%s303] sm:$0xff]
        %v337 = vld [vmem:[%s303 + $0x8] sm:$0xff]
        %v338 = vld [vmem:[%s303 + $0x10] sm:$0xff]
        %v339 = vld [vmem:[%s303 + $0x18] sm:$0xff]
        %v340 = vld [vmem:[%s303 + $0x20] sm:$0xff]
        %v341 = vld [vmem:[%s303 + $0x28] sm:$0xff]
        %v342 = vld [vmem:[%s303 + $0x30] sm:$0xff]
        %v343 = vld [vmem:[%s303 + $0x38] sm:$0xff]
        %vm344 = vcmask 523264
        %v346 = vsel %vm344, %v304, 0
        %v349 = vsel %vm344, %v305, 0
        %v352 = vsel %vm344, %v306, 0
        %v355 = vsel %vm344, %v307, 0
        %v358 = vsel %vm344, %v308, 0
        %v361 = vsel %vm344, %v309, 0
        %v364 = vsel %vm344, %v310, 0
        %v367 = vsel %vm344, %v311, 0
        %v370 = vsel %vm344, %v312, 0
        %v373 = vsel %vm344, %v313, 0
        %v376 = vsel %vm344, %v314, 0
        %v379 = vsel %vm344, %v315, 0
        %v382 = vsel %vm344, %v316, 0
        %v385 = vsel %vm344, %v317, 0
        %v388 = vsel %vm344, %v318, 0
        %v391 = vsel %vm344, %v319, 0
        %v394 = vsel %vm344, %v320, 0
        %v397 = vsel %vm344, %v321, 0
        %v400 = vsel %vm344, %v322, 0
        %v403 = vsel %vm344, %v323, 0
        %v406 = vsel %vm344, %v324, 0
        %v409 = vsel %vm344, %v325, 0
        %v412 = vsel %vm344, %v326, 0
        %v415 = vsel %vm344, %v327, 0
        %v418 = vsel %vm344, %v328, 0
        %v421 = vsel %vm344, %v329, 0
        %v424 = vsel %vm344, %v330, 0
        %v427 = vsel %vm344, %v331, 0
        %v430 = vsel %vm344, %v332, 0
        %v433 = vsel %vm344, %v333, 0
        %v436 = vsel %vm344, %v334, 0
        %v439 = vsel %vm344, %v335, 0
        %441 = vmatpush.msra.mxu0 0.0
        %442 = vmatpush.msra.mxu0 0.0
        %443 = vmatpush.msra.mxu0 0.0
        %444 = vmatpush.msra.mxu0 0.0
        %445 = vmatpush.msra.mxu0 0.0
        %446 = vmatpush.msra.mxu0 0.0
        %447 = vmatpush.msra.mxu0 0.0
        %448 = vmatpush.msra.mxu0 0.0
        %449 = vmatpush.msra.mxu0 %v343
        %450 = vmatpush.msra.mxu0 %v342
        %451 = vmatpush.msra.mxu0 %v341
        %452 = vmatpush.msra.mxu0 %v340
        %453 = vmatpush.msra.mxu0 %v339
        %454 = vmatpush.msra.mxu0 %v338
        %455 = vmatpush.msra.mxu0 %v337
        %456 = vmatpush.msra.mxu0 %v336
        %457 = vmatmul.f32.gmra.mxu0 %v346
        %v458 = vpop.f32.mrf.mxu0
        %v459 = vadd.f32 0.0, %v458
        %460 = vmatmul.f32.gmra.mxu0 %v349
        %v461 = vpop.f32.mrf.mxu0
        %v462 = vadd.f32 0.0, %v461
        %463 = vmatmul.f32.gmra.mxu0 %v352
        %v464 = vpop.f32.mrf.mxu0
        %v465 = vadd.f32 0.0, %v464
        %466 = vmatmul.f32.gmra.mxu0 %v355
        %v467 = vpop.f32.mrf.mxu0
        %v468 = vadd.f32 0.0, %v467
        %469 = vmatmul.f32.gmra.mxu0 %v358
        %v470 = vpop.f32.mrf.mxu0
        %v471 = vadd.f32 0.0, %v470
        %472 = vmatmul.f32.gmra.mxu0 %v361
        %v473 = vpop.f32.mrf.mxu0
        %v474 = vadd.f32 0.0, %v473
        %475 = vmatmul.f32.gmra.mxu0 %v364
        %v476 = vpop.f32.mrf.mxu0
        %v477 = vadd.f32 0.0, %v476
        %478 = vmatmul.f32.gmra.mxu0 %v367
        %v479 = vpop.f32.mrf.mxu0
        %v480 = vadd.f32 0.0, %v479
        %481 = vmatmul.f32.gmra.mxu0 %v370
        %v482 = vpop.f32.mrf.mxu0
        %v483 = vadd.f32 0.0, %v482
        %484 = vmatmul.f32.gmra.mxu0 %v373
        %v485 = vpop.f32.mrf.mxu0
        %v486 = vadd.f32 0.0, %v485
        %487 = vmatmul.f32.gmra.mxu0 %v376
        %v488 = vpop.f32.mrf.mxu0
        %v489 = vadd.f32 0.0, %v488
        %490 = vmatmul.f32.gmra.mxu0 %v379
        %v491 = vpop.f32.mrf.mxu0
        %v492 = vadd.f32 0.0, %v491
        %493 = vmatmul.f32.gmra.mxu0 %v382
        %v494 = vpop.f32.mrf.mxu0
        %v495 = vadd.f32 0.0, %v494
        %496 = vmatmul.f32.gmra.mxu0 %v385
        %v497 = vpop.f32.mrf.mxu0
        %v498 = vadd.f32 0.0, %v497
        %499 = vmatmul.f32.gmra.mxu0 %v388
        %v500 = vpop.f32.mrf.mxu0
        %v501 = vadd.f32 0.0, %v500
        %502 = vmatmul.f32.gmra.mxu0 %v391
        %v503 = vpop.f32.mrf.mxu0
        %v504 = vadd.f32 0.0, %v503
        %505 = vmatmul.f32.gmra.mxu0 %v394
        %v506 = vpop.f32.mrf.mxu0
        %v507 = vadd.f32 0.0, %v506
        %508 = vmatmul.f32.gmra.mxu0 %v397
        %v509 = vpop.f32.mrf.mxu0
        %v510 = vadd.f32 0.0, %v509
        %511 = vmatmul.f32.gmra.mxu0 %v400
        %v512 = vpop.f32.mrf.mxu0
        %v513 = vadd.f32 0.0, %v512
        %514 = vmatmul.f32.gmra.mxu0 %v403
        %v515 = vpop.f32.mrf.mxu0
        %v516 = vadd.f32 0.0, %v515
        %517 = vmatmul.f32.gmra.mxu0 %v406
        %v518 = vpop.f32.mrf.mxu0
        %v519 = vadd.f32 0.0, %v518
        %520 = vmatmul.f32.gmra.mxu0 %v409
        %v521 = vpop.f32.mrf.mxu0
        %v522 = vadd.f32 0.0, %v521
        %523 = vmatmul.f32.gmra.mxu0 %v412
        %v524 = vpop.f32.mrf.mxu0
        %v525 = vadd.f32 0.0, %v524
        %526 = vmatmul.f32.gmra.mxu0 %v415
        %v527 = vpop.f32.mrf.mxu0
        %v528 = vadd.f32 0.0, %v527
        %529 = vmatmul.f32.gmra.mxu0 %v418
        %v530 = vpop.f32.mrf.mxu0
        %v531 = vadd.f32 0.0, %v530
        %532 = vmatmul.f32.gmra.mxu0 %v421
        %v533 = vpop.f32.mrf.mxu0
        %v534 = vadd.f32 0.0, %v533
        %535 = vmatmul.f32.gmra.mxu0 %v424
        %v536 = vpop.f32.mrf.mxu0
        %v537 = vadd.f32 0.0, %v536
        %538 = vmatmul.f32.gmra.mxu0 %v427
        %v539 = vpop.f32.mrf.mxu0
        %v540 = vadd.f32 0.0, %v539
        %541 = vmatmul.f32.gmra.mxu0 %v430
        %v542 = vpop.f32.mrf.mxu0
        %v543 = vadd.f32 0.0, %v542
        %544 = vmatmul.f32.gmra.mxu0 %v433
        %v545 = vpop.f32.mrf.mxu0
        %v546 = vadd.f32 0.0, %v545
        %547 = vmatmul.f32.gmra.mxu0 %v436
        %v548 = vpop.f32.mrf.mxu0
        %v549 = vadd.f32 0.0, %v548
        %550 = vmatmul.f32.gmra.mxu0 %v439
        %v551 = vpop.f32.mrf.mxu0
        %v552 = vadd.f32 0.0, %v551
        %553 = vdwg.mxu0
        %554 = vst [vmem:[#allocation2] sm:$0xff] 0.0
        %555 = vst [vmem:[#allocation2 + $0x8] sm:$0xff] 0.0
        %556 = vst [vmem:[#allocation2 + $0x10] sm:$0x3] 0.0
        %557 = vst [vmem:[#allocation2 + $0x18] sm:$0xff] 0.0
        %558 = vst [vmem:[#allocation2 + $0x20] sm:$0xff] 0.0
        %559 = vst [vmem:[#allocation2 + $0x28] sm:$0x3] 0.0
        %560 = vst [vmem:[#allocation2 + $0x30] sm:$0xff] 0.0
        %561 = vst [vmem:[#allocation2 + $0x38] sm:$0xff] 0.0
        %562 = vst [vmem:[#allocation2 + $0x40] sm:$0x3] 0.0
        %563 = vst [vmem:[#allocation2 + $0x48] sm:$0xff] 0.0
        %564 = vst [vmem:[#allocation2 + $0x50] sm:$0xff] 0.0
        %565 = vst [vmem:[#allocation2 + $0x58] sm:$0x3] 0.0
        %566 = vst [vmem:[#allocation2 + $0x60] sm:$0xff] 0.0
        %567 = vst [vmem:[#allocation2 + $0x68] sm:$0xff] 0.0
        %568 = vst [vmem:[#allocation2 + $0x70] sm:$0x3] 0.0
        %569 = vst [vmem:[#allocation2 + $0x78] sm:$0xff] 0.0
        %570 = vst [vmem:[#allocation2 + $0x80] sm:$0xff] 0.0
        %571 = vst [vmem:[#allocation2 + $0x88] sm:$0x3] 0.0
        %572 = vst [vmem:[#allocation2 + $0x90] sm:$0xff] 0.0
        %573 = vst [vmem:[#allocation2 + $0x98] sm:$0xff] 0.0
        %574 = vst [vmem:[#allocation2 + $0xa0] sm:$0x3] 0.0
        %575 = vst [vmem:[#allocation2 + $0xa8] sm:$0xff] 0.0
        %576 = vst [vmem:[#allocation2 + $0xb0] sm:$0xff] 0.0
        %577 = vst [vmem:[#allocation2 + $0xb8] sm:$0x3] 0.0
        %578 = vst [vmem:[#allocation2 + $0xc0] sm:$0xff] 0.0
        %579 = vst [vmem:[#allocation2 + $0xc8] sm:$0xff] 0.0
        %580 = vst [vmem:[#allocation2 + $0xd0] sm:$0x3] 0.0
        %581 = vst [vmem:[#allocation2 + $0xd8] sm:$0xff] 0.0
        %582 = vst [vmem:[#allocation2 + $0xe0] sm:$0xff] 0.0
        %583 = vst [vmem:[#allocation2 + $0xe8] sm:$0x3] 0.0
        %584 = vst [vmem:[#allocation2 + $0xf0] sm:$0xff] 0.0
        %585 = vst [vmem:[#allocation2 + $0xf8] sm:$0xff] 0.0
        %586 = vst [vmem:[#allocation2 + $0x100] sm:$0x3] 0.0
        %587 = vst [vmem:[#allocation2 + $0x108] sm:$0xff] 0.0
        %588 = vst [vmem:[#allocation2 + $0x110] sm:$0xff] 0.0
        %589 = vst [vmem:[#allocation2 + $0x118] sm:$0x3] 0.0
        %590 = vst [vmem:[#allocation2 + $0x120] sm:$0xff] 0.0
        %591 = vst [vmem:[#allocation2 + $0x128] sm:$0xff] 0.0
        %592 = vst [vmem:[#allocation2 + $0x130] sm:$0x3] 0.0
        %593 = vst [vmem:[#allocation2 + $0x138] sm:$0xff] 0.0
        %594 = vst [vmem:[#allocation2 + $0x140] sm:$0xff] 0.0
        %595 = vst [vmem:[#allocation2 + $0x148] sm:$0x3] 0.0
        %596 = vst [vmem:[#allocation2 + $0x150] sm:$0xff] 0.0
        %597 = vst [vmem:[#allocation2 + $0x158] sm:$0xff] 0.0
        %598 = vst [vmem:[#allocation2 + $0x160] sm:$0x3] 0.0
        %599 = vst [vmem:[#allocation2 + $0x168] sm:$0xff] 0.0
        %600 = vst [vmem:[#allocation2 + $0x170] sm:$0xff] 0.0
        %601 = vst [vmem:[#allocation2 + $0x178] sm:$0x3] 0.0
        %602 = vst [vmem:[#allocation2 + $0x180] sm:$0xff] 0.0
        %603 = vst [vmem:[#allocation2 + $0x188] sm:$0xff] 0.0
        %604 = vst [vmem:[#allocation2 + $0x190] sm:$0x3] 0.0
        %605 = vst [vmem:[#allocation2 + $0x198] sm:$0xff] 0.0
        %606 = vst [vmem:[#allocation2 + $0x1a0] sm:$0xff] 0.0
        %607 = vst [vmem:[#allocation2 + $0x1a8] sm:$0x3] 0.0
        %s608 = scalar_lea.vmem [#allocation2], 24
        %609 = vst [vmem:[%s608 + $0x1] sm:$0xff] %v459
        %610 = vst [vmem:[%s608 + $0x9] sm:$0xff] %v462
        %611 = vst [vmem:[%s608 + $0x19] sm:$0xff] %v465
        %612 = vst [vmem:[%s608 + $0x21] sm:$0xff] %v468
        %613 = vst [vmem:[%s608 + $0x31] sm:$0xff] %v471
        %614 = vst [vmem:[%s608 + $0x39] sm:$0xff] %v474
        %615 = vst [vmem:[%s608 + $0x49] sm:$0xff] %v477
        %616 = vst [vmem:[%s608 + $0x51] sm:$0xff] %v480
        %617 = vst [vmem:[%s608 + $0x61] sm:$0xff] %v483
        %618 = vst [vmem:[%s608 + $0x69] sm:$0xff] %v486
        %619 = vst [vmem:[%s608 + $0x79] sm:$0xff] %v489
        %620 = vst [vmem:[%s608 + $0x81] sm:$0xff] %v492
        %621 = vst [vmem:[%s608 + $0x91] sm:$0xff] %v495
        %622 = vst [vmem:[%s608 + $0x99] sm:$0xff] %v498
        %623 = vst [vmem:[%s608 + $0xa9] sm:$0xff] %v501
        %624 = vst [vmem:[%s608 + $0xb1] sm:$0xff] %v504
        %625 = vst [vmem:[%s608 + $0xc1] sm:$0xff] %v507
        %626 = vst [vmem:[%s608 + $0xc9] sm:$0xff] %v510
        %627 = vst [vmem:[%s608 + $0xd9] sm:$0xff] %v513
        %628 = vst [vmem:[%s608 + $0xe1] sm:$0xff] %v516
        %629 = vst [vmem:[%s608 + $0xf1] sm:$0xff] %v519
        %630 = vst [vmem:[%s608 + $0xf9] sm:$0xff] %v522
        %631 = vst [vmem:[%s608 + $0x109] sm:$0xff] %v525
        %632 = vst [vmem:[%s608 + $0x111] sm:$0xff] %v528
        %633 = vst [vmem:[%s608 + $0x121] sm:$0xff] %v531
        %634 = vst [vmem:[%s608 + $0x129] sm:$0xff] %v534
        %635 = vst [vmem:[%s608 + $0x139] sm:$0xff] %v537
        %636 = vst [vmem:[%s608 + $0x141] sm:$0xff] %v540
        %637 = vst [vmem:[%s608 + $0x151] sm:$0xff] %v543
        %638 = vst [vmem:[%s608 + $0x159] sm:$0xff] %v546
        %639 = vst [vmem:[%s608 + $0x169] sm:$0xff] %v549
        %640 = vst [vmem:[%s608 + $0x171] sm:$0xff] %v552
        %v641 = vld [vmem:[#allocation2] sm:$0xff]
        %v642 = vld [vmem:[#allocation2 + $0x8] sm:$0xff]
        %v643 = vld [vmem:[#allocation2 + $0x18] sm:$0xff]
        %v644 = vld [vmem:[#allocation2 + $0x20] sm:$0xff]
        %v645 = vld [vmem:[#allocation2 + $0x30] sm:$0xff]
        %v646 = vld [vmem:[#allocation2 + $0x38] sm:$0xff]
        %v647 = vld [vmem:[#allocation2 + $0x48] sm:$0xff]
        %v648 = vld [vmem:[#allocation2 + $0x50] sm:$0xff]
        %v649 = vld [vmem:[#allocation2 + $0x60] sm:$0xff]
        %v650 = vld [vmem:[#allocation2 + $0x68] sm:$0xff]
        %v651 = vld [vmem:[#allocation2 + $0x78] sm:$0xff]
        %v652 = vld [vmem:[#allocation2 + $0x80] sm:$0xff]
        %v653 = vld [vmem:[#allocation2 + $0x90] sm:$0xff]
        %v654 = vld [vmem:[#allocation2 + $0x98] sm:$0xff]
        %v655 = vld [vmem:[#allocation2 + $0xa8] sm:$0xff]
        %v656 = vld [vmem:[#allocation2 + $0xb0] sm:$0xff]
        %v657 = vld [vmem:[#allocation2 + $0xc0] sm:$0xff]
        %v658 = vld [vmem:[#allocation2 + $0xc8] sm:$0xff]
        %v659 = vld [vmem:[#allocation2 + $0xd8] sm:$0xff]
        %v660 = vld [vmem:[#allocation2 + $0xe0] sm:$0xff]
        %v661 = vld [vmem:[#allocation2 + $0xf0] sm:$0xff]
        %v662 = vld [vmem:[#allocation2 + $0xf8] sm:$0xff]
        %v663 = vld [vmem:[#allocation2 + $0x108] sm:$0xff]
        %v664 = vld [vmem:[#allocation2 + $0x110] sm:$0xff]
        %v665 = vld [vmem:[#allocation2 + $0x120] sm:$0xff]
        %v666 = vld [vmem:[#allocation2 + $0x128] sm:$0xff]
        %v667 = vld [vmem:[#allocation2 + $0x138] sm:$0xff]
        %v668 = vld [vmem:[#allocation2 + $0x140] sm:$0xff]
        %v669 = vld [vmem:[#allocation2 + $0x150] sm:$0xff]
        %v670 = vld [vmem:[#allocation2 + $0x158] sm:$0xff]
        %v671 = vld [vmem:[#allocation2 + $0x168] sm:$0xff]
        %v672 = vld [vmem:[#allocation2 + $0x170] sm:$0xff]
        %673 = vst [vmem:[#allocation3] sm:$0xff] %v641
        %674 = vst [vmem:[#allocation3 + $0x48] sm:$0xff] %v642
        %675 = vst [vmem:[#allocation3 + $0x90] sm:$0xff] %v643
        %676 = vst [vmem:[#allocation3 + $0xd8] sm:$0xff] %v644
        %677 = vst [vmem:[#allocation3 + $0x120] sm:$0xff] %v645
        %678 = vst [vmem:[#allocation3 + $0x168] sm:$0xff] %v646
        %679 = vst [vmem:[#allocation3 + $0x1b0] sm:$0xff] %v647
        %680 = vst [vmem:[#allocation3 + $0x1f8] sm:$0xff] %v648
        %681 = vst [vmem:[#allocation3 + $0x240] sm:$0xff] %v649
        %682 = vst [vmem:[#allocation3 + $0x288] sm:$0xff] %v650
        %683 = vst [vmem:[#allocation3 + $0x2d0] sm:$0xff] %v651
        %684 = vst [vmem:[#allocation3 + $0x318] sm:$0xff] %v652
        %685 = vst [vmem:[#allocation3 + $0x360] sm:$0xff] %v653
        %686 = vst [vmem:[#allocation3 + $0x3a8] sm:$0xff] %v654
        %687 = vst [vmem:[#allocation3 + $0x3f0] sm:$0xff] %v655
        %688 = vst [vmem:[#allocation3 + $0x438] sm:$0xff] %v656
        %689 = vst [vmem:[#allocation3 + $0x480] sm:$0xff] %v657
        %690 = vst [vmem:[#allocation3 + $0x4c8] sm:$0xff] %v658
        %691 = vst [vmem:[#allocation3 + $0x510] sm:$0xff] %v659
        %692 = vst [vmem:[#allocation3 + $0x558] sm:$0xff] %v660
        %693 = vst [vmem:[#allocation3 + $0x5a0] sm:$0xff] %v661
        %694 = vst [vmem:[#allocation3 + $0x5e8] sm:$0xff] %v662
        %695 = vst [vmem:[#allocation3 + $0x630] sm:$0xff] %v663
        %696 = vst [vmem:[#allocation3 + $0x678] sm:$0xff] %v664
        %697 = vst [vmem:[#allocation3 + $0x6c0] sm:$0xff] %v665
        %698 = vst [vmem:[#allocation3 + $0x708] sm:$0xff] %v666
        %699 = vst [vmem:[#allocation3 + $0x750] sm:$0xff] %v667
        %700 = vst [vmem:[#allocation3 + $0x798] sm:$0xff] %v668
        %701 = vst [vmem:[#allocation3 + $0x7e0] sm:$0xff] %v669
        %702 = vst [vmem:[#allocation3 + $0x828] sm:$0xff] %v670
        %703 = vst [vmem:[#allocation3 + $0x870] sm:$0xff] %v671
        %704 = vst [vmem:[#allocation3 + $0x8b8] sm:$0xff] %v672
        %v705 = vld [vmem:[#allocation2 + $0x1] sm:$0xff]
        %v706 = vld [vmem:[#allocation2 + $0x9] sm:$0xff]
        %v707 = vld [vmem:[#allocation2 + $0x19] sm:$0xff]
        %v708 = vld [vmem:[#allocation2 + $0x21] sm:$0xff]
        %v709 = vld [vmem:[#allocation2 + $0x31] sm:$0xff]
        %v710 = vld [vmem:[#allocation2 + $0x39] sm:$0xff]
        %v711 = vld [vmem:[#allocation2 + $0x49] sm:$0xff]
        %v712 = vld [vmem:[#allocation2 + $0x51] sm:$0xff]
        %v713 = vld [vmem:[#allocation2 + $0x61] sm:$0xff]
        %v714 = vld [vmem:[#allocation2 + $0x69] sm:$0xff]
        %v715 = vld [vmem:[#allocation2 + $0x79] sm:$0xff]
        %v716 = vld [vmem:[#allocation2 + $0x81] sm:$0xff]
        %v717 = vld [vmem:[#allocation2 + $0x91] sm:$0xff]
        %v718 = vld [vmem:[#allocation2 + $0x99] sm:$0xff]
        %v719 = vld [vmem:[#allocation2 + $0xa9] sm:$0xff]
        %v720 = vld [vmem:[#allocation2 + $0xb1] sm:$0xff]
        %v721 = vld [vmem:[#allocation2 + $0xc1] sm:$0xff]
        %v722 = vld [vmem:[#allocation2 + $0xc9] sm:$0xff]
        %v723 = vld [vmem:[#allocation2 + $0xd9] sm:$0xff]
        %v724 = vld [vmem:[#allocation2 + $0xe1] sm:$0xff]
        %v725 = vld [vmem:[#allocation2 + $0xf1] sm:$0xff]
        %v726 = vld [vmem:[#allocation2 + $0xf9] sm:$0xff]
        %v727 = vld [vmem:[#allocation2 + $0x109] sm:$0xff]
        %v728 = vld [vmem:[#allocation2 + $0x111] sm:$0xff]
        %v729 = vld [vmem:[#allocation2 + $0x121] sm:$0xff]
        %v730 = vld [vmem:[#allocation2 + $0x129] sm:$0xff]
        %v731 = vld [vmem:[#allocation2 + $0x139] sm:$0xff]
        %v732 = vld [vmem:[#allocation2 + $0x141] sm:$0xff]
        %v733 = vld [vmem:[#allocation2 + $0x151] sm:$0xff]
        %v734 = vld [vmem:[#allocation2 + $0x159] sm:$0xff]
        %v735 = vld [vmem:[#allocation2 + $0x169] sm:$0xff]
        %v736 = vld [vmem:[#allocation2 + $0x171] sm:$0xff]
        %737 = vst [vmem:[#allocation3 + $0x8] sm:$0xff] %v705
        %738 = vst [vmem:[#allocation3 + $0x50] sm:$0xff] %v706
        %739 = vst [vmem:[#allocation3 + $0x98] sm:$0xff] %v707
        %740 = vst [vmem:[#allocation3 + $0xe0] sm:$0xff] %v708
        %741 = vst [vmem:[#allocation3 + $0x128] sm:$0xff] %v709
        %742 = vst [vmem:[#allocation3 + $0x170] sm:$0xff] %v710
        %743 = vst [vmem:[#allocation3 + $0x1b8] sm:$0xff] %v711
        %744 = vst [vmem:[#allocation3 + $0x200] sm:$0xff] %v712
        %745 = vst [vmem:[#allocation3 + $0x248] sm:$0xff] %v713
        %746 = vst [vmem:[#allocation3 + $0x290] sm:$0xff] %v714
        %747 = vst [vmem:[#allocation3 + $0x2d8] sm:$0xff] %v715
        %748 = vst [vmem:[#allocation3 + $0x320] sm:$0xff] %v716
        %749 = vst [vmem:[#allocation3 + $0x368] sm:$0xff] %v717
        %750 = vst [vmem:[#allocation3 + $0x3b0] sm:$0xff] %v718
        %751 = vst [vmem:[#allocation3 + $0x3f8] sm:$0xff] %v719
        %752 = vst [vmem:[#allocation3 + $0x440] sm:$0xff] %v720
        %753 = vst [vmem:[#allocation3 + $0x488] sm:$0xff] %v721
        %754 = vst [vmem:[#allocation3 + $0x4d0] sm:$0xff] %v722
        %755 = vst [vmem:[#allocation3 + $0x518] sm:$0xff] %v723
        %756 = vst [vmem:[#allocation3 + $0x560] sm:$0xff] %v724
        %757 = vst [vmem:[#allocation3 + $0x5a8] sm:$0xff] %v725
        %758 = vst [vmem:[#allocation3 + $0x5f0] sm:$0xff] %v726
        %759 = vst [vmem:[#allocation3 + $0x638] sm:$0xff] %v727
        %760 = vst [vmem:[#allocation3 + $0x680] sm:$0xff] %v728
        %761 = vst [vmem:[#allocation3 + $0x6c8] sm:$0xff] %v729
        %762 = vst [vmem:[#allocation3 + $0x710] sm:$0xff] %v730
        %763 = vst [vmem:[#allocation3 + $0x758] sm:$0xff] %v731
        %764 = vst [vmem:[#allocation3 + $0x7a0] sm:$0xff] %v732
        %765 = vst [vmem:[#allocation3 + $0x7e8] sm:$0xff] %v733
        %766 = vst [vmem:[#allocation3 + $0x830] sm:$0xff] %v734
        %767 = vst [vmem:[#allocation3 + $0x878] sm:$0xff] %v735
        %768 = vst [vmem:[#allocation3 + $0x8c0] sm:$0xff] %v736
        %v769 = vld [vmem:[#allocation2 + $0x2] sm:$0xff]
        %v770 = vld [vmem:[#allocation2 + $0xa] sm:$0xff]
        %v771 = vld [vmem:[#allocation2 + $0x1a] sm:$0xff]
        %v772 = vld [vmem:[#allocation2 + $0x22] sm:$0xff]
        %v773 = vld [vmem:[#allocation2 + $0x32] sm:$0xff]
        %v774 = vld [vmem:[#allocation2 + $0x3a] sm:$0xff]
        %v775 = vld [vmem:[#allocation2 + $0x4a] sm:$0xff]
        %v776 = vld [vmem:[#allocation2 + $0x52] sm:$0xff]
        %v777 = vld [vmem:[#allocation2 + $0x62] sm:$0xff]
        %v778 = vld [vmem:[#allocation2 + $0x6a] sm:$0xff]
        %v779 = vld [vmem:[#allocation2 + $0x7a] sm:$0xff]
        %v780 = vld [vmem:[#allocation2 + $0x82] sm:$0xff]
        %v781 = vld [vmem:[#allocation2 + $0x92] sm:$0xff]
        %v782 = vld [vmem:[#allocation2 + $0x9a] sm:$0xff]
        %v783 = vld [vmem:[#allocation2 + $0xaa] sm:$0xff]
        %v784 = vld [vmem:[#allocation2 + $0xb2] sm:$0xff]
        %v785 = vld [vmem:[#allocation2 + $0xc2] sm:$0xff]
        %v786 = vld [vmem:[#allocation2 + $0xca] sm:$0xff]
        %v787 = vld [vmem:[#allocation2 + $0xda] sm:$0xff]
        %v788 = vld [vmem:[#allocation2 + $0xe2] sm:$0xff]
        %v789 = vld [vmem:[#allocation2 + $0xf2] sm:$0xff]
        %v790 = vld [vmem:[#allocation2 + $0xfa] sm:$0xff]
        %v791 = vld [vmem:[#allocation2 + $0x10a] sm:$0xff]
        %v792 = vld [vmem:[#allocation2 + $0x112] sm:$0xff]
        %v793 = vld [vmem:[#allocation2 + $0x122] sm:$0xff]
        %v794 = vld [vmem:[#allocation2 + $0x12a] sm:$0xff]
        %v795 = vld [vmem:[#allocation2 + $0x13a] sm:$0xff]
        %v796 = vld [vmem:[#allocation2 + $0x142] sm:$0xff]
        %v797 = vld [vmem:[#allocation2 + $0x152] sm:$0xff]
        %v798 = vld [vmem:[#allocation2 + $0x15a] sm:$0xff]
        %v799 = vld [vmem:[#allocation2 + $0x16a] sm:$0xff]
        %v800 = vld [vmem:[#allocation2 + $0x172] sm:$0xff]
        %801 = vst [vmem:[#allocation3 + $0x10] sm:$0xff] %v769
        %802 = vst [vmem:[#allocation3 + $0x58] sm:$0xff] %v770
        %803 = vst [vmem:[#allocation3 + $0xa0] sm:$0xff] %v771
        %804 = vst [vmem:[#allocation3 + $0xe8] sm:$0xff] %v772
        %805 = vst [vmem:[#allocation3 + $0x130] sm:$0xff] %v773
        %806 = vst [vmem:[#allocation3 + $0x178] sm:$0xff] %v774
        %807 = vst [vmem:[#allocation3 + $0x1c0] sm:$0xff] %v775
        %808 = vst [vmem:[#allocation3 + $0x208] sm:$0xff] %v776
        %809 = vst [vmem:[#allocation3 + $0x250] sm:$0xff] %v777
        %810 = vst [vmem:[#allocation3 + $0x298] sm:$0xff] %v778
        %811 = vst [vmem:[#allocation3 + $0x2e0] sm:$0xff] %v779
        %812 = vst [vmem:[#allocation3 + $0x328] sm:$0xff] %v780
        %813 = vst [vmem:[#allocation3 + $0x370] sm:$0xff] %v781
        %814 = vst [vmem:[#allocation3 + $0x3b8] sm:$0xff] %v782
        %815 = vst [vmem:[#allocation3 + $0x400] sm:$0xff] %v783
        %816 = vst [vmem:[#allocation3 + $0x448] sm:$0xff] %v784
        %817 = vst [vmem:[#allocation3 + $0x490] sm:$0xff] %v785
        %818 = vst [vmem:[#allocation3 + $0x4d8] sm:$0xff] %v786
        %819 = vst [vmem:[#allocation3 + $0x520] sm:$0xff] %v787
        %820 = vst [vmem:[#allocation3 + $0x568] sm:$0xff] %v788
        %821 = vst [vmem:[#allocation3 + $0x5b0] sm:$0xff] %v789
        %822 = vst [vmem:[#allocation3 + $0x5f8] sm:$0xff] %v790
        %823 = vst [vmem:[#allocation3 + $0x640] sm:$0xff] %v791
        %824 = vst [vmem:[#allocation3 + $0x688] sm:$0xff] %v792
        %825 = vst [vmem:[#allocation3 + $0x6d0] sm:$0xff] %v793
        %826 = vst [vmem:[#allocation3 + $0x718] sm:$0xff] %v794
        %827 = vst [vmem:[#allocation3 + $0x760] sm:$0xff] %v795
        %828 = vst [vmem:[#allocation3 + $0x7a8] sm:$0xff] %v796
        %829 = vst [vmem:[#allocation3 + $0x7f0] sm:$0xff] %v797
        %830 = vst [vmem:[#allocation3 + $0x838] sm:$0xff] %v798
        %831 = vst [vmem:[#allocation3 + $0x880] sm:$0xff] %v799
        %832 = vst [vmem:[#allocation3 + $0x8c8] sm:$0xff] %v800
        %v833 = vld [vmem:[%s608] sm:$0xff]
        %v834 = vld [vmem:[%s608 + $0x8] sm:$0xff]
        %v835 = vld [vmem:[%s608 + $0x18] sm:$0xff]
        %v836 = vld [vmem:[%s608 + $0x20] sm:$0xff]
        %v837 = vld [vmem:[%s608 + $0x30] sm:$0xff]
        %v838 = vld [vmem:[%s608 + $0x38] sm:$0xff]
        %v839 = vld [vmem:[%s608 + $0x48] sm:$0xff]
        %v840 = vld [vmem:[%s608 + $0x50] sm:$0xff]
        %v841 = vld [vmem:[%s608 + $0x60] sm:$0xff]
        %v842 = vld [vmem:[%s608 + $0x68] sm:$0xff]
        %v843 = vld [vmem:[%s608 + $0x78] sm:$0xff]
        %v844 = vld [vmem:[%s608 + $0x80] sm:$0xff]
        %v845 = vld [vmem:[%s608 + $0x90] sm:$0xff]
        %v846 = vld [vmem:[%s608 + $0x98] sm:$0xff]
        %v847 = vld [vmem:[%s608 + $0xa8] sm:$0xff]
        %v848 = vld [vmem:[%s608 + $0xb0] sm:$0xff]
        %v849 = vld [vmem:[%s608 + $0xc0] sm:$0xff]
        %v850 = vld [vmem:[%s608 + $0xc8] sm:$0xff]
        %v851 = vld [vmem:[%s608 + $0xd8] sm:$0xff]
        %v852 = vld [vmem:[%s608 + $0xe0] sm:$0xff]
        %v853 = vld [vmem:[%s608 + $0xf0] sm:$0xff]
        %v854 = vld [vmem:[%s608 + $0xf8] sm:$0xff]
        %v855 = vld [vmem:[%s608 + $0x108] sm:$0xff]
        %v856 = vld [vmem:[%s608 + $0x110] sm:$0xff]
        %v857 = vld [vmem:[%s608 + $0x120] sm:$0xff]
        %v858 = vld [vmem:[%s608 + $0x128] sm:$0xff]
        %v859 = vld [vmem:[%s608 + $0x138] sm:$0xff]
        %v860 = vld [vmem:[%s608 + $0x140] sm:$0xff]
        %v861 = vld [vmem:[%s608 + $0x150] sm:$0xff]
        %v862 = vld [vmem:[%s608 + $0x158] sm:$0xff]
        %v863 = vld [vmem:[%s608 + $0x168] sm:$0xff]
        %v864 = vld [vmem:[%s608 + $0x170] sm:$0xff]
        %865 = vst [vmem:[#allocation3 + $0x18] sm:$0xff] %v833
        %866 = vst [vmem:[#allocation3 + $0x60] sm:$0xff] %v834
        %867 = vst [vmem:[#allocation3 + $0xa8] sm:$0xff] %v835
        %868 = vst [vmem:[#allocation3 + $0xf0] sm:$0xff] %v836
        %869 = vst [vmem:[#allocation3 + $0x138] sm:$0xff] %v837
        %870 = vst [vmem:[#allocation3 + $0x180] sm:$0xff] %v838
        %871 = vst [vmem:[#allocation3 + $0x1c8] sm:$0xff] %v839
        %872 = vst [vmem:[#allocation3 + $0x210] sm:$0xff] %v840
        %873 = vst [vmem:[#allocation3 + $0x258] sm:$0xff] %v841
        %874 = vst [vmem:[#allocation3 + $0x2a0] sm:$0xff] %v842
        %875 = vst [vmem:[#allocation3 + $0x2e8] sm:$0xff] %v843
        %876 = vst [vmem:[#allocation3 + $0x330] sm:$0xff] %v844
        %877 = vst [vmem:[#allocation3 + $0x378] sm:$0xff] %v845
        %878 = vst [vmem:[#allocation3 + $0x3c0] sm:$0xff] %v846
        %879 = vst [vmem:[#allocation3 + $0x408] sm:$0xff] %v847
        %880 = vst [vmem:[#allocation3 + $0x450] sm:$0xff] %v848
        %881 = vst [vmem:[#allocation3 + $0x498] sm:$0xff] %v849
        %882 = vst [vmem:[#allocation3 + $0x4e0] sm:$0xff] %v850
        %883 = vst [vmem:[#allocation3 + $0x528] sm:$0xff] %v851
        %884 = vst [vmem:[#allocation3 + $0x570] sm:$0xff] %v852
        %885 = vst [vmem:[#allocation3 + $0x5b8] sm:$0xff] %v853
        %886 = vst [vmem:[#allocation3 + $0x600] sm:$0xff] %v854
        %887 = vst [vmem:[#allocation3 + $0x648] sm:$0xff] %v855
        %888 = vst [vmem:[#allocation3 + $0x690] sm:$0xff] %v856
        %889 = vst [vmem:[#allocation3 + $0x6d8] sm:$0xff] %v857
        %890 = vst [vmem:[#allocation3 + $0x720] sm:$0xff] %v858
        %891 = vst [vmem:[#allocation3 + $0x768] sm:$0xff] %v859
        %892 = vst [vmem:[#allocation3 + $0x7b0] sm:$0xff] %v860
        %893 = vst [vmem:[#allocation3 + $0x7f8] sm:$0xff] %v861
        %894 = vst [vmem:[#allocation3 + $0x840] sm:$0xff] %v862
        %895 = vst [vmem:[#allocation3 + $0x888] sm:$0xff] %v863
        %896 = vst [vmem:[#allocation3 + $0x8d0] sm:$0xff] %v864
        %v897 = vld [vmem:[%s608 + $0x1] sm:$0xff]
        %v898 = vld [vmem:[%s608 + $0x9] sm:$0xff]
        %v899 = vld [vmem:[%s608 + $0x19] sm:$0xff]
        %v900 = vld [vmem:[%s608 + $0x21] sm:$0xff]
        %v901 = vld [vmem:[%s608 + $0x31] sm:$0xff]
        %v902 = vld [vmem:[%s608 + $0x39] sm:$0xff]
        %v903 = vld [vmem:[%s608 + $0x49] sm:$0xff]
        %v904 = vld [vmem:[%s608 + $0x51] sm:$0xff]
        %v905 = vld [vmem:[%s608 + $0x61] sm:$0xff]
        %v906 = vld [vmem:[%s608 + $0x69] sm:$0xff]
        %v907 = vld [vmem:[%s608 + $0x79] sm:$0xff]
        %v908 = vld [vmem:[%s608 + $0x81] sm:$0xff]
        %v909 = vld [vmem:[%s608 + $0x91] sm:$0xff]
        %v910 = vld [vmem:[%s608 + $0x99] sm:$0xff]
        %v911 = vld [vmem:[%s608 + $0xa9] sm:$0xff]
        %v912 = vld [vmem:[%s608 + $0xb1] sm:$0xff]
        %v913 = vld [vmem:[%s608 + $0xc1] sm:$0xff]
        %v914 = vld [vmem:[%s608 + $0xc9] sm:$0xff]
        %v915 = vld [vmem:[%s608 + $0xd9] sm:$0xff]
        %v916 = vld [vmem:[%s608 + $0xe1] sm:$0xff]
        %v917 = vld [vmem:[%s608 + $0xf1] sm:$0xff]
        %v918 = vld [vmem:[%s608 + $0xf9] sm:$0xff]
        %v919 = vld [vmem:[%s608 + $0x109] sm:$0xff]
        %v920 = vld [vmem:[%s608 + $0x111] sm:$0xff]
        %v921 = vld [vmem:[%s608 + $0x121] sm:$0xff]
        %v922 = vld [vmem:[%s608 + $0x129] sm:$0xff]
        %v923 = vld [vmem:[%s608 + $0x139] sm:$0xff]
        %v924 = vld [vmem:[%s608 + $0x141] sm:$0xff]
        %v925 = vld [vmem:[%s608 + $0x151] sm:$0xff]
        %v926 = vld [vmem:[%s608 + $0x159] sm:$0xff]
        %v927 = vld [vmem:[%s608 + $0x169] sm:$0xff]
        %v928 = vld [vmem:[%s608 + $0x171] sm:$0xff]
        %929 = vst [vmem:[#allocation3 + $0x20] sm:$0xff] %v897
        %930 = vst [vmem:[#allocation3 + $0x68] sm:$0xff] %v898
        %931 = vst [vmem:[#allocation3 + $0xb0] sm:$0xff] %v899
        %932 = vst [vmem:[#allocation3 + $0xf8] sm:$0xff] %v900
        %933 = vst [vmem:[#allocation3 + $0x140] sm:$0xff] %v901
        %934 = vst [vmem:[#allocation3 + $0x188] sm:$0xff] %v902
        %935 = vst [vmem:[#allocation3 + $0x1d0] sm:$0xff] %v903
        %936 = vst [vmem:[#allocation3 + $0x218] sm:$0xff] %v904
        %937 = vst [vmem:[#allocation3 + $0x260] sm:$0xff] %v905
        %938 = vst [vmem:[#allocation3 + $0x2a8] sm:$0xff] %v906
        %939 = vst [vmem:[#allocation3 + $0x2f0] sm:$0xff] %v907
        %940 = vst [vmem:[#allocation3 + $0x338] sm:$0xff] %v908
        %941 = vst [vmem:[#allocation3 + $0x380] sm:$0xff] %v909
        %942 = vst [vmem:[#allocation3 + $0x3c8] sm:$0xff] %v910
        %943 = vst [vmem:[#allocation3 + $0x410] sm:$0xff] %v911
        %944 = vst [vmem:[#allocation3 + $0x458] sm:$0xff] %v912
        %945 = vst [vmem:[#allocation3 + $0x4a0] sm:$0xff] %v913
        %946 = vst [vmem:[#allocation3 + $0x4e8] sm:$0xff] %v914
        %947 = vst [vmem:[#allocation3 + $0x530] sm:$0xff] %v915
        %948 = vst [vmem:[#allocation3 + $0x578] sm:$0xff] %v916
        %949 = vst [vmem:[#allocation3 + $0x5c0] sm:$0xff] %v917
        %950 = vst [vmem:[#allocation3 + $0x608] sm:$0xff] %v918
        %951 = vst [vmem:[#allocation3 + $0x650] sm:$0xff] %v919
        %952 = vst [vmem:[#allocation3 + $0x698] sm:$0xff] %v920
        %953 = vst [vmem:[#allocation3 + $0x6e0] sm:$0xff] %v921
        %954 = vst [vmem:[#allocation3 + $0x728] sm:$0xff] %v922
        %955 = vst [vmem:[#allocation3 + $0x770] sm:$0xff] %v923
        %956 = vst [vmem:[#allocation3 + $0x7b8] sm:$0xff] %v924
        %957 = vst [vmem:[#allocation3 + $0x800] sm:$0xff] %v925
        %958 = vst [vmem:[#allocation3 + $0x848] sm:$0xff] %v926
        %959 = vst [vmem:[#allocation3 + $0x890] sm:$0xff] %v927
        %960 = vst [vmem:[#allocation3 + $0x8d8] sm:$0xff] %v928
        %v961 = vld [vmem:[%s608 + $0x2] sm:$0xff]
        %v962 = vld [vmem:[%s608 + $0xa] sm:$0xff]
        %v963 = vld [vmem:[%s608 + $0x1a] sm:$0xff]
        %v964 = vld [vmem:[%s608 + $0x22] sm:$0xff]
        %v965 = vld [vmem:[%s608 + $0x32] sm:$0xff]
        %v966 = vld [vmem:[%s608 + $0x3a] sm:$0xff]
        %v967 = vld [vmem:[%s608 + $0x4a] sm:$0xff]
        %v968 = vld [vmem:[%s608 + $0x52] sm:$0xff]
        %v969 = vld [vmem:[%s608 + $0x62] sm:$0xff]
        %v970 = vld [vmem:[%s608 + $0x6a] sm:$0xff]
        %v971 = vld [vmem:[%s608 + $0x7a] sm:$0xff]
        %v972 = vld [vmem:[%s608 + $0x82] sm:$0xff]
        %v973 = vld [vmem:[%s608 + $0x92] sm:$0xff]
        %v974 = vld [vmem:[%s608 + $0x9a] sm:$0xff]
        %v975 = vld [vmem:[%s608 + $0xaa] sm:$0xff]
        %v976 = vld [vmem:[%s608 + $0xb2] sm:$0xff]
        %v977 = vld [vmem:[%s608 + $0xc2] sm:$0xff]
        %v978 = vld [vmem:[%s608 + $0xca] sm:$0xff]
        %v979 = vld [vmem:[%s608 + $0xda] sm:$0xff]
        %v980 = vld [vmem:[%s608 + $0xe2] sm:$0xff]
        %v981 = vld [vmem:[%s608 + $0xf2] sm:$0xff]
        %v982 = vld [vmem:[%s608 + $0xfa] sm:$0xff]
        %v983 = vld [vmem:[%s608 + $0x10a] sm:$0xff]
        %v984 = vld [vmem:[%s608 + $0x112] sm:$0xff]
        %v985 = vld [vmem:[%s608 + $0x122] sm:$0xff]
        %v986 = vld [vmem:[%s608 + $0x12a] sm:$0xff]
        %v987 = vld [vmem:[%s608 + $0x13a] sm:$0xff]
        %v988 = vld [vmem:[%s608 + $0x142] sm:$0xff]
        %v989 = vld [vmem:[%s608 + $0x152] sm:$0xff]
        %v990 = vld [vmem:[%s608 + $0x15a] sm:$0xff]
        %v991 = vld [vmem:[%s608 + $0x16a] sm:$0xff]
        %v992 = vld [vmem:[%s608 + $0x172] sm:$0xff]
        %993 = vst [vmem:[#allocation3 + $0x28] sm:$0xff] %v961
        %994 = vst [vmem:[#allocation3 + $0x70] sm:$0xff] %v962
        %995 = vst [vmem:[#allocation3 + $0xb8] sm:$0xff] %v963
        %996 = vst [vmem:[#allocation3 + $0x100] sm:$0xff] %v964
        %997 = vst [vmem:[#allocation3 + $0x148] sm:$0xff] %v965
        %998 = vst [vmem:[#allocation3 + $0x190] sm:$0xff] %v966
        %999 = vst [vmem:[#allocation3 + $0x1d8] sm:$0xff] %v967
        %1000 = vst [vmem:[#allocation3 + $0x220] sm:$0xff] %v968
        %1001 = vst [vmem:[#allocation3 + $0x268] sm:$0xff] %v969
        %1002 = vst [vmem:[#allocation3 + $0x2b0] sm:$0xff] %v970
        %1003 = vst [vmem:[#allocation3 + $0x2f8] sm:$0xff] %v971
        %1004 = vst [vmem:[#allocation3 + $0x340] sm:$0xff] %v972
        %1005 = vst [vmem:[#allocation3 + $0x388] sm:$0xff] %v973
        %1006 = vst [vmem:[#allocation3 + $0x3d0] sm:$0xff] %v974
        %1007 = vst [vmem:[#allocation3 + $0x418] sm:$0xff] %v975
        %1008 = vst [vmem:[#allocation3 + $0x460] sm:$0xff] %v976
        %1009 = vst [vmem:[#allocation3 + $0x4a8] sm:$0xff] %v977
        %1010 = vst [vmem:[#allocation3 + $0x4f0] sm:$0xff] %v978
        %1011 = vst [vmem:[#allocation3 + $0x538] sm:$0xff] %v979
        %1012 = vst [vmem:[#allocation3 + $0x580] sm:$0xff] %v980
        %1013 = vst [vmem:[#allocation3 + $0x5c8] sm:$0xff] %v981
        %1014 = vst [vmem:[#allocation3 + $0x610] sm:$0xff] %v982
        %1015 = vst [vmem:[#allocation3 + $0x658] sm:$0xff] %v983
        %1016 = vst [vmem:[#allocation3 + $0x6a0] sm:$0xff] %v984
        %1017 = vst [vmem:[#allocation3 + $0x6e8] sm:$0xff] %v985
        %1018 = vst [vmem:[#allocation3 + $0x730] sm:$0xff] %v986
        %1019 = vst [vmem:[#allocation3 + $0x778] sm:$0xff] %v987
        %1020 = vst [vmem:[#allocation3 + $0x7c0] sm:$0xff] %v988
        %1021 = vst [vmem:[#allocation3 + $0x808] sm:$0xff] %v989
        %1022 = vst [vmem:[#allocation3 + $0x850] sm:$0xff] %v990
        %1023 = vst [vmem:[#allocation3 + $0x898] sm:$0xff] %v991
        %1024 = vst [vmem:[#allocation3 + $0x8e0] sm:$0xff] %v992
        %s1025 = scalar_lea.vmem [#allocation2], 48
        %v1026 = vld [vmem:[%s1025] sm:$0xff]
        %v1027 = vld [vmem:[%s1025 + $0x8] sm:$0xff]
        %v1028 = vld [vmem:[%s1025 + $0x18] sm:$0xff]
        %v1029 = vld [vmem:[%s1025 + $0x20] sm:$0xff]
        %v1030 = vld [vmem:[%s1025 + $0x30] sm:$0xff]
        %v1031 = vld [vmem:[%s1025 + $0x38] sm:$0xff]
        %v1032 = vld [vmem:[%s1025 + $0x48] sm:$0xff]
        %v1033 = vld [vmem:[%s1025 + $0x50] sm:$0xff]
        %v1034 = vld [vmem:[%s1025 + $0x60] sm:$0xff]
        %v1035 = vld [vmem:[%s1025 + $0x68] sm:$0xff]
        %v1036 = vld [vmem:[%s1025 + $0x78] sm:$0xff]
        %v1037 = vld [vmem:[%s1025 + $0x80] sm:$0xff]
        %v1038 = vld [vmem:[%s1025 + $0x90] sm:$0xff]
        %v1039 = vld [vmem:[%s1025 + $0x98] sm:$0xff]
        %v1040 = vld [vmem:[%s1025 + $0xa8] sm:$0xff]
        %v1041 = vld [vmem:[%s1025 + $0xb0] sm:$0xff]
        %v1042 = vld [vmem:[%s1025 + $0xc0] sm:$0xff]
        %v1043 = vld [vmem:[%s1025 + $0xc8] sm:$0xff]
        %v1044 = vld [vmem:[%s1025 + $0xd8] sm:$0xff]
        %v1045 = vld [vmem:[%s1025 + $0xe0] sm:$0xff]
        %v1046 = vld [vmem:[%s1025 + $0xf0] sm:$0xff]
        %v1047 = vld [vmem:[%s1025 + $0xf8] sm:$0xff]
        %v1048 = vld [vmem:[%s1025 + $0x108] sm:$0xff]
        %v1049 = vld [vmem:[%s1025 + $0x110] sm:$0xff]
        %v1050 = vld [vmem:[%s1025 + $0x120] sm:$0xff]
        %v1051 = vld [vmem:[%s1025 + $0x128] sm:$0xff]
        %v1052 = vld [vmem:[%s1025 + $0x138] sm:$0xff]
        %v1053 = vld [vmem:[%s1025 + $0x140] sm:$0xff]
        %v1054 = vld [vmem:[%s1025 + $0x150] sm:$0xff]
        %v1055 = vld [vmem:[%s1025 + $0x158] sm:$0xff]
        %v1056 = vld [vmem:[%s1025 + $0x168] sm:$0xff]
        %v1057 = vld [vmem:[%s1025 + $0x170] sm:$0xff]
        %1058 = vst [vmem:[#allocation3 + $0x30] sm:$0xff] %v1026
        %1059 = vst [vmem:[#allocation3 + $0x78] sm:$0xff] %v1027
        %1060 = vst [vmem:[#allocation3 + $0xc0] sm:$0xff] %v1028
        %1061 = vst [vmem:[#allocation3 + $0x108] sm:$0xff] %v1029
        %1062 = vst [vmem:[#allocation3 + $0x150] sm:$0xff] %v1030
        %1063 = vst [vmem:[#allocation3 + $0x198] sm:$0xff] %v1031
        %1064 = vst [vmem:[#allocation3 + $0x1e0] sm:$0xff] %v1032
        %1065 = vst [vmem:[#allocation3 + $0x228] sm:$0xff] %v1033
        %1066 = vst [vmem:[#allocation3 + $0x270] sm:$0xff] %v1034
        %1067 = vst [vmem:[#allocation3 + $0x2b8] sm:$0xff] %v1035
        %1068 = vst [vmem:[#allocation3 + $0x300] sm:$0xff] %v1036
        %1069 = vst [vmem:[#allocation3 + $0x348] sm:$0xff] %v1037
        %1070 = vst [vmem:[#allocation3 + $0x390] sm:$0xff] %v1038
        %1071 = vst [vmem:[#allocation3 + $0x3d8] sm:$0xff] %v1039
        %1072 = vst [vmem:[#allocation3 + $0x420] sm:$0xff] %v1040
        %1073 = vst [vmem:[#allocation3 + $0x468] sm:$0xff] %v1041
        %1074 = vst [vmem:[#allocation3 + $0x4b0] sm:$0xff] %v1042
        %1075 = vst [vmem:[#allocation3 + $0x4f8] sm:$0xff] %v1043
        %1076 = vst [vmem:[#allocation3 + $0x540] sm:$0xff] %v1044
        %1077 = vst [vmem:[#allocation3 + $0x588] sm:$0xff] %v1045
        %1078 = vst [vmem:[#allocation3 + $0x5d0] sm:$0xff] %v1046
        %1079 = vst [vmem:[#allocation3 + $0x618] sm:$0xff] %v1047
        %1080 = vst [vmem:[#allocation3 + $0x660] sm:$0xff] %v1048
        %1081 = vst [vmem:[#allocation3 + $0x6a8] sm:$0xff] %v1049
        %1082 = vst [vmem:[#allocation3 + $0x6f0] sm:$0xff] %v1050
        %1083 = vst [vmem:[#allocation3 + $0x738] sm:$0xff] %v1051
        %1084 = vst [vmem:[#allocation3 + $0x780] sm:$0xff] %v1052
        %1085 = vst [vmem:[#allocation3 + $0x7c8] sm:$0xff] %v1053
        %1086 = vst [vmem:[#allocation3 + $0x810] sm:$0xff] %v1054
        %1087 = vst [vmem:[#allocation3 + $0x858] sm:$0xff] %v1055
        %1088 = vst [vmem:[#allocation3 + $0x8a0] sm:$0xff] %v1056
        %1089 = vst [vmem:[#allocation3 + $0x8e8] sm:$0xff] %v1057
        %v1090 = vld [vmem:[%s1025 + $0x1] sm:$0xff]
        %v1091 = vld [vmem:[%s1025 + $0x9] sm:$0xff]
        %v1092 = vld [vmem:[%s1025 + $0x19] sm:$0xff]
        %v1093 = vld [vmem:[%s1025 + $0x21] sm:$0xff]
        %v1094 = vld [vmem:[%s1025 + $0x31] sm:$0xff]
        %v1095 = vld [vmem:[%s1025 + $0x39] sm:$0xff]
        %v1096 = vld [vmem:[%s1025 + $0x49] sm:$0xff]
        %v1097 = vld [vmem:[%s1025 + $0x51] sm:$0xff]
        %v1098 = vld [vmem:[%s1025 + $0x61] sm:$0xff]
        %v1099 = vld [vmem:[%s1025 + $0x69] sm:$0xff]
        %v1100 = vld [vmem:[%s1025 + $0x79] sm:$0xff]
        %v1101 = vld [vmem:[%s1025 + $0x81] sm:$0xff]
        %v1102 = vld [vmem:[%s1025 + $0x91] sm:$0xff]
        %v1103 = vld [vmem:[%s1025 + $0x99] sm:$0xff]
        %v1104 = vld [vmem:[%s1025 + $0xa9] sm:$0xff]
        %v1105 = vld [vmem:[%s1025 + $0xb1] sm:$0xff]
        %v1106 = vld [vmem:[%s1025 + $0xc1] sm:$0xff]
        %v1107 = vld [vmem:[%s1025 + $0xc9] sm:$0xff]
        %v1108 = vld [vmem:[%s1025 + $0xd9] sm:$0xff]
        %v1109 = vld [vmem:[%s1025 + $0xe1] sm:$0xff]
        %v1110 = vld [vmem:[%s1025 + $0xf1] sm:$0xff]
        %v1111 = vld [vmem:[%s1025 + $0xf9] sm:$0xff]
        %v1112 = vld [vmem:[%s1025 + $0x109] sm:$0xff]
        %v1113 = vld [vmem:[%s1025 + $0x111] sm:$0xff]
        %v1114 = vld [vmem:[%s1025 + $0x121] sm:$0xff]
        %v1115 = vld [vmem:[%s1025 + $0x129] sm:$0xff]
        %v1116 = vld [vmem:[%s1025 + $0x139] sm:$0xff]
        %v1117 = vld [vmem:[%s1025 + $0x141] sm:$0xff]
        %v1118 = vld [vmem:[%s1025 + $0x151] sm:$0xff]
        %v1119 = vld [vmem:[%s1025 + $0x159] sm:$0xff]
        %v1120 = vld [vmem:[%s1025 + $0x169] sm:$0xff]
        %v1121 = vld [vmem:[%s1025 + $0x171] sm:$0xff]
        %1122 = vst [vmem:[#allocation3 + $0x38] sm:$0xff] %v1090
        %1123 = vst [vmem:[#allocation3 + $0x80] sm:$0xff] %v1091
        %1124 = vst [vmem:[#allocation3 + $0xc8] sm:$0xff] %v1092
        %1125 = vst [vmem:[#allocation3 + $0x110] sm:$0xff] %v1093
        %1126 = vst [vmem:[#allocation3 + $0x158] sm:$0xff] %v1094
        %1127 = vst [vmem:[#allocation3 + $0x1a0] sm:$0xff] %v1095
        %1128 = vst [vmem:[#allocation3 + $0x1e8] sm:$0xff] %v1096
        %1129 = vst [vmem:[#allocation3 + $0x230] sm:$0xff] %v1097
        %1130 = vst [vmem:[#allocation3 + $0x278] sm:$0xff] %v1098
        %1131 = vst [vmem:[#allocation3 + $0x2c0] sm:$0xff] %v1099
        %1132 = vst [vmem:[#allocation3 + $0x308] sm:$0xff] %v1100
        %1133 = vst [vmem:[#allocation3 + $0x350] sm:$0xff] %v1101
        %1134 = vst [vmem:[#allocation3 + $0x398] sm:$0xff] %v1102
        %1135 = vst [vmem:[#allocation3 + $0x3e0] sm:$0xff] %v1103
        %1136 = vst [vmem:[#allocation3 + $0x428] sm:$0xff] %v1104
        %1137 = vst [vmem:[#allocation3 + $0x470] sm:$0xff] %v1105
        %1138 = vst [vmem:[#allocation3 + $0x4b8] sm:$0xff] %v1106
        %1139 = vst [vmem:[#allocation3 + $0x500] sm:$0xff] %v1107
        %1140 = vst [vmem:[#allocation3 + $0x548] sm:$0xff] %v1108
        %1141 = vst [vmem:[#allocation3 + $0x590] sm:$0xff] %v1109
        %1142 = vst [vmem:[#allocation3 + $0x5d8] sm:$0xff] %v1110
        %1143 = vst [vmem:[#allocation3 + $0x620] sm:$0xff] %v1111
        %1144 = vst [vmem:[#allocation3 + $0x668] sm:$0xff] %v1112
        %1145 = vst [vmem:[#allocation3 + $0x6b0] sm:$0xff] %v1113
        %1146 = vst [vmem:[#allocation3 + $0x6f8] sm:$0xff] %v1114
        %1147 = vst [vmem:[#allocation3 + $0x740] sm:$0xff] %v1115
        %1148 = vst [vmem:[#allocation3 + $0x788] sm:$0xff] %v1116
        %1149 = vst [vmem:[#allocation3 + $0x7d0] sm:$0xff] %v1117
        %1150 = vst [vmem:[#allocation3 + $0x818] sm:$0xff] %v1118
        %1151 = vst [vmem:[#allocation3 + $0x860] sm:$0xff] %v1119
        %1152 = vst [vmem:[#allocation3 + $0x8a8] sm:$0xff] %v1120
        %1153 = vst [vmem:[#allocation3 + $0x8f0] sm:$0xff] %v1121
        %v1154 = vld [vmem:[%s1025 + $0x2] sm:$0xff]
        %v1155 = vld [vmem:[%s1025 + $0xa] sm:$0xff]
        %v1156 = vld [vmem:[%s1025 + $0x1a] sm:$0xff]
        %v1157 = vld [vmem:[%s1025 + $0x22] sm:$0xff]
        %v1158 = vld [vmem:[%s1025 + $0x32] sm:$0xff]
        %v1159 = vld [vmem:[%s1025 + $0x3a] sm:$0xff]
        %v1160 = vld [vmem:[%s1025 + $0x4a] sm:$0xff]
        %v1161 = vld [vmem:[%s1025 + $0x52] sm:$0xff]
        %v1162 = vld [vmem:[%s1025 + $0x62] sm:$0xff]
        %v1163 = vld [vmem:[%s1025 + $0x6a] sm:$0xff]
        %v1164 = vld [vmem:[%s1025 + $0x7a] sm:$0xff]
        %v1165 = vld [vmem:[%s1025 + $0x82] sm:$0xff]
        %v1166 = vld [vmem:[%s1025 + $0x92] sm:$0xff]
        %v1167 = vld [vmem:[%s1025 + $0x9a] sm:$0xff]
        %v1168 = vld [vmem:[%s1025 + $0xaa] sm:$0xff]
        %v1169 = vld [vmem:[%s1025 + $0xb2] sm:$0xff]
        %v1170 = vld [vmem:[%s1025 + $0xc2] sm:$0xff]
        %v1171 = vld [vmem:[%s1025 + $0xca] sm:$0xff]
        %v1172 = vld [vmem:[%s1025 + $0xda] sm:$0xff]
        %v1173 = vld [vmem:[%s1025 + $0xe2] sm:$0xff]
        %v1174 = vld [vmem:[%s1025 + $0xf2] sm:$0xff]
        %v1175 = vld [vmem:[%s1025 + $0xfa] sm:$0xff]
        %v1176 = vld [vmem:[%s1025 + $0x10a] sm:$0xff]
        %v1177 = vld [vmem:[%s1025 + $0x112] sm:$0xff]
        %v1178 = vld [vmem:[%s1025 + $0x122] sm:$0xff]
        %v1179 = vld [vmem:[%s1025 + $0x12a] sm:$0xff]
        %v1180 = vld [vmem:[%s1025 + $0x13a] sm:$0xff]
        %v1181 = vld [vmem:[%s1025 + $0x142] sm:$0xff]
        %v1182 = vld [vmem:[%s1025 + $0x152] sm:$0xff]
        %v1183 = vld [vmem:[%s1025 + $0x15a] sm:$0xff]
        %v1184 = vld [vmem:[%s1025 + $0x16a] sm:$0xff]
        %v1185 = vld [vmem:[%s1025 + $0x172] sm:$0xff]
        %1186 = vst [vmem:[#allocation3 + $0x40] sm:$0xff] %v1154
        %1187 = vst [vmem:[#allocation3 + $0x88] sm:$0xff] %v1155
        %1188 = vst [vmem:[#allocation3 + $0xd0] sm:$0xff] %v1156
        %1189 = vst [vmem:[#allocation3 + $0x118] sm:$0xff] %v1157
        %1190 = vst [vmem:[#allocation3 + $0x160] sm:$0xff] %v1158
        %1191 = vst [vmem:[#allocation3 + $0x1a8] sm:$0xff] %v1159
        %1192 = vst [vmem:[#allocation3 + $0x1f0] sm:$0xff] %v1160
        %1193 = vst [vmem:[#allocation3 + $0x238] sm:$0xff] %v1161
        %1194 = vst [vmem:[#allocation3 + $0x280] sm:$0xff] %v1162
        %1195 = vst [vmem:[#allocation3 + $0x2c8] sm:$0xff] %v1163
        %1196 = vst [vmem:[#allocation3 + $0x310] sm:$0xff] %v1164
        %1197 = vst [vmem:[#allocation3 + $0x358] sm:$0xff] %v1165
        %1198 = vst [vmem:[#allocation3 + $0x3a0] sm:$0xff] %v1166
        %1199 = vst [vmem:[#allocation3 + $0x3e8] sm:$0xff] %v1167
        %1200 = vst [vmem:[#allocation3 + $0x430] sm:$0xff] %v1168
        %1201 = vst [vmem:[#allocation3 + $0x478] sm:$0xff] %v1169
        %1202 = vst [vmem:[#allocation3 + $0x4c0] sm:$0xff] %v1170
        %1203 = vst [vmem:[#allocation3 + $0x508] sm:$0xff] %v1171
        %1204 = vst [vmem:[#allocation3 + $0x550] sm:$0xff] %v1172
        %1205 = vst [vmem:[#allocation3 + $0x598] sm:$0xff] %v1173
        %1206 = vst [vmem:[#allocation3 + $0x5e0] sm:$0xff] %v1174
        %1207 = vst [vmem:[#allocation3 + $0x628] sm:$0xff] %v1175
        %1208 = vst [vmem:[#allocation3 + $0x670] sm:$0xff] %v1176
        %1209 = vst [vmem:[#allocation3 + $0x6b8] sm:$0xff] %v1177
        %1210 = vst [vmem:[#allocation3 + $0x700] sm:$0xff] %v1178
        %1211 = vst [vmem:[#allocation3 + $0x748] sm:$0xff] %v1179
        %1212 = vst [vmem:[#allocation3 + $0x790] sm:$0xff] %v1180
        %1213 = vst [vmem:[#allocation3 + $0x7d8] sm:$0xff] %v1181
        %1214 = vst [vmem:[#allocation3 + $0x820] sm:$0xff] %v1182
        %1215 = vst [vmem:[#allocation3 + $0x868] sm:$0xff] %v1183
        %1216 = vst [vmem:[#allocation3 + $0x8b0] sm:$0xff] %v1184
        %1217 = vst [vmem:[#allocation3 + $0x8f8] sm:$0xff] %v1185
        %v1218 = vld [vmem:[#allocation3] sm:$0xff]
        %v1219 = vld [vmem:[#allocation3 + $0x8] sm:$0xff]
        %v1220 = vld [vmem:[#allocation3 + $0x10] sm:$0xff]
        %v1221 = vld [vmem:[#allocation3 + $0x18] sm:$0xff]
        %v1222 = vld [vmem:[#allocation3 + $0x20] sm:$0xff]
        %v1223 = vld [vmem:[#allocation3 + $0x28] sm:$0xff]
        %v1224 = vld [vmem:[#allocation3 + $0x30] sm:$0xff]
        %v1225 = vld [vmem:[#allocation3 + $0x38] sm:$0xff]
        %v1226 = vld [vmem:[#allocation3 + $0x40] sm:$0xff]
        %v1227 = vld [vmem:[#allocation3 + $0x48] sm:$0xff]
        %v1228 = vld [vmem:[#allocation3 + $0x50] sm:$0xff]
        %v1229 = vld [vmem:[#allocation3 + $0x58] sm:$0xff]
        %v1230 = vld [vmem:[#allocation3 + $0x60] sm:$0xff]
        %v1231 = vld [vmem:[#allocation3 + $0x68] sm:$0xff]
        %v1232 = vld [vmem:[#allocation3 + $0x70] sm:$0xff]
        %v1233 = vld [vmem:[#allocation3 + $0x78] sm:$0xff]
        %v1234 = vld [vmem:[#allocation3 + $0x80] sm:$0xff]
        %v1235 = vld [vmem:[#allocation3 + $0x88] sm:$0xff]
        %v1236 = vld [vmem:[#allocation3 + $0x90] sm:$0xff]
        %v1237 = vld [vmem:[#allocation3 + $0x98] sm:$0xff]
        %v1238 = vld [vmem:[#allocation3 + $0xa0] sm:$0xff]
        %v1239 = vld [vmem:[#allocation3 + $0xa8] sm:$0xff]
        %v1240 = vld [vmem:[#allocation3 + $0xb0] sm:$0xff]
        %v1241 = vld [vmem:[#allocation3 + $0xb8] sm:$0xff]
        %v1242 = vld [vmem:[#allocation3 + $0xc0] sm:$0xff]
        %v1243 = vld [vmem:[#allocation3 + $0xc8] sm:$0xff]
        %v1244 = vld [vmem:[#allocation3 + $0xd0] sm:$0xff]
        %v1245 = vld [vmem:[#allocation3 + $0xd8] sm:$0xff]
        %v1246 = vld [vmem:[#allocation3 + $0xe0] sm:$0xff]
        %v1247 = vld [vmem:[#allocation3 + $0xe8] sm:$0xff]
        %v1248 = vld [vmem:[#allocation3 + $0xf0] sm:$0xff]
        %v1249 = vld [vmem:[#allocation3 + $0xf8] sm:$0xff]
        %v1250 = vld [vmem:[#allocation3 + $0x100] sm:$0xff]
        %v1251 = vld [vmem:[#allocation3 + $0x108] sm:$0xff]
        %v1252 = vld [vmem:[#allocation3 + $0x110] sm:$0xff]
        %v1253 = vld [vmem:[#allocation3 + $0x118] sm:$0xff]
        %v1254 = vld [vmem:[#allocation3 + $0x120] sm:$0xff]
        %v1255 = vld [vmem:[#allocation3 + $0x128] sm:$0xff]
        %v1256 = vld [vmem:[#allocation3 + $0x130] sm:$0xff]
        %v1257 = vld [vmem:[#allocation3 + $0x138] sm:$0xff]
        %v1258 = vld [vmem:[#allocation3 + $0x140] sm:$0xff]
        %v1259 = vld [vmem:[#allocation3 + $0x148] sm:$0xff]
        %v1260 = vld [vmem:[#allocation3 + $0x150] sm:$0xff]
        %v1261 = vld [vmem:[#allocation3 + $0x158] sm:$0xff]
        %v1262 = vld [vmem:[#allocation3 + $0x160] sm:$0xff]
        %v1263 = vld [vmem:[#allocation3 + $0x168] sm:$0xff]
        %v1264 = vld [vmem:[#allocation3 + $0x170] sm:$0xff]
        %v1265 = vld [vmem:[#allocation3 + $0x178] sm:$0xff]
        %v1266 = vld [vmem:[#allocation3 + $0x180] sm:$0xff]
        %v1267 = vld [vmem:[#allocation3 + $0x188] sm:$0xff]
        %v1268 = vld [vmem:[#allocation3 + $0x190] sm:$0xff]
        %v1269 = vld [vmem:[#allocation3 + $0x198] sm:$0xff]
        %v1270 = vld [vmem:[#allocation3 + $0x1a0] sm:$0xff]
        %v1271 = vld [vmem:[#allocation3 + $0x1a8] sm:$0xff]
        %v1272 = vld [vmem:[#allocation3 + $0x1b0] sm:$0xff]
        %v1273 = vld [vmem:[#allocation3 + $0x1b8] sm:$0xff]
        %v1274 = vld [vmem:[#allocation3 + $0x1c0] sm:$0xff]
        %v1275 = vld [vmem:[#allocation3 + $0x1c8] sm:$0xff]
        %v1276 = vld [vmem:[#allocation3 + $0x1d0] sm:$0xff]
        %v1277 = vld [vmem:[#allocation3 + $0x1d8] sm:$0xff]
        %v1278 = vld [vmem:[#allocation3 + $0x1e0] sm:$0xff]
        %v1279 = vld [vmem:[#allocation3 + $0x1e8] sm:$0xff]
        %v1280 = vld [vmem:[#allocation3 + $0x1f0] sm:$0xff]
        %v1281 = vld [vmem:[#allocation3 + $0x1f8] sm:$0xff]
        %v1282 = vld [vmem:[#allocation3 + $0x200] sm:$0xff]
        %v1283 = vld [vmem:[#allocation3 + $0x208] sm:$0xff]
        %v1284 = vld [vmem:[#allocation3 + $0x210] sm:$0xff]
        %v1285 = vld [vmem:[#allocation3 + $0x218] sm:$0xff]
        %v1286 = vld [vmem:[#allocation3 + $0x220] sm:$0xff]
        %v1287 = vld [vmem:[#allocation3 + $0x228] sm:$0xff]
        %v1288 = vld [vmem:[#allocation3 + $0x230] sm:$0xff]
        %v1289 = vld [vmem:[#allocation3 + $0x238] sm:$0xff]
        %v1290 = vld [vmem:[#allocation3 + $0x240] sm:$0xff]
        %v1291 = vld [vmem:[#allocation3 + $0x248] sm:$0xff]
        %v1292 = vld [vmem:[#allocation3 + $0x250] sm:$0xff]
        %v1293 = vld [vmem:[#allocation3 + $0x258] sm:$0xff]
        %v1294 = vld [vmem:[#allocation3 + $0x260] sm:$0xff]
        %v1295 = vld [vmem:[#allocation3 + $0x268] sm:$0xff]
        %v1296 = vld [vmem:[#allocation3 + $0x270] sm:$0xff]
        %v1297 = vld [vmem:[#allocation3 + $0x278] sm:$0xff]
        %v1298 = vld [vmem:[#allocation3 + $0x280] sm:$0xff]
        %v1299 = vld [vmem:[#allocation3 + $0x288] sm:$0xff]
        %v1300 = vld [vmem:[#allocation3 + $0x290] sm:$0xff]
        %v1301 = vld [vmem:[#allocation3 + $0x298] sm:$0xff]
        %v1302 = vld [vmem:[#allocation3 + $0x2a0] sm:$0xff]
        %v1303 = vld [vmem:[#allocation3 + $0x2a8] sm:$0xff]
        %v1304 = vld [vmem:[#allocation3 + $0x2b0] sm:$0xff]
        %v1305 = vld [vmem:[#allocation3 + $0x2b8] sm:$0xff]
        %v1306 = vld [vmem:[#allocation3 + $0x2c0] sm:$0xff]
        %v1307 = vld [vmem:[#allocation3 + $0x2c8] sm:$0xff]
        %v1308 = vld [vmem:[#allocation3 + $0x2d0] sm:$0xff]
        %v1309 = vld [vmem:[#allocation3 + $0x2d8] sm:$0xff]
        %v1310 = vld [vmem:[#allocation3 + $0x2e0] sm:$0xff]
        %v1311 = vld [vmem:[#allocation3 + $0x2e8] sm:$0xff]
        %v1312 = vld [vmem:[#allocation3 + $0x2f0] sm:$0xff]
        %v1313 = vld [vmem:[#allocation3 + $0x2f8] sm:$0xff]
        %v1314 = vld [vmem:[#allocation3 + $0x300] sm:$0xff]
        %v1315 = vld [vmem:[#allocation3 + $0x308] sm:$0xff]
        %v1316 = vld [vmem:[#allocation3 + $0x310] sm:$0xff]
        %v1317 = vld [vmem:[#allocation3 + $0x318] sm:$0xff]
        %v1318 = vld [vmem:[#allocation3 + $0x320] sm:$0xff]
        %v1319 = vld [vmem:[#allocation3 + $0x328] sm:$0xff]
        %v1320 = vld [vmem:[#allocation3 + $0x330] sm:$0xff]
        %v1321 = vld [vmem:[#allocation3 + $0x338] sm:$0xff]
        %v1322 = vld [vmem:[#allocation3 + $0x340] sm:$0xff]
        %v1323 = vld [vmem:[#allocation3 + $0x348] sm:$0xff]
        %v1324 = vld [vmem:[#allocation3 + $0x350] sm:$0xff]
        %v1325 = vld [vmem:[#allocation3 + $0x358] sm:$0xff]
        %v1326 = vld [vmem:[#allocation3 + $0x360] sm:$0xff]
        %v1327 = vld [vmem:[#allocation3 + $0x368] sm:$0xff]
        %v1328 = vld [vmem:[#allocation3 + $0x370] sm:$0xff]
        %v1329 = vld [vmem:[#allocation3 + $0x378] sm:$0xff]
        %v1330 = vld [vmem:[#allocation3 + $0x380] sm:$0xff]
        %v1331 = vld [vmem:[#allocation3 + $0x388] sm:$0xff]
        %v1332 = vld [vmem:[#allocation3 + $0x390] sm:$0xff]
        %v1333 = vld [vmem:[#allocation3 + $0x398] sm:$0xff]
        %v1334 = vld [vmem:[#allocation3 + $0x3a0] sm:$0xff]
        %v1335 = vld [vmem:[#allocation3 + $0x3a8] sm:$0xff]
        %v1336 = vld [vmem:[#allocation3 + $0x3b0] sm:$0xff]
        %v1337 = vld [vmem:[#allocation3 + $0x3b8] sm:$0xff]
        %v1338 = vld [vmem:[#allocation3 + $0x3c0] sm:$0xff]
        %v1339 = vld [vmem:[#allocation3 + $0x3c8] sm:$0xff]
        %v1340 = vld [vmem:[#allocation3 + $0x3d0] sm:$0xff]
        %v1341 = vld [vmem:[#allocation3 + $0x3d8] sm:$0xff]
        %v1342 = vld [vmem:[#allocation3 + $0x3e0] sm:$0xff]
        %v1343 = vld [vmem:[#allocation3 + $0x3e8] sm:$0xff]
        %v1344 = vld [vmem:[#allocation3 + $0x3f0] sm:$0xff]
        %v1345 = vld [vmem:[#allocation3 + $0x3f8] sm:$0xff]
        %v1346 = vld [vmem:[#allocation3 + $0x400] sm:$0xff]
        %v1347 = vld [vmem:[#allocation3 + $0x408] sm:$0xff]
        %v1348 = vld [vmem:[#allocation3 + $0x410] sm:$0xff]
        %v1349 = vld [vmem:[#allocation3 + $0x418] sm:$0xff]
        %v1350 = vld [vmem:[#allocation3 + $0x420] sm:$0xff]
        %v1351 = vld [vmem:[#allocation3 + $0x428] sm:$0xff]
        %v1352 = vld [vmem:[#allocation3 + $0x430] sm:$0xff]
        %v1353 = vld [vmem:[#allocation3 + $0x438] sm:$0xff]
        %v1354 = vld [vmem:[#allocation3 + $0x440] sm:$0xff]
        %v1355 = vld [vmem:[#allocation3 + $0x448] sm:$0xff]
        %v1356 = vld [vmem:[#allocation3 + $0x450] sm:$0xff]
        %v1357 = vld [vmem:[#allocation3 + $0x458] sm:$0xff]
        %v1358 = vld [vmem:[#allocation3 + $0x460] sm:$0xff]
        %v1359 = vld [vmem:[#allocation3 + $0x468] sm:$0xff]
        %v1360 = vld [vmem:[#allocation3 + $0x470] sm:$0xff]
        %v1361 = vld [vmem:[#allocation3 + $0x478] sm:$0xff]
        %v1362 = vld [vmem:[#allocation3 + $0x480] sm:$0xff]
        %v1363 = vld [vmem:[#allocation3 + $0x488] sm:$0xff]
        %v1364 = vld [vmem:[#allocation3 + $0x490] sm:$0xff]
        %v1365 = vld [vmem:[#allocation3 + $0x498] sm:$0xff]
        %v1366 = vld [vmem:[#allocation3 + $0x4a0] sm:$0xff]
        %v1367 = vld [vmem:[#allocation3 + $0x4a8] sm:$0xff]
        %v1368 = vld [vmem:[#allocation3 + $0x4b0] sm:$0xff]
        %v1369 = vld [vmem:[#allocation3 + $0x4b8] sm:$0xff]
        %v1370 = vld [vmem:[#allocation3 + $0x4c0] sm:$0xff]
        %v1371 = vld [vmem:[#allocation3 + $0x4c8] sm:$0xff]
        %v1372 = vld [vmem:[#allocation3 + $0x4d0] sm:$0xff]
        %v1373 = vld [vmem:[#allocation3 + $0x4d8] sm:$0xff]
        %v1374 = vld [vmem:[#allocation3 + $0x4e0] sm:$0xff]
        %v1375 = vld [vmem:[#allocation3 + $0x4e8] sm:$0xff]
        %v1376 = vld [vmem:[#allocation3 + $0x4f0] sm:$0xff]
        %v1377 = vld [vmem:[#allocation3 + $0x4f8] sm:$0xff]
        %v1378 = vld [vmem:[#allocation3 + $0x500] sm:$0xff]
        %v1379 = vld [vmem:[#allocation3 + $0x508] sm:$0xff]
        %v1380 = vld [vmem:[#allocation3 + $0x510] sm:$0xff]
        %v1381 = vld [vmem:[#allocation3 + $0x518] sm:$0xff]
        %v1382 = vld [vmem:[#allocation3 + $0x520] sm:$0xff]
        %v1383 = vld [vmem:[#allocation3 + $0x528] sm:$0xff]
        %v1384 = vld [vmem:[#allocation3 + $0x530] sm:$0xff]
        %v1385 = vld [vmem:[#allocation3 + $0x538] sm:$0xff]
        %v1386 = vld [vmem:[#allocation3 + $0x540] sm:$0xff]
        %v1387 = vld [vmem:[#allocation3 + $0x548] sm:$0xff]
        %v1388 = vld [vmem:[#allocation3 + $0x550] sm:$0xff]
        %v1389 = vld [vmem:[#allocation3 + $0x558] sm:$0xff]
        %v1390 = vld [vmem:[#allocation3 + $0x560] sm:$0xff]
        %v1391 = vld [vmem:[#allocation3 + $0x568] sm:$0xff]
        %v1392 = vld [vmem:[#allocation3 + $0x570] sm:$0xff]
        %v1393 = vld [vmem:[#allocation3 + $0x578] sm:$0xff]
        %v1394 = vld [vmem:[#allocation3 + $0x580] sm:$0xff]
        %v1395 = vld [vmem:[#allocation3 + $0x588] sm:$0xff]
        %v1396 = vld [vmem:[#allocation3 + $0x590] sm:$0xff]
        %v1397 = vld [vmem:[#allocation3 + $0x598] sm:$0xff]
        %v1398 = vld [vmem:[#allocation3 + $0x5a0] sm:$0xff]
        %v1399 = vld [vmem:[#allocation3 + $0x5a8] sm:$0xff]
        %v1400 = vld [vmem:[#allocation3 + $0x5b0] sm:$0xff]
        %v1401 = vld [vmem:[#allocation3 + $0x5b8] sm:$0xff]
        %v1402 = vld [vmem:[#allocation3 + $0x5c0] sm:$0xff]
        %v1403 = vld [vmem:[#allocation3 + $0x5c8] sm:$0xff]
        %v1404 = vld [vmem:[#allocation3 + $0x5d0] sm:$0xff]
        %v1405 = vld [vmem:[#allocation3 + $0x5d8] sm:$0xff]
        %v1406 = vld [vmem:[#allocation3 + $0x5e0] sm:$0xff]
        %v1407 = vld [vmem:[#allocation3 + $0x5e8] sm:$0xff]
        %v1408 = vld [vmem:[#allocation3 + $0x5f0] sm:$0xff]
        %v1409 = vld [vmem:[#allocation3 + $0x5f8] sm:$0xff]
        %v1410 = vld [vmem:[#allocation3 + $0x600] sm:$0xff]
        %v1411 = vld [vmem:[#allocation3 + $0x608] sm:$0xff]
        %v1412 = vld [vmem:[#allocation3 + $0x610] sm:$0xff]
        %v1413 = vld [vmem:[#allocation3 + $0x618] sm:$0xff]
        %v1414 = vld [vmem:[#allocation3 + $0x620] sm:$0xff]
        %v1415 = vld [vmem:[#allocation3 + $0x628] sm:$0xff]
        %v1416 = vld [vmem:[#allocation3 + $0x630] sm:$0xff]
        %v1417 = vld [vmem:[#allocation3 + $0x638] sm:$0xff]
        %v1418 = vld [vmem:[#allocation3 + $0x640] sm:$0xff]
        %v1419 = vld [vmem:[#allocation3 + $0x648] sm:$0xff]
        %v1420 = vld [vmem:[#allocation3 + $0x650] sm:$0xff]
        %v1421 = vld [vmem:[#allocation3 + $0x658] sm:$0xff]
        %v1422 = vld [vmem:[#allocation3 + $0x660] sm:$0xff]
        %v1423 = vld [vmem:[#allocation3 + $0x668] sm:$0xff]
        %v1424 = vld [vmem:[#allocation3 + $0x670] sm:$0xff]
        %v1425 = vld [vmem:[#allocation3 + $0x678] sm:$0xff]
        %v1426 = vld [vmem:[#allocation3 + $0x680] sm:$0xff]
        %v1427 = vld [vmem:[#allocation3 + $0x688] sm:$0xff]
        %v1428 = vld [vmem:[#allocation3 + $0x690] sm:$0xff]
        %v1429 = vld [vmem:[#allocation3 + $0x698] sm:$0xff]
        %v1430 = vld [vmem:[#allocation3 + $0x6a0] sm:$0xff]
        %v1431 = vld [vmem:[#allocation3 + $0x6a8] sm:$0xff]
        %v1432 = vld [vmem:[#allocation3 + $0x6b0] sm:$0xff]
        %v1433 = vld [vmem:[#allocation3 + $0x6b8] sm:$0xff]
        %v1434 = vld [vmem:[#allocation3 + $0x6c0] sm:$0xff]
        %v1435 = vld [vmem:[#allocation3 + $0x6c8] sm:$0xff]
        %v1436 = vld [vmem:[#allocation3 + $0x6d0] sm:$0xff]
        %v1437 = vld [vmem:[#allocation3 + $0x6d8] sm:$0xff]
        %v1438 = vld [vmem:[#allocation3 + $0x6e0] sm:$0xff]
        %v1439 = vld [vmem:[#allocation3 + $0x6e8] sm:$0xff]
        %v1440 = vld [vmem:[#allocation3 + $0x6f0] sm:$0xff]
        %v1441 = vld [vmem:[#allocation3 + $0x6f8] sm:$0xff]
        %v1442 = vld [vmem:[#allocation3 + $0x700] sm:$0xff]
        %v1443 = vld [vmem:[#allocation3 + $0x708] sm:$0xff]
        %v1444 = vld [vmem:[#allocation3 + $0x710] sm:$0xff]
        %v1445 = vld [vmem:[#allocation3 + $0x718] sm:$0xff]
        %v1446 = vld [vmem:[#allocation3 + $0x720] sm:$0xff]
        %v1447 = vld [vmem:[#allocation3 + $0x728] sm:$0xff]
        %v1448 = vld [vmem:[#allocation3 + $0x730] sm:$0xff]
        %v1449 = vld [vmem:[#allocation3 + $0x738] sm:$0xff]
        %v1450 = vld [vmem:[#allocation3 + $0x740] sm:$0xff]
        %v1451 = vld [vmem:[#allocation3 + $0x748] sm:$0xff]
        %v1452 = vld [vmem:[#allocation3 + $0x750] sm:$0xff]
        %v1453 = vld [vmem:[#allocation3 + $0x758] sm:$0xff]
        %v1454 = vld [vmem:[#allocation3 + $0x760] sm:$0xff]
        %v1455 = vld [vmem:[#allocation3 + $0x768] sm:$0xff]
        %v1456 = vld [vmem:[#allocation3 + $0x770] sm:$0xff]
        %v1457 = vld [vmem:[#allocation3 + $0x778] sm:$0xff]
        %v1458 = vld [vmem:[#allocation3 + $0x780] sm:$0xff]
        %v1459 = vld [vmem:[#allocation3 + $0x788] sm:$0xff]
        %v1460 = vld [vmem:[#allocation3 + $0x790] sm:$0xff]
        %v1461 = vld [vmem:[#allocation3 + $0x798] sm:$0xff]
        %v1462 = vld [vmem:[#allocation3 + $0x7a0] sm:$0xff]
        %v1463 = vld [vmem:[#allocation3 + $0x7a8] sm:$0xff]
        %v1464 = vld [vmem:[#allocation3 + $0x7b0] sm:$0xff]
        %v1465 = vld [vmem:[#allocation3 + $0x7b8] sm:$0xff]
        %v1466 = vld [vmem:[#allocation3 + $0x7c0] sm:$0xff]
        %v1467 = vld [vmem:[#allocation3 + $0x7c8] sm:$0xff]
        %v1468 = vld [vmem:[#allocation3 + $0x7d0] sm:$0xff]
        %v1469 = vld [vmem:[#allocation3 + $0x7d8] sm:$0xff]
        %v1470 = vld [vmem:[#allocation3 + $0x7e0] sm:$0xff]
        %v1471 = vld [vmem:[#allocation3 + $0x7e8] sm:$0xff]
        %v1472 = vld [vmem:[#allocation3 + $0x7f0] sm:$0xff]
        %v1473 = vld [vmem:[#allocation3 + $0x7f8] sm:$0xff]
        %v1474 = vld [vmem:[#allocation3 + $0x800] sm:$0xff]
        %v1475 = vld [vmem:[#allocation3 + $0x808] sm:$0xff]
        %v1476 = vld [vmem:[#allocation3 + $0x810] sm:$0xff]
        %v1477 = vld [vmem:[#allocation3 + $0x818] sm:$0xff]
        %v1478 = vld [vmem:[#allocation3 + $0x820] sm:$0xff]
        %v1479 = vld [vmem:[#allocation3 + $0x828] sm:$0xff]
        %v1480 = vld [vmem:[#allocation3 + $0x830] sm:$0xff]
        %v1481 = vld [vmem:[#allocation3 + $0x838] sm:$0xff]
        %v1482 = vld [vmem:[#allocation3 + $0x840] sm:$0xff]
        %v1483 = vld [vmem:[#allocation3 + $0x848] sm:$0xff]
        %v1484 = vld [vmem:[#allocation3 + $0x850] sm:$0xff]
        %v1485 = vld [vmem:[#allocation3 + $0x858] sm:$0xff]
        %v1486 = vld [vmem:[#allocation3 + $0x860] sm:$0xff]
        %v1487 = vld [vmem:[#allocation3 + $0x868] sm:$0xff]
        %v1488 = vld [vmem:[#allocation3 + $0x870] sm:$0xff]
        %v1489 = vld [vmem:[#allocation3 + $0x878] sm:$0xff]
        %v1490 = vld [vmem:[#allocation3 + $0x880] sm:$0xff]
        %v1491 = vld [vmem:[#allocation3 + $0x888] sm:$0xff]
        %v1492 = vld [vmem:[#allocation3 + $0x890] sm:$0xff]
        %v1493 = vld [vmem:[#allocation3 + $0x898] sm:$0xff]
        %v1494 = vld [vmem:[#allocation3 + $0x8a0] sm:$0xff]
        %v1495 = vld [vmem:[#allocation3 + $0x8a8] sm:$0xff]
        %v1496 = vld [vmem:[#allocation3 + $0x8b0] sm:$0xff]
        %v1497 = vld [vmem:[#allocation3 + $0x8b8] sm:$0xff]
        %v1498 = vld [vmem:[#allocation3 + $0x8c0] sm:$0xff]
        %v1499 = vld [vmem:[#allocation3 + $0x8c8] sm:$0xff]
        %v1500 = vld [vmem:[#allocation3 + $0x8d0] sm:$0xff]
        %v1501 = vld [vmem:[#allocation3 + $0x8d8] sm:$0xff]
        %v1502 = vld [vmem:[#allocation3 + $0x8e0] sm:$0xff]
        %v1503 = vld [vmem:[#allocation3 + $0x8e8] sm:$0xff]
        %v1504 = vld [vmem:[#allocation3 + $0x8f0] sm:$0xff]
        %v1505 = vld [vmem:[#allocation3 + $0x8f8] sm:$0xff]
        %v1506 = vld [vmem:[%s2] sm:$0xff]
        %v1507 = vld [vmem:[%s2 + $0x8] sm:$0xff]
        %v1508 = vld [vmem:[%s2 + $0x10] sm:$0xff]
        %v1509 = vld [vmem:[%s2 + $0x18] sm:$0xff]
        %v1510 = vld [vmem:[%s2 + $0x20] sm:$0xff]
        %v1511 = vld [vmem:[%s2 + $0x28] sm:$0xff]
        %v1512 = vld [vmem:[%s2 + $0x30] sm:$0xff]
        %v1513 = vld [vmem:[%s2 + $0x38] sm:$0xff]
        %v1514 = vld [vmem:[%s2 + $0x40] sm:$0xff]
        %v1515 = vld [vmem:[%s2 + $0x48] sm:$0xff]
        %v1516 = vld [vmem:[%s2 + $0x50] sm:$0xff]
        %v1517 = vld [vmem:[%s2 + $0x58] sm:$0xff]
        %v1518 = vld [vmem:[%s2 + $0x60] sm:$0xff]
        %v1519 = vld [vmem:[%s2 + $0x68] sm:$0xff]
        %v1520 = vld [vmem:[%s2 + $0x70] sm:$0xff]
        %v1521 = vld [vmem:[%s2 + $0x78] sm:$0xff]
        %v1522 = vld [vmem:[%s2 + $0x80] sm:$0xff]
        %v1523 = vld [vmem:[%s2 + $0x88] sm:$0xff]
        %v1524 = vld [vmem:[%s2 + $0x90] sm:$0xff]
        %v1525 = vld [vmem:[%s2 + $0x98] sm:$0xff]
        %v1526 = vld [vmem:[%s2 + $0xa0] sm:$0xff]
        %v1527 = vld [vmem:[%s2 + $0xa8] sm:$0xff]
        %v1528 = vld [vmem:[%s2 + $0xb0] sm:$0xff]
        %v1529 = vld [vmem:[%s2 + $0xb8] sm:$0xff]
        %v1530 = vld [vmem:[%s2 + $0xc0] sm:$0xff]
        %v1531 = vld [vmem:[%s2 + $0xc8] sm:$0xff]
        %v1532 = vld [vmem:[%s2 + $0xd0] sm:$0xff]
        %v1533 = vld [vmem:[%s2 + $0xd8] sm:$0xff]
        %v1534 = vld [vmem:[%s2 + $0xe0] sm:$0xff]
        %v1535 = vld [vmem:[%s2 + $0xe8] sm:$0xff]
        %v1536 = vld [vmem:[%s2 + $0xf0] sm:$0xff]
        %v1537 = vld [vmem:[%s2 + $0xf8] sm:$0xff]
        %v1538 = vld [vmem:[%s2 + $0x100] sm:$0xff]
        %v1539 = vld [vmem:[%s2 + $0x108] sm:$0xff]
        %v1540 = vld [vmem:[%s2 + $0x110] sm:$0xff]
        %v1541 = vld [vmem:[%s2 + $0x118] sm:$0xff]
        %v1542 = vld [vmem:[%s2 + $0x120] sm:$0xff]
        %v1543 = vld [vmem:[%s2 + $0x128] sm:$0xff]
        %v1544 = vld [vmem:[%s2 + $0x130] sm:$0xff]
        %v1545 = vld [vmem:[%s2 + $0x138] sm:$0xff]
        %v1546 = vld [vmem:[%s2 + $0x140] sm:$0xff]
        %v1547 = vld [vmem:[%s2 + $0x148] sm:$0xff]
        %v1548 = vld [vmem:[%s2 + $0x150] sm:$0xff]
        %v1549 = vld [vmem:[%s2 + $0x158] sm:$0xff]
        %v1550 = vld [vmem:[%s2 + $0x160] sm:$0xff]
        %v1551 = vld [vmem:[%s2 + $0x168] sm:$0xff]
        %v1552 = vld [vmem:[%s2 + $0x170] sm:$0xff]
        %v1553 = vld [vmem:[%s2 + $0x178] sm:$0xff]
        %v1554 = vld [vmem:[%s2 + $0x180] sm:$0xff]
        %v1555 = vld [vmem:[%s2 + $0x188] sm:$0xff]
        %v1556 = vld [vmem:[%s2 + $0x190] sm:$0xff]
        %v1557 = vld [vmem:[%s2 + $0x198] sm:$0xff]
        %v1558 = vld [vmem:[%s2 + $0x1a0] sm:$0xff]
        %v1559 = vld [vmem:[%s2 + $0x1a8] sm:$0xff]
        %v1560 = vld [vmem:[%s2 + $0x1b0] sm:$0xff]
        %v1561 = vld [vmem:[%s2 + $0x1b8] sm:$0xff]
        %v1562 = vld [vmem:[%s2 + $0x1c0] sm:$0xff]
        %v1563 = vld [vmem:[%s2 + $0x1c8] sm:$0xff]
        %v1564 = vld [vmem:[%s2 + $0x1d0] sm:$0xff]
        %v1565 = vld [vmem:[%s2 + $0x1d8] sm:$0xff]
        %v1566 = vld [vmem:[%s2 + $0x1e0] sm:$0xff]
        %v1567 = vld [vmem:[%s2 + $0x1e8] sm:$0xff]
        %v1568 = vld [vmem:[%s2 + $0x1f0] sm:$0xff]
        %v1569 = vld [vmem:[%s2 + $0x1f8] sm:$0xff]
        %v1570 = vld [vmem:[%s2 + $0x200] sm:$0xff]
        %v1571 = vld [vmem:[%s2 + $0x208] sm:$0xff]
        %v1572 = vld [vmem:[%s2 + $0x210] sm:$0xff]
        %v1573 = vld [vmem:[%s2 + $0x218] sm:$0xff]
        %v1574 = vld [vmem:[%s2 + $0x220] sm:$0xff]
        %v1575 = vld [vmem:[%s2 + $0x228] sm:$0xff]
        %v1576 = vld [vmem:[%s2 + $0x230] sm:$0xff]
        %v1577 = vld [vmem:[%s2 + $0x238] sm:$0xff]
        %v1578 = vld [vmem:[%s2 + $0x240] sm:$0xff]
        %v1579 = vld [vmem:[%s2 + $0x248] sm:$0xff]
        %v1580 = vld [vmem:[%s2 + $0x250] sm:$0xff]
        %v1581 = vld [vmem:[%s2 + $0x258] sm:$0xff]
        %v1582 = vld [vmem:[%s2 + $0x260] sm:$0xff]
        %v1583 = vld [vmem:[%s2 + $0x268] sm:$0xff]
        %v1584 = vld [vmem:[%s2 + $0x270] sm:$0xff]
        %v1585 = vld [vmem:[%s2 + $0x278] sm:$0xff]
        %v1586 = vld [vmem:[%s2 + $0x280] sm:$0xff]
        %v1587 = vld [vmem:[%s2 + $0x288] sm:$0xff]
        %v1588 = vld [vmem:[%s2 + $0x290] sm:$0xff]
        %v1589 = vld [vmem:[%s2 + $0x298] sm:$0xff]
        %v1590 = vld [vmem:[%s2 + $0x2a0] sm:$0xff]
        %v1591 = vld [vmem:[%s2 + $0x2a8] sm:$0xff]
        %v1592 = vld [vmem:[%s2 + $0x2b0] sm:$0xff]
        %v1593 = vld [vmem:[%s2 + $0x2b8] sm:$0xff]
        %v1594 = vld [vmem:[%s2 + $0x2c0] sm:$0xff]
        %v1595 = vld [vmem:[%s2 + $0x2c8] sm:$0xff]
        %v1596 = vld [vmem:[%s2 + $0x2d0] sm:$0xff]
        %v1597 = vld [vmem:[%s2 + $0x2d8] sm:$0xff]
        %v1598 = vld [vmem:[%s2 + $0x2e0] sm:$0xff]
        %v1599 = vld [vmem:[%s2 + $0x2e8] sm:$0xff]
        %v1600 = vld [vmem:[%s2 + $0x2f0] sm:$0xff]
        %v1601 = vld [vmem:[%s2 + $0x2f8] sm:$0xff]
        %v1602 = vld [vmem:[%s2 + $0x300] sm:$0xff]
        %v1603 = vld [vmem:[%s2 + $0x308] sm:$0xff]
        %v1604 = vld [vmem:[%s2 + $0x310] sm:$0xff]
        %v1605 = vld [vmem:[%s2 + $0x318] sm:$0xff]
        %v1606 = vld [vmem:[%s2 + $0x320] sm:$0xff]
        %v1607 = vld [vmem:[%s2 + $0x328] sm:$0xff]
        %v1608 = vld [vmem:[%s2 + $0x330] sm:$0xff]
        %v1609 = vld [vmem:[%s2 + $0x338] sm:$0xff]
        %v1610 = vld [vmem:[%s2 + $0x340] sm:$0xff]
        %v1611 = vld [vmem:[%s2 + $0x348] sm:$0xff]
        %v1612 = vld [vmem:[%s2 + $0x350] sm:$0xff]
        %v1613 = vld [vmem:[%s2 + $0x358] sm:$0xff]
        %v1614 = vld [vmem:[%s2 + $0x360] sm:$0xff]
        %v1615 = vld [vmem:[%s2 + $0x368] sm:$0xff]
        %v1616 = vld [vmem:[%s2 + $0x370] sm:$0xff]
        %v1617 = vld [vmem:[%s2 + $0x378] sm:$0xff]
        %v1618 = vld [vmem:[%s2 + $0x380] sm:$0xff]
        %v1619 = vld [vmem:[%s2 + $0x388] sm:$0xff]
        %v1620 = vld [vmem:[%s2 + $0x390] sm:$0xff]
        %v1621 = vld [vmem:[%s2 + $0x398] sm:$0xff]
        %v1622 = vld [vmem:[%s2 + $0x3a0] sm:$0xff]
        %v1623 = vld [vmem:[%s2 + $0x3a8] sm:$0xff]
        %v1624 = vld [vmem:[%s2 + $0x3b0] sm:$0xff]
        %v1625 = vld [vmem:[%s2 + $0x3b8] sm:$0xff]
        %v1626 = vld [vmem:[%s2 + $0x3c0] sm:$0xff]
        %v1627 = vld [vmem:[%s2 + $0x3c8] sm:$0xff]
        %v1628 = vld [vmem:[%s2 + $0x3d0] sm:$0xff]
        %v1629 = vld [vmem:[%s2 + $0x3d8] sm:$0xff]
        %v1630 = vld [vmem:[%s2 + $0x3e0] sm:$0xff]
        %v1631 = vld [vmem:[%s2 + $0x3e8] sm:$0xff]
        %v1632 = vld [vmem:[%s2 + $0x3f0] sm:$0xff]
        %v1633 = vld [vmem:[%s2 + $0x3f8] sm:$0xff]
        %v1634 = vld [vmem:[%s2 + $0x400] sm:$0xff]
        %v1635 = vld [vmem:[%s2 + $0x408] sm:$0xff]
        %v1636 = vld [vmem:[%s2 + $0x410] sm:$0xff]
        %v1637 = vld [vmem:[%s2 + $0x418] sm:$0xff]
        %v1638 = vld [vmem:[%s2 + $0x420] sm:$0xff]
        %v1639 = vld [vmem:[%s2 + $0x428] sm:$0xff]
        %v1640 = vld [vmem:[%s2 + $0x430] sm:$0xff]
        %v1641 = vld [vmem:[%s2 + $0x438] sm:$0xff]
        %v1642 = vld [vmem:[%s2 + $0x440] sm:$0xff]
        %v1643 = vld [vmem:[%s2 + $0x448] sm:$0xff]
        %v1644 = vld [vmem:[%s2 + $0x450] sm:$0xff]
        %v1645 = vld [vmem:[%s2 + $0x458] sm:$0xff]
        %v1646 = vld [vmem:[%s2 + $0x460] sm:$0xff]
        %v1647 = vld [vmem:[%s2 + $0x468] sm:$0xff]
        %v1648 = vld [vmem:[%s2 + $0x470] sm:$0xff]
        %v1649 = vld [vmem:[%s2 + $0x478] sm:$0xff]
        %1650 = vmatpush.msra.mxu0 %v1521
        %1651 = vmatpush.msra.mxu0 %v1520
        %1652 = vmatpush.msra.mxu0 %v1519
        %1653 = vmatpush.msra.mxu0 %v1518
        %1654 = vmatpush.msra.mxu0 %v1517
        %1655 = vmatpush.msra.mxu0 %v1516
        %1656 = vmatpush.msra.mxu0 %v1515
        %1657 = vmatpush.msra.mxu0 %v1514
        %1658 = vmatpush.msra.mxu0 %v1513
        %1659 = vmatpush.msra.mxu0 %v1512
        %1660 = vmatpush.msra.mxu0 %v1511
        %1661 = vmatpush.msra.mxu0 %v1510
        %1662 = vmatpush.msra.mxu0 %v1509
        %1663 = vmatpush.msra.mxu0 %v1508
        %1664 = vmatpush.msra.mxu0 %v1507
        %1665 = vmatpush.msra.mxu0 %v1506
        %1666 = vmatmul.f32.gmra.mxu0 %v1218
        %v1667 = vpop.f32.mrf.mxu0
        %v1668 = vadd.f32 0.0, %v1667
        %1669 = vmatmul.f32.gmra.mxu0 %v1227
        %v1670 = vpop.f32.mrf.mxu0
        %v1671 = vadd.f32 0.0, %v1670
        %1672 = vmatmul.f32.gmra.mxu0 %v1236
        %v1673 = vpop.f32.mrf.mxu0
        %v1674 = vadd.f32 0.0, %v1673
        %1675 = vmatmul.f32.gmra.mxu0 %v1245
        %v1676 = vpop.f32.mrf.mxu0
        %v1677 = vadd.f32 0.0, %v1676
        %1678 = vmatmul.f32.gmra.mxu0 %v1254
        %v1679 = vpop.f32.mrf.mxu0
        %v1680 = vadd.f32 0.0, %v1679
        %1681 = vmatmul.f32.gmra.mxu0 %v1263
        %v1682 = vpop.f32.mrf.mxu0
        %v1683 = vadd.f32 0.0, %v1682
        %1684 = vmatmul.f32.gmra.mxu0 %v1272
        %v1685 = vpop.f32.mrf.mxu0
        %v1686 = vadd.f32 0.0, %v1685
        %1687 = vmatmul.f32.gmra.mxu0 %v1281
        %v1688 = vpop.f32.mrf.mxu0
        %v1689 = vadd.f32 0.0, %v1688
        %1690 = vmatmul.f32.gmra.mxu0 %v1290
        %v1691 = vpop.f32.mrf.mxu0
        %v1692 = vadd.f32 0.0, %v1691
        %1693 = vmatmul.f32.gmra.mxu0 %v1299
        %v1694 = vpop.f32.mrf.mxu0
        %v1695 = vadd.f32 0.0, %v1694
        %1696 = vmatmul.f32.gmra.mxu0 %v1308
        %v1697 = vpop.f32.mrf.mxu0
        %v1698 = vadd.f32 0.0, %v1697
        %1699 = vmatmul.f32.gmra.mxu0 %v1317
        %v1700 = vpop.f32.mrf.mxu0
        %v1701 = vadd.f32 0.0, %v1700
        %1702 = vmatmul.f32.gmra.mxu0 %v1326
        %v1703 = vpop.f32.mrf.mxu0
        %v1704 = vadd.f32 0.0, %v1703
        %1705 = vmatmul.f32.gmra.mxu0 %v1335
        %v1706 = vpop.f32.mrf.mxu0
        %v1707 = vadd.f32 0.0, %v1706
        %1708 = vmatmul.f32.gmra.mxu0 %v1344
        %v1709 = vpop.f32.mrf.mxu0
        %v1710 = vadd.f32 0.0, %v1709
        %1711 = vmatmul.f32.gmra.mxu0 %v1353
        %v1712 = vpop.f32.mrf.mxu0
        %v1713 = vadd.f32 0.0, %v1712
        %1714 = vmatmul.f32.gmra.mxu0 %v1362
        %v1715 = vpop.f32.mrf.mxu0
        %v1716 = vadd.f32 0.0, %v1715
        %1717 = vmatmul.f32.gmra.mxu0 %v1371
        %v1718 = vpop.f32.mrf.mxu0
        %v1719 = vadd.f32 0.0, %v1718
        %1720 = vmatmul.f32.gmra.mxu0 %v1380
        %v1721 = vpop.f32.mrf.mxu0
        %v1722 = vadd.f32 0.0, %v1721
        %1723 = vmatmul.f32.gmra.mxu0 %v1389
        %v1724 = vpop.f32.mrf.mxu0
        %v1725 = vadd.f32 0.0, %v1724
        %1726 = vmatmul.f32.gmra.mxu0 %v1398
        %v1727 = vpop.f32.mrf.mxu0
        %v1728 = vadd.f32 0.0, %v1727
        %1729 = vmatmul.f32.gmra.mxu0 %v1407
        %v1730 = vpop.f32.mrf.mxu0
        %v1731 = vadd.f32 0.0, %v1730
        %1732 = vmatmul.f32.gmra.mxu0 %v1416
        %v1733 = vpop.f32.mrf.mxu0
        %v1734 = vadd.f32 0.0, %v1733
        %1735 = vmatmul.f32.gmra.mxu0 %v1425
        %v1736 = vpop.f32.mrf.mxu0
        %v1737 = vadd.f32 0.0, %v1736
        %1738 = vmatmul.f32.gmra.mxu0 %v1434
        %v1739 = vpop.f32.mrf.mxu0
        %v1740 = vadd.f32 0.0, %v1739
        %1741 = vmatmul.f32.gmra.mxu0 %v1443
        %v1742 = vpop.f32.mrf.mxu0
        %v1743 = vadd.f32 0.0, %v1742
        %1744 = vmatmul.f32.gmra.mxu0 %v1452
        %v1745 = vpop.f32.mrf.mxu0
        %v1746 = vadd.f32 0.0, %v1745
        %1747 = vmatmul.f32.gmra.mxu0 %v1461
        %v1748 = vpop.f32.mrf.mxu0
        %v1749 = vadd.f32 0.0, %v1748
        %1750 = vmatmul.f32.gmra.mxu0 %v1470
        %v1751 = vpop.f32.mrf.mxu0
        %v1752 = vadd.f32 0.0, %v1751
        %1753 = vmatmul.f32.gmra.mxu0 %v1479
        %v1754 = vpop.f32.mrf.mxu0
        %v1755 = vadd.f32 0.0, %v1754
        %1756 = vmatmul.f32.gmra.mxu0 %v1488
        %v1757 = vpop.f32.mrf.mxu0
        %v1758 = vadd.f32 0.0, %v1757
        %1759 = vmatmul.f32.gmra.mxu0 %v1497
        %v1760 = vpop.f32.mrf.mxu0
        %v1761 = vadd.f32 0.0, %v1760
        %1762 = vdwg.mxu0
        %1763 = vmatpush.msra.mxu0 %v1537
        %1764 = vmatpush.msra.mxu0 %v1536
        %1765 = vmatpush.msra.mxu0 %v1535
        %1766 = vmatpush.msra.mxu0 %v1534
        %1767 = vmatpush.msra.mxu0 %v1533
        %1768 = vmatpush.msra.mxu0 %v1532
        %1769 = vmatpush.msra.mxu0 %v1531
        %1770 = vmatpush.msra.mxu0 %v1530
        %1771 = vmatpush.msra.mxu0 %v1529
        %1772 = vmatpush.msra.mxu0 %v1528
        %1773 = vmatpush.msra.mxu0 %v1527
        %1774 = vmatpush.msra.mxu0 %v1526
        %1775 = vmatpush.msra.mxu0 %v1525
        %1776 = vmatpush.msra.mxu0 %v1524
        %1777 = vmatpush.msra.mxu0 %v1523
        %1778 = vmatpush.msra.mxu0 %v1522
        %1779 = vmatmul.f32.gmra.mxu0 %v1219
        %v1780 = vpop.f32.mrf.mxu0
        %v1781 = vadd.f32 %v1668, %v1780
        %1782 = vmatmul.f32.gmra.mxu0 %v1228
        %v1783 = vpop.f32.mrf.mxu0
        %v1784 = vadd.f32 %v1671, %v1783
        %1785 = vmatmul.f32.gmra.mxu0 %v1237
        %v1786 = vpop.f32.mrf.mxu0
        %v1787 = vadd.f32 %v1674, %v1786
        %1788 = vmatmul.f32.gmra.mxu0 %v1246
        %v1789 = vpop.f32.mrf.mxu0
        %v1790 = vadd.f32 %v1677, %v1789
        %1791 = vmatmul.f32.gmra.mxu0 %v1255
        %v1792 = vpop.f32.mrf.mxu0
        %v1793 = vadd.f32 %v1680, %v1792
        %1794 = vmatmul.f32.gmra.mxu0 %v1264
        %v1795 = vpop.f32.mrf.mxu0
        %v1796 = vadd.f32 %v1683, %v1795
        %1797 = vmatmul.f32.gmra.mxu0 %v1273
        %v1798 = vpop.f32.mrf.mxu0
        %v1799 = vadd.f32 %v1686, %v1798
        %1800 = vmatmul.f32.gmra.mxu0 %v1282
        %v1801 = vpop.f32.mrf.mxu0
        %v1802 = vadd.f32 %v1689, %v1801
        %1803 = vmatmul.f32.gmra.mxu0 %v1291
        %v1804 = vpop.f32.mrf.mxu0
        %v1805 = vadd.f32 %v1692, %v1804
        %1806 = vmatmul.f32.gmra.mxu0 %v1300
        %v1807 = vpop.f32.mrf.mxu0
        %v1808 = vadd.f32 %v1695, %v1807
        %1809 = vmatmul.f32.gmra.mxu0 %v1309
        %v1810 = vpop.f32.mrf.mxu0
        %v1811 = vadd.f32 %v1698, %v1810
        %1812 = vmatmul.f32.gmra.mxu0 %v1318
        %v1813 = vpop.f32.mrf.mxu0
        %v1814 = vadd.f32 %v1701, %v1813
        %1815 = vmatmul.f32.gmra.mxu0 %v1327
        %v1816 = vpop.f32.mrf.mxu0
        %v1817 = vadd.f32 %v1704, %v1816
        %1818 = vmatmul.f32.gmra.mxu0 %v1336
        %v1819 = vpop.f32.mrf.mxu0
        %v1820 = vadd.f32 %v1707, %v1819
        %1821 = vmatmul.f32.gmra.mxu0 %v1345
        %v1822 = vpop.f32.mrf.mxu0
        %v1823 = vadd.f32 %v1710, %v1822
        %1824 = vmatmul.f32.gmra.mxu0 %v1354
        %v1825 = vpop.f32.mrf.mxu0
        %v1826 = vadd.f32 %v1713, %v1825
        %1827 = vmatmul.f32.gmra.mxu0 %v1363
        %v1828 = vpop.f32.mrf.mxu0
        %v1829 = vadd.f32 %v1716, %v1828
        %1830 = vmatmul.f32.gmra.mxu0 %v1372
        %v1831 = vpop.f32.mrf.mxu0
        %v1832 = vadd.f32 %v1719, %v1831
        %1833 = vmatmul.f32.gmra.mxu0 %v1381
        %v1834 = vpop.f32.mrf.mxu0
        %v1835 = vadd.f32 %v1722, %v1834
        %1836 = vmatmul.f32.gmra.mxu0 %v1390
        %v1837 = vpop.f32.mrf.mxu0
        %v1838 = vadd.f32 %v1725, %v1837
        %1839 = vmatmul.f32.gmra.mxu0 %v1399
        %v1840 = vpop.f32.mrf.mxu0
        %v1841 = vadd.f32 %v1728, %v1840
        %1842 = vmatmul.f32.gmra.mxu0 %v1408
        %v1843 = vpop.f32.mrf.mxu0
        %v1844 = vadd.f32 %v1731, %v1843
        %1845 = vmatmul.f32.gmra.mxu0 %v1417
        %v1846 = vpop.f32.mrf.mxu0
        %v1847 = vadd.f32 %v1734, %v1846
        %1848 = vmatmul.f32.gmra.mxu0 %v1426
        %v1849 = vpop.f32.mrf.mxu0
        %v1850 = vadd.f32 %v1737, %v1849
        %1851 = vmatmul.f32.gmra.mxu0 %v1435
        %v1852 = vpop.f32.mrf.mxu0
        %v1853 = vadd.f32 %v1740, %v1852
        %1854 = vmatmul.f32.gmra.mxu0 %v1444
        %v1855 = vpop.f32.mrf.mxu0
        %v1856 = vadd.f32 %v1743, %v1855
        %1857 = vmatmul.f32.gmra.mxu0 %v1453
        %v1858 = vpop.f32.mrf.mxu0
        %v1859 = vadd.f32 %v1746, %v1858
        %1860 = vmatmul.f32.gmra.mxu0 %v1462
        %v1861 = vpop.f32.mrf.mxu0
        %v1862 = vadd.f32 %v1749, %v1861
        %1863 = vmatmul.f32.gmra.mxu0 %v1471
        %v1864 = vpop.f32.mrf.mxu0
        %v1865 = vadd.f32 %v1752, %v1864
        %1866 = vmatmul.f32.gmra.mxu0 %v1480
        %v1867 = vpop.f32.mrf.mxu0
        %v1868 = vadd.f32 %v1755, %v1867
        %1869 = vmatmul.f32.gmra.mxu0 %v1489
        %v1870 = vpop.f32.mrf.mxu0
        %v1871 = vadd.f32 %v1758, %v1870
        %1872 = vmatmul.f32.gmra.mxu0 %v1498
        %v1873 = vpop.f32.mrf.mxu0
        %v1874 = vadd.f32 %v1761, %v1873
        %1875 = vdwg.mxu0
        %1876 = vmatpush.msra.mxu0 %v1553
        %1877 = vmatpush.msra.mxu0 %v1552
        %1878 = vmatpush.msra.mxu0 %v1551
        %1879 = vmatpush.msra.mxu0 %v1550
        %1880 = vmatpush.msra.mxu0 %v1549
        %1881 = vmatpush.msra.mxu0 %v1548
        %1882 = vmatpush.msra.mxu0 %v1547
        %1883 = vmatpush.msra.mxu0 %v1546
        %1884 = vmatpush.msra.mxu0 %v1545
        %1885 = vmatpush.msra.mxu0 %v1544
        %1886 = vmatpush.msra.mxu0 %v1543
        %1887 = vmatpush.msra.mxu0 %v1542
        %1888 = vmatpush.msra.mxu0 %v1541
        %1889 = vmatpush.msra.mxu0 %v1540
        %1890 = vmatpush.msra.mxu0 %v1539
        %1891 = vmatpush.msra.mxu0 %v1538
        %1892 = vmatmul.f32.gmra.mxu0 %v1220
        %v1893 = vpop.f32.mrf.mxu0
        %v1894 = vadd.f32 %v1781, %v1893
        %1895 = vmatmul.f32.gmra.mxu0 %v1229
        %v1896 = vpop.f32.mrf.mxu0
        %v1897 = vadd.f32 %v1784, %v1896
        %1898 = vmatmul.f32.gmra.mxu0 %v1238
        %v1899 = vpop.f32.mrf.mxu0
        %v1900 = vadd.f32 %v1787, %v1899
        %1901 = vmatmul.f32.gmra.mxu0 %v1247
        %v1902 = vpop.f32.mrf.mxu0
        %v1903 = vadd.f32 %v1790, %v1902
        %1904 = vmatmul.f32.gmra.mxu0 %v1256
        %v1905 = vpop.f32.mrf.mxu0
        %v1906 = vadd.f32 %v1793, %v1905
        %1907 = vmatmul.f32.gmra.mxu0 %v1265
        %v1908 = vpop.f32.mrf.mxu0
        %v1909 = vadd.f32 %v1796, %v1908
        %1910 = vmatmul.f32.gmra.mxu0 %v1274
        %v1911 = vpop.f32.mrf.mxu0
        %v1912 = vadd.f32 %v1799, %v1911
        %1913 = vmatmul.f32.gmra.mxu0 %v1283
        %v1914 = vpop.f32.mrf.mxu0
        %v1915 = vadd.f32 %v1802, %v1914
        %1916 = vmatmul.f32.gmra.mxu0 %v1292
        %v1917 = vpop.f32.mrf.mxu0
        %v1918 = vadd.f32 %v1805, %v1917
        %1919 = vmatmul.f32.gmra.mxu0 %v1301
        %v1920 = vpop.f32.mrf.mxu0
        %v1921 = vadd.f32 %v1808, %v1920
        %1922 = vmatmul.f32.gmra.mxu0 %v1310
        %v1923 = vpop.f32.mrf.mxu0
        %v1924 = vadd.f32 %v1811, %v1923
        %1925 = vmatmul.f32.gmra.mxu0 %v1319
        %v1926 = vpop.f32.mrf.mxu0
        %v1927 = vadd.f32 %v1814, %v1926
        %1928 = vmatmul.f32.gmra.mxu0 %v1328
        %v1929 = vpop.f32.mrf.mxu0
        %v1930 = vadd.f32 %v1817, %v1929
        %1931 = vmatmul.f32.gmra.mxu0 %v1337
        %v1932 = vpop.f32.mrf.mxu0
        %v1933 = vadd.f32 %v1820, %v1932
        %1934 = vmatmul.f32.gmra.mxu0 %v1346
        %v1935 = vpop.f32.mrf.mxu0
        %v1936 = vadd.f32 %v1823, %v1935
        %1937 = vmatmul.f32.gmra.mxu0 %v1355
        %v1938 = vpop.f32.mrf.mxu0
        %v1939 = vadd.f32 %v1826, %v1938
        %1940 = vmatmul.f32.gmra.mxu0 %v1364
        %v1941 = vpop.f32.mrf.mxu0
        %v1942 = vadd.f32 %v1829, %v1941
        %1943 = vmatmul.f32.gmra.mxu0 %v1373
        %v1944 = vpop.f32.mrf.mxu0
        %v1945 = vadd.f32 %v1832, %v1944
        %1946 = vmatmul.f32.gmra.mxu0 %v1382
        %v1947 = vpop.f32.mrf.mxu0
        %v1948 = vadd.f32 %v1835, %v1947
        %1949 = vmatmul.f32.gmra.mxu0 %v1391
        %v1950 = vpop.f32.mrf.mxu0
        %v1951 = vadd.f32 %v1838, %v1950
        %1952 = vmatmul.f32.gmra.mxu0 %v1400
        %v1953 = vpop.f32.mrf.mxu0
        %v1954 = vadd.f32 %v1841, %v1953
        %1955 = vmatmul.f32.gmra.mxu0 %v1409
        %v1956 = vpop.f32.mrf.mxu0
        %v1957 = vadd.f32 %v1844, %v1956
        %1958 = vmatmul.f32.gmra.mxu0 %v1418
        %v1959 = vpop.f32.mrf.mxu0
        %v1960 = vadd.f32 %v1847, %v1959
        %1961 = vmatmul.f32.gmra.mxu0 %v1427
        %v1962 = vpop.f32.mrf.mxu0
        %v1963 = vadd.f32 %v1850, %v1962
        %1964 = vmatmul.f32.gmra.mxu0 %v1436
        %v1965 = vpop.f32.mrf.mxu0
        %v1966 = vadd.f32 %v1853, %v1965
        %1967 = vmatmul.f32.gmra.mxu0 %v1445
        %v1968 = vpop.f32.mrf.mxu0
        %v1969 = vadd.f32 %v1856, %v1968
        %1970 = vmatmul.f32.gmra.mxu0 %v1454
        %v1971 = vpop.f32.mrf.mxu0
        %v1972 = vadd.f32 %v1859, %v1971
        %1973 = vmatmul.f32.gmra.mxu0 %v1463
        %v1974 = vpop.f32.mrf.mxu0
        %v1975 = vadd.f32 %v1862, %v1974
        %1976 = vmatmul.f32.gmra.mxu0 %v1472
        %v1977 = vpop.f32.mrf.mxu0
        %v1978 = vadd.f32 %v1865, %v1977
        %1979 = vmatmul.f32.gmra.mxu0 %v1481
        %v1980 = vpop.f32.mrf.mxu0
        %v1981 = vadd.f32 %v1868, %v1980
        %1982 = vmatmul.f32.gmra.mxu0 %v1490
        %v1983 = vpop.f32.mrf.mxu0
        %v1984 = vadd.f32 %v1871, %v1983
        %1985 = vmatmul.f32.gmra.mxu0 %v1499
        %v1986 = vpop.f32.mrf.mxu0
        %v1987 = vadd.f32 %v1874, %v1986
        %1988 = vdwg.mxu0
        %1989 = vmatpush.msra.mxu0 %v1569
        %1990 = vmatpush.msra.mxu0 %v1568
        %1991 = vmatpush.msra.mxu0 %v1567
        %1992 = vmatpush.msra.mxu0 %v1566
        %1993 = vmatpush.msra.mxu0 %v1565
        %1994 = vmatpush.msra.mxu0 %v1564
        %1995 = vmatpush.msra.mxu0 %v1563
        %1996 = vmatpush.msra.mxu0 %v1562
        %1997 = vmatpush.msra.mxu0 %v1561
        %1998 = vmatpush.msra.mxu0 %v1560
        %1999 = vmatpush.msra.mxu0 %v1559
        %2000 = vmatpush.msra.mxu0 %v1558
        %2001 = vmatpush.msra.mxu0 %v1557
        %2002 = vmatpush.msra.mxu0 %v1556
        %2003 = vmatpush.msra.mxu0 %v1555
        %2004 = vmatpush.msra.mxu0 %v1554
        %2005 = vmatmul.f32.gmra.mxu0 %v1221
        %v2006 = vpop.f32.mrf.mxu0
        %v2007 = vadd.f32 %v1894, %v2006
        %2008 = vmatmul.f32.gmra.mxu0 %v1230
        %v2009 = vpop.f32.mrf.mxu0
        %v2010 = vadd.f32 %v1897, %v2009
        %2011 = vmatmul.f32.gmra.mxu0 %v1239
        %v2012 = vpop.f32.mrf.mxu0
        %v2013 = vadd.f32 %v1900, %v2012
        %2014 = vmatmul.f32.gmra.mxu0 %v1248
        %v2015 = vpop.f32.mrf.mxu0
        %v2016 = vadd.f32 %v1903, %v2015
        %2017 = vmatmul.f32.gmra.mxu0 %v1257
        %v2018 = vpop.f32.mrf.mxu0
        %v2019 = vadd.f32 %v1906, %v2018
        %2020 = vmatmul.f32.gmra.mxu0 %v1266
        %v2021 = vpop.f32.mrf.mxu0
        %v2022 = vadd.f32 %v1909, %v2021
        %2023 = vmatmul.f32.gmra.mxu0 %v1275
        %v2024 = vpop.f32.mrf.mxu0
        %v2025 = vadd.f32 %v1912, %v2024
        %2026 = vmatmul.f32.gmra.mxu0 %v1284
        %v2027 = vpop.f32.mrf.mxu0
        %v2028 = vadd.f32 %v1915, %v2027
        %2029 = vmatmul.f32.gmra.mxu0 %v1293
        %v2030 = vpop.f32.mrf.mxu0
        %v2031 = vadd.f32 %v1918, %v2030
        %2032 = vmatmul.f32.gmra.mxu0 %v1302
        %v2033 = vpop.f32.mrf.mxu0
        %v2034 = vadd.f32 %v1921, %v2033
        %2035 = vmatmul.f32.gmra.mxu0 %v1311
        %v2036 = vpop.f32.mrf.mxu0
        %v2037 = vadd.f32 %v1924, %v2036
        %2038 = vmatmul.f32.gmra.mxu0 %v1320
        %v2039 = vpop.f32.mrf.mxu0
        %v2040 = vadd.f32 %v1927, %v2039
        %2041 = vmatmul.f32.gmra.mxu0 %v1329
        %v2042 = vpop.f32.mrf.mxu0
        %v2043 = vadd.f32 %v1930, %v2042
        %2044 = vmatmul.f32.gmra.mxu0 %v1338
        %v2045 = vpop.f32.mrf.mxu0
        %v2046 = vadd.f32 %v1933, %v2045
        %2047 = vmatmul.f32.gmra.mxu0 %v1347
        %v2048 = vpop.f32.mrf.mxu0
        %v2049 = vadd.f32 %v1936, %v2048
        %2050 = vmatmul.f32.gmra.mxu0 %v1356
        %v2051 = vpop.f32.mrf.mxu0
        %v2052 = vadd.f32 %v1939, %v2051
        %2053 = vmatmul.f32.gmra.mxu0 %v1365
        %v2054 = vpop.f32.mrf.mxu0
        %v2055 = vadd.f32 %v1942, %v2054
        %2056 = vmatmul.f32.gmra.mxu0 %v1374
        %v2057 = vpop.f32.mrf.mxu0
        %v2058 = vadd.f32 %v1945, %v2057
        %2059 = vmatmul.f32.gmra.mxu0 %v1383
        %v2060 = vpop.f32.mrf.mxu0
        %v2061 = vadd.f32 %v1948, %v2060
        %2062 = vmatmul.f32.gmra.mxu0 %v1392
        %v2063 = vpop.f32.mrf.mxu0
        %v2064 = vadd.f32 %v1951, %v2063
        %2065 = vmatmul.f32.gmra.mxu0 %v1401
        %v2066 = vpop.f32.mrf.mxu0
        %v2067 = vadd.f32 %v1954, %v2066
        %2068 = vmatmul.f32.gmra.mxu0 %v1410
        %v2069 = vpop.f32.mrf.mxu0
        %v2070 = vadd.f32 %v1957, %v2069
        %2071 = vmatmul.f32.gmra.mxu0 %v1419
        %v2072 = vpop.f32.mrf.mxu0
        %v2073 = vadd.f32 %v1960, %v2072
        %2074 = vmatmul.f32.gmra.mxu0 %v1428
        %v2075 = vpop.f32.mrf.mxu0
        %v2076 = vadd.f32 %v1963, %v2075
        %2077 = vmatmul.f32.gmra.mxu0 %v1437
        %v2078 = vpop.f32.mrf.mxu0
        %v2079 = vadd.f32 %v1966, %v2078
        %2080 = vmatmul.f32.gmra.mxu0 %v1446
        %v2081 = vpop.f32.mrf.mxu0
        %v2082 = vadd.f32 %v1969, %v2081
        %2083 = vmatmul.f32.gmra.mxu0 %v1455
        %v2084 = vpop.f32.mrf.mxu0
        %v2085 = vadd.f32 %v1972, %v2084
        %2086 = vmatmul.f32.gmra.mxu0 %v1464
        %v2087 = vpop.f32.mrf.mxu0
        %v2088 = vadd.f32 %v1975, %v2087
        %2089 = vmatmul.f32.gmra.mxu0 %v1473
        %v2090 = vpop.f32.mrf.mxu0
        %v2091 = vadd.f32 %v1978, %v2090
        %2092 = vmatmul.f32.gmra.mxu0 %v1482
        %v2093 = vpop.f32.mrf.mxu0
        %v2094 = vadd.f32 %v1981, %v2093
        %2095 = vmatmul.f32.gmra.mxu0 %v1491
        %v2096 = vpop.f32.mrf.mxu0
        %v2097 = vadd.f32 %v1984, %v2096
        %2098 = vmatmul.f32.gmra.mxu0 %v1500
        %v2099 = vpop.f32.mrf.mxu0
        %v2100 = vadd.f32 %v1987, %v2099
        %2101 = vdwg.mxu0
        %2102 = vmatpush.msra.mxu0 %v1585
        %2103 = vmatpush.msra.mxu0 %v1584
        %2104 = vmatpush.msra.mxu0 %v1583
        %2105 = vmatpush.msra.mxu0 %v1582
        %2106 = vmatpush.msra.mxu0 %v1581
        %2107 = vmatpush.msra.mxu0 %v1580
        %2108 = vmatpush.msra.mxu0 %v1579
        %2109 = vmatpush.msra.mxu0 %v1578
        %2110 = vmatpush.msra.mxu0 %v1577
        %2111 = vmatpush.msra.mxu0 %v1576
        %2112 = vmatpush.msra.mxu0 %v1575
        %2113 = vmatpush.msra.mxu0 %v1574
        %2114 = vmatpush.msra.mxu0 %v1573
        %2115 = vmatpush.msra.mxu0 %v1572
        %2116 = vmatpush.msra.mxu0 %v1571
        %2117 = vmatpush.msra.mxu0 %v1570
        %2118 = vmatmul.f32.gmra.mxu0 %v1222
        %v2119 = vpop.f32.mrf.mxu0
        %v2120 = vadd.f32 %v2007, %v2119
        %2121 = vmatmul.f32.gmra.mxu0 %v1231
        %v2122 = vpop.f32.mrf.mxu0
        %v2123 = vadd.f32 %v2010, %v2122
        %2124 = vmatmul.f32.gmra.mxu0 %v1240
        %v2125 = vpop.f32.mrf.mxu0
        %v2126 = vadd.f32 %v2013, %v2125
        %2127 = vmatmul.f32.gmra.mxu0 %v1249
        %v2128 = vpop.f32.mrf.mxu0
        %v2129 = vadd.f32 %v2016, %v2128
        %2130 = vmatmul.f32.gmra.mxu0 %v1258
        %v2131 = vpop.f32.mrf.mxu0
        %v2132 = vadd.f32 %v2019, %v2131
        %2133 = vmatmul.f32.gmra.mxu0 %v1267
        %v2134 = vpop.f32.mrf.mxu0
        %v2135 = vadd.f32 %v2022, %v2134
        %2136 = vmatmul.f32.gmra.mxu0 %v1276
        %v2137 = vpop.f32.mrf.mxu0
        %v2138 = vadd.f32 %v2025, %v2137
        %2139 = vmatmul.f32.gmra.mxu0 %v1285
        %v2140 = vpop.f32.mrf.mxu0
        %v2141 = vadd.f32 %v2028, %v2140
        %2142 = vmatmul.f32.gmra.mxu0 %v1294
        %v2143 = vpop.f32.mrf.mxu0
        %v2144 = vadd.f32 %v2031, %v2143
        %2145 = vmatmul.f32.gmra.mxu0 %v1303
        %v2146 = vpop.f32.mrf.mxu0
        %v2147 = vadd.f32 %v2034, %v2146
        %2148 = vmatmul.f32.gmra.mxu0 %v1312
        %v2149 = vpop.f32.mrf.mxu0
        %v2150 = vadd.f32 %v2037, %v2149
        %2151 = vmatmul.f32.gmra.mxu0 %v1321
        %v2152 = vpop.f32.mrf.mxu0
        %v2153 = vadd.f32 %v2040, %v2152
        %2154 = vmatmul.f32.gmra.mxu0 %v1330
        %v2155 = vpop.f32.mrf.mxu0
        %v2156 = vadd.f32 %v2043, %v2155
        %2157 = vmatmul.f32.gmra.mxu0 %v1339
        %v2158 = vpop.f32.mrf.mxu0
        %v2159 = vadd.f32 %v2046, %v2158
        %2160 = vmatmul.f32.gmra.mxu0 %v1348
        %v2161 = vpop.f32.mrf.mxu0
        %v2162 = vadd.f32 %v2049, %v2161
        %2163 = vmatmul.f32.gmra.mxu0 %v1357
        %v2164 = vpop.f32.mrf.mxu0
        %v2165 = vadd.f32 %v2052, %v2164
        %2166 = vmatmul.f32.gmra.mxu0 %v1366
        %v2167 = vpop.f32.mrf.mxu0
        %v2168 = vadd.f32 %v2055, %v2167
        %2169 = vmatmul.f32.gmra.mxu0 %v1375
        %v2170 = vpop.f32.mrf.mxu0
        %v2171 = vadd.f32 %v2058, %v2170
        %2172 = vmatmul.f32.gmra.mxu0 %v1384
        %v2173 = vpop.f32.mrf.mxu0
        %v2174 = vadd.f32 %v2061, %v2173
        %2175 = vmatmul.f32.gmra.mxu0 %v1393
        %v2176 = vpop.f32.mrf.mxu0
        %v2177 = vadd.f32 %v2064, %v2176
        %2178 = vmatmul.f32.gmra.mxu0 %v1402
        %v2179 = vpop.f32.mrf.mxu0
        %v2180 = vadd.f32 %v2067, %v2179
        %2181 = vmatmul.f32.gmra.mxu0 %v1411
        %v2182 = vpop.f32.mrf.mxu0
        %v2183 = vadd.f32 %v2070, %v2182
        %2184 = vmatmul.f32.gmra.mxu0 %v1420
        %v2185 = vpop.f32.mrf.mxu0
        %v2186 = vadd.f32 %v2073, %v2185
        %2187 = vmatmul.f32.gmra.mxu0 %v1429
        %v2188 = vpop.f32.mrf.mxu0
        %v2189 = vadd.f32 %v2076, %v2188
        %2190 = vmatmul.f32.gmra.mxu0 %v1438
        %v2191 = vpop.f32.mrf.mxu0
        %v2192 = vadd.f32 %v2079, %v2191
        %2193 = vmatmul.f32.gmra.mxu0 %v1447
        %v2194 = vpop.f32.mrf.mxu0
        %v2195 = vadd.f32 %v2082, %v2194
        %2196 = vmatmul.f32.gmra.mxu0 %v1456
        %v2197 = vpop.f32.mrf.mxu0
        %v2198 = vadd.f32 %v2085, %v2197
        %2199 = vmatmul.f32.gmra.mxu0 %v1465
        %v2200 = vpop.f32.mrf.mxu0
        %v2201 = vadd.f32 %v2088, %v2200
        %2202 = vmatmul.f32.gmra.mxu0 %v1474
        %v2203 = vpop.f32.mrf.mxu0
        %v2204 = vadd.f32 %v2091, %v2203
        %2205 = vmatmul.f32.gmra.mxu0 %v1483
        %v2206 = vpop.f32.mrf.mxu0
        %v2207 = vadd.f32 %v2094, %v2206
        %2208 = vmatmul.f32.gmra.mxu0 %v1492
        %v2209 = vpop.f32.mrf.mxu0
        %v2210 = vadd.f32 %v2097, %v2209
        %2211 = vmatmul.f32.gmra.mxu0 %v1501
        %v2212 = vpop.f32.mrf.mxu0
        %v2213 = vadd.f32 %v2100, %v2212
        %2214 = vdwg.mxu0
        %2215 = vmatpush.msra.mxu0 %v1601
        %2216 = vmatpush.msra.mxu0 %v1600
        %2217 = vmatpush.msra.mxu0 %v1599
        %2218 = vmatpush.msra.mxu0 %v1598
        %2219 = vmatpush.msra.mxu0 %v1597
        %2220 = vmatpush.msra.mxu0 %v1596
        %2221 = vmatpush.msra.mxu0 %v1595
        %2222 = vmatpush.msra.mxu0 %v1594
        %2223 = vmatpush.msra.mxu0 %v1593
        %2224 = vmatpush.msra.mxu0 %v1592
        %2225 = vmatpush.msra.mxu0 %v1591
        %2226 = vmatpush.msra.mxu0 %v1590
        %2227 = vmatpush.msra.mxu0 %v1589
        %2228 = vmatpush.msra.mxu0 %v1588
        %2229 = vmatpush.msra.mxu0 %v1587
        %2230 = vmatpush.msra.mxu0 %v1586
        %2231 = vmatmul.f32.gmra.mxu0 %v1223
        %v2232 = vpop.f32.mrf.mxu0
        %v2233 = vadd.f32 %v2120, %v2232
        %2234 = vmatmul.f32.gmra.mxu0 %v1232
        %v2235 = vpop.f32.mrf.mxu0
        %v2236 = vadd.f32 %v2123, %v2235
        %2237 = vmatmul.f32.gmra.mxu0 %v1241
        %v2238 = vpop.f32.mrf.mxu0
        %v2239 = vadd.f32 %v2126, %v2238
        %2240 = vmatmul.f32.gmra.mxu0 %v1250
        %v2241 = vpop.f32.mrf.mxu0
        %v2242 = vadd.f32 %v2129, %v2241
        %2243 = vmatmul.f32.gmra.mxu0 %v1259
        %v2244 = vpop.f32.mrf.mxu0
        %v2245 = vadd.f32 %v2132, %v2244
        %2246 = vmatmul.f32.gmra.mxu0 %v1268
        %v2247 = vpop.f32.mrf.mxu0
        %v2248 = vadd.f32 %v2135, %v2247
        %2249 = vmatmul.f32.gmra.mxu0 %v1277
        %v2250 = vpop.f32.mrf.mxu0
        %v2251 = vadd.f32 %v2138, %v2250
        %2252 = vmatmul.f32.gmra.mxu0 %v1286
        %v2253 = vpop.f32.mrf.mxu0
        %v2254 = vadd.f32 %v2141, %v2253
        %2255 = vmatmul.f32.gmra.mxu0 %v1295
        %v2256 = vpop.f32.mrf.mxu0
        %v2257 = vadd.f32 %v2144, %v2256
        %2258 = vmatmul.f32.gmra.mxu0 %v1304
        %v2259 = vpop.f32.mrf.mxu0
        %v2260 = vadd.f32 %v2147, %v2259
        %2261 = vmatmul.f32.gmra.mxu0 %v1313
        %v2262 = vpop.f32.mrf.mxu0
        %v2263 = vadd.f32 %v2150, %v2262
        %2264 = vmatmul.f32.gmra.mxu0 %v1322
        %v2265 = vpop.f32.mrf.mxu0
        %v2266 = vadd.f32 %v2153, %v2265
        %2267 = vmatmul.f32.gmra.mxu0 %v1331
        %v2268 = vpop.f32.mrf.mxu0
        %v2269 = vadd.f32 %v2156, %v2268
        %2270 = vmatmul.f32.gmra.mxu0 %v1340
        %v2271 = vpop.f32.mrf.mxu0
        %v2272 = vadd.f32 %v2159, %v2271
        %2273 = vmatmul.f32.gmra.mxu0 %v1349
        %v2274 = vpop.f32.mrf.mxu0
        %v2275 = vadd.f32 %v2162, %v2274
        %2276 = vmatmul.f32.gmra.mxu0 %v1358
        %v2277 = vpop.f32.mrf.mxu0
        %v2278 = vadd.f32 %v2165, %v2277
        %2279 = vmatmul.f32.gmra.mxu0 %v1367
        %v2280 = vpop.f32.mrf.mxu0
        %v2281 = vadd.f32 %v2168, %v2280
        %2282 = vmatmul.f32.gmra.mxu0 %v1376
        %v2283 = vpop.f32.mrf.mxu0
        %v2284 = vadd.f32 %v2171, %v2283
        %2285 = vmatmul.f32.gmra.mxu0 %v1385
        %v2286 = vpop.f32.mrf.mxu0
        %v2287 = vadd.f32 %v2174, %v2286
        %2288 = vmatmul.f32.gmra.mxu0 %v1394
        %v2289 = vpop.f32.mrf.mxu0
        %v2290 = vadd.f32 %v2177, %v2289
        %2291 = vmatmul.f32.gmra.mxu0 %v1403
        %v2292 = vpop.f32.mrf.mxu0
        %v2293 = vadd.f32 %v2180, %v2292
        %2294 = vmatmul.f32.gmra.mxu0 %v1412
        %v2295 = vpop.f32.mrf.mxu0
        %v2296 = vadd.f32 %v2183, %v2295
        %2297 = vmatmul.f32.gmra.mxu0 %v1421
        %v2298 = vpop.f32.mrf.mxu0
        %v2299 = vadd.f32 %v2186, %v2298
        %2300 = vmatmul.f32.gmra.mxu0 %v1430
        %v2301 = vpop.f32.mrf.mxu0
        %v2302 = vadd.f32 %v2189, %v2301
        %2303 = vmatmul.f32.gmra.mxu0 %v1439
        %v2304 = vpop.f32.mrf.mxu0
        %v2305 = vadd.f32 %v2192, %v2304
        %2306 = vmatmul.f32.gmra.mxu0 %v1448
        %v2307 = vpop.f32.mrf.mxu0
        %v2308 = vadd.f32 %v2195, %v2307
        %2309 = vmatmul.f32.gmra.mxu0 %v1457
        %v2310 = vpop.f32.mrf.mxu0
        %v2311 = vadd.f32 %v2198, %v2310
        %2312 = vmatmul.f32.gmra.mxu0 %v1466
        %v2313 = vpop.f32.mrf.mxu0
        %v2314 = vadd.f32 %v2201, %v2313
        %2315 = vmatmul.f32.gmra.mxu0 %v1475
        %v2316 = vpop.f32.mrf.mxu0
        %v2317 = vadd.f32 %v2204, %v2316
        %2318 = vmatmul.f32.gmra.mxu0 %v1484
        %v2319 = vpop.f32.mrf.mxu0
        %v2320 = vadd.f32 %v2207, %v2319
        %2321 = vmatmul.f32.gmra.mxu0 %v1493
        %v2322 = vpop.f32.mrf.mxu0
        %v2323 = vadd.f32 %v2210, %v2322
        %2324 = vmatmul.f32.gmra.mxu0 %v1502
        %v2325 = vpop.f32.mrf.mxu0
        %v2326 = vadd.f32 %v2213, %v2325
        %2327 = vdwg.mxu0
        %2328 = vmatpush.msra.mxu0 %v1617
        %2329 = vmatpush.msra.mxu0 %v1616
        %2330 = vmatpush.msra.mxu0 %v1615
        %2331 = vmatpush.msra.mxu0 %v1614
        %2332 = vmatpush.msra.mxu0 %v1613
        %2333 = vmatpush.msra.mxu0 %v1612
        %2334 = vmatpush.msra.mxu0 %v1611
        %2335 = vmatpush.msra.mxu0 %v1610
        %2336 = vmatpush.msra.mxu0 %v1609
        %2337 = vmatpush.msra.mxu0 %v1608
        %2338 = vmatpush.msra.mxu0 %v1607
        %2339 = vmatpush.msra.mxu0 %v1606
        %2340 = vmatpush.msra.mxu0 %v1605
        %2341 = vmatpush.msra.mxu0 %v1604
        %2342 = vmatpush.msra.mxu0 %v1603
        %2343 = vmatpush.msra.mxu0 %v1602
        %2344 = vmatmul.f32.gmra.mxu0 %v1224
        %v2345 = vpop.f32.mrf.mxu0
        %v2346 = vadd.f32 %v2233, %v2345
        %2347 = vmatmul.f32.gmra.mxu0 %v1233
        %v2348 = vpop.f32.mrf.mxu0
        %v2349 = vadd.f32 %v2236, %v2348
        %2350 = vmatmul.f32.gmra.mxu0 %v1242
        %v2351 = vpop.f32.mrf.mxu0
        %v2352 = vadd.f32 %v2239, %v2351
        %2353 = vmatmul.f32.gmra.mxu0 %v1251
        %v2354 = vpop.f32.mrf.mxu0
        %v2355 = vadd.f32 %v2242, %v2354
        %2356 = vmatmul.f32.gmra.mxu0 %v1260
        %v2357 = vpop.f32.mrf.mxu0
        %v2358 = vadd.f32 %v2245, %v2357
        %2359 = vmatmul.f32.gmra.mxu0 %v1269
        %v2360 = vpop.f32.mrf.mxu0
        %v2361 = vadd.f32 %v2248, %v2360
        %2362 = vmatmul.f32.gmra.mxu0 %v1278
        %v2363 = vpop.f32.mrf.mxu0
        %v2364 = vadd.f32 %v2251, %v2363
        %2365 = vmatmul.f32.gmra.mxu0 %v1287
        %v2366 = vpop.f32.mrf.mxu0
        %v2367 = vadd.f32 %v2254, %v2366
        %2368 = vmatmul.f32.gmra.mxu0 %v1296
        %v2369 = vpop.f32.mrf.mxu0
        %v2370 = vadd.f32 %v2257, %v2369
        %2371 = vmatmul.f32.gmra.mxu0 %v1305
        %v2372 = vpop.f32.mrf.mxu0
        %v2373 = vadd.f32 %v2260, %v2372
        %2374 = vmatmul.f32.gmra.mxu0 %v1314
        %v2375 = vpop.f32.mrf.mxu0
        %v2376 = vadd.f32 %v2263, %v2375
        %2377 = vmatmul.f32.gmra.mxu0 %v1323
        %v2378 = vpop.f32.mrf.mxu0
        %v2379 = vadd.f32 %v2266, %v2378
        %2380 = vmatmul.f32.gmra.mxu0 %v1332
        %v2381 = vpop.f32.mrf.mxu0
        %v2382 = vadd.f32 %v2269, %v2381
        %2383 = vmatmul.f32.gmra.mxu0 %v1341
        %v2384 = vpop.f32.mrf.mxu0
        %v2385 = vadd.f32 %v2272, %v2384
        %2386 = vmatmul.f32.gmra.mxu0 %v1350
        %v2387 = vpop.f32.mrf.mxu0
        %v2388 = vadd.f32 %v2275, %v2387
        %2389 = vmatmul.f32.gmra.mxu0 %v1359
        %v2390 = vpop.f32.mrf.mxu0
        %v2391 = vadd.f32 %v2278, %v2390
        %2392 = vmatmul.f32.gmra.mxu0 %v1368
        %v2393 = vpop.f32.mrf.mxu0
        %v2394 = vadd.f32 %v2281, %v2393
        %2395 = vmatmul.f32.gmra.mxu0 %v1377
        %v2396 = vpop.f32.mrf.mxu0
        %v2397 = vadd.f32 %v2284, %v2396
        %2398 = vmatmul.f32.gmra.mxu0 %v1386
        %v2399 = vpop.f32.mrf.mxu0
        %v2400 = vadd.f32 %v2287, %v2399
        %2401 = vmatmul.f32.gmra.mxu0 %v1395
        %v2402 = vpop.f32.mrf.mxu0
        %v2403 = vadd.f32 %v2290, %v2402
        %2404 = vmatmul.f32.gmra.mxu0 %v1404
        %v2405 = vpop.f32.mrf.mxu0
        %v2406 = vadd.f32 %v2293, %v2405
        %2407 = vmatmul.f32.gmra.mxu0 %v1413
        %v2408 = vpop.f32.mrf.mxu0
        %v2409 = vadd.f32 %v2296, %v2408
        %2410 = vmatmul.f32.gmra.mxu0 %v1422
        %v2411 = vpop.f32.mrf.mxu0
        %v2412 = vadd.f32 %v2299, %v2411
        %2413 = vmatmul.f32.gmra.mxu0 %v1431
        %v2414 = vpop.f32.mrf.mxu0
        %v2415 = vadd.f32 %v2302, %v2414
        %2416 = vmatmul.f32.gmra.mxu0 %v1440
        %v2417 = vpop.f32.mrf.mxu0
        %v2418 = vadd.f32 %v2305, %v2417
        %2419 = vmatmul.f32.gmra.mxu0 %v1449
        %v2420 = vpop.f32.mrf.mxu0
        %v2421 = vadd.f32 %v2308, %v2420
        %2422 = vmatmul.f32.gmra.mxu0 %v1458
        %v2423 = vpop.f32.mrf.mxu0
        %v2424 = vadd.f32 %v2311, %v2423
        %2425 = vmatmul.f32.gmra.mxu0 %v1467
        %v2426 = vpop.f32.mrf.mxu0
        %v2427 = vadd.f32 %v2314, %v2426
        %2428 = vmatmul.f32.gmra.mxu0 %v1476
        %v2429 = vpop.f32.mrf.mxu0
        %v2430 = vadd.f32 %v2317, %v2429
        %2431 = vmatmul.f32.gmra.mxu0 %v1485
        %v2432 = vpop.f32.mrf.mxu0
        %v2433 = vadd.f32 %v2320, %v2432
        %2434 = vmatmul.f32.gmra.mxu0 %v1494
        %v2435 = vpop.f32.mrf.mxu0
        %v2436 = vadd.f32 %v2323, %v2435
        %2437 = vmatmul.f32.gmra.mxu0 %v1503
        %v2438 = vpop.f32.mrf.mxu0
        %v2439 = vadd.f32 %v2326, %v2438
        %2440 = vdwg.mxu0
        %2441 = vmatpush.msra.mxu0 %v1633
        %2442 = vmatpush.msra.mxu0 %v1632
        %2443 = vmatpush.msra.mxu0 %v1631
        %2444 = vmatpush.msra.mxu0 %v1630
        %2445 = vmatpush.msra.mxu0 %v1629
        %2446 = vmatpush.msra.mxu0 %v1628
        %2447 = vmatpush.msra.mxu0 %v1627
        %2448 = vmatpush.msra.mxu0 %v1626
        %2449 = vmatpush.msra.mxu0 %v1625
        %2450 = vmatpush.msra.mxu0 %v1624
        %2451 = vmatpush.msra.mxu0 %v1623
        %2452 = vmatpush.msra.mxu0 %v1622
        %2453 = vmatpush.msra.mxu0 %v1621
        %2454 = vmatpush.msra.mxu0 %v1620
        %2455 = vmatpush.msra.mxu0 %v1619
        %2456 = vmatpush.msra.mxu0 %v1618
        %2457 = vmatmul.f32.gmra.mxu0 %v1225
        %v2458 = vpop.f32.mrf.mxu0
        %v2459 = vadd.f32 %v2346, %v2458
        %2460 = vmatmul.f32.gmra.mxu0 %v1234
        %v2461 = vpop.f32.mrf.mxu0
        %v2462 = vadd.f32 %v2349, %v2461
        %2463 = vmatmul.f32.gmra.mxu0 %v1243
        %v2464 = vpop.f32.mrf.mxu0
        %v2465 = vadd.f32 %v2352, %v2464
        %2466 = vmatmul.f32.gmra.mxu0 %v1252
        %v2467 = vpop.f32.mrf.mxu0
        %v2468 = vadd.f32 %v2355, %v2467
        %2469 = vmatmul.f32.gmra.mxu0 %v1261
        %v2470 = vpop.f32.mrf.mxu0
        %v2471 = vadd.f32 %v2358, %v2470
        %2472 = vmatmul.f32.gmra.mxu0 %v1270
        %v2473 = vpop.f32.mrf.mxu0
        %v2474 = vadd.f32 %v2361, %v2473
        %2475 = vmatmul.f32.gmra.mxu0 %v1279
        %v2476 = vpop.f32.mrf.mxu0
        %v2477 = vadd.f32 %v2364, %v2476
        %2478 = vmatmul.f32.gmra.mxu0 %v1288
        %v2479 = vpop.f32.mrf.mxu0
        %v2480 = vadd.f32 %v2367, %v2479
        %2481 = vmatmul.f32.gmra.mxu0 %v1297
        %v2482 = vpop.f32.mrf.mxu0
        %v2483 = vadd.f32 %v2370, %v2482
        %2484 = vmatmul.f32.gmra.mxu0 %v1306
        %v2485 = vpop.f32.mrf.mxu0
        %v2486 = vadd.f32 %v2373, %v2485
        %2487 = vmatmul.f32.gmra.mxu0 %v1315
        %v2488 = vpop.f32.mrf.mxu0
        %v2489 = vadd.f32 %v2376, %v2488
        %2490 = vmatmul.f32.gmra.mxu0 %v1324
        %v2491 = vpop.f32.mrf.mxu0
        %v2492 = vadd.f32 %v2379, %v2491
        %2493 = vmatmul.f32.gmra.mxu0 %v1333
        %v2494 = vpop.f32.mrf.mxu0
        %v2495 = vadd.f32 %v2382, %v2494
        %2496 = vmatmul.f32.gmra.mxu0 %v1342
        %v2497 = vpop.f32.mrf.mxu0
        %v2498 = vadd.f32 %v2385, %v2497
        %2499 = vmatmul.f32.gmra.mxu0 %v1351
        %v2500 = vpop.f32.mrf.mxu0
        %v2501 = vadd.f32 %v2388, %v2500
        %2502 = vmatmul.f32.gmra.mxu0 %v1360
        %v2503 = vpop.f32.mrf.mxu0
        %v2504 = vadd.f32 %v2391, %v2503
        %2505 = vmatmul.f32.gmra.mxu0 %v1369
        %v2506 = vpop.f32.mrf.mxu0
        %v2507 = vadd.f32 %v2394, %v2506
        %2508 = vmatmul.f32.gmra.mxu0 %v1378
        %v2509 = vpop.f32.mrf.mxu0
        %v2510 = vadd.f32 %v2397, %v2509
        %2511 = vmatmul.f32.gmra.mxu0 %v1387
        %v2512 = vpop.f32.mrf.mxu0
        %v2513 = vadd.f32 %v2400, %v2512
        %2514 = vmatmul.f32.gmra.mxu0 %v1396
        %v2515 = vpop.f32.mrf.mxu0
        %v2516 = vadd.f32 %v2403, %v2515
        %2517 = vmatmul.f32.gmra.mxu0 %v1405
        %v2518 = vpop.f32.mrf.mxu0
        %v2519 = vadd.f32 %v2406, %v2518
        %2520 = vmatmul.f32.gmra.mxu0 %v1414
        %v2521 = vpop.f32.mrf.mxu0
        %v2522 = vadd.f32 %v2409, %v2521
        %2523 = vmatmul.f32.gmra.mxu0 %v1423
        %v2524 = vpop.f32.mrf.mxu0
        %v2525 = vadd.f32 %v2412, %v2524
        %2526 = vmatmul.f32.gmra.mxu0 %v1432
        %v2527 = vpop.f32.mrf.mxu0
        %v2528 = vadd.f32 %v2415, %v2527
        %2529 = vmatmul.f32.gmra.mxu0 %v1441
        %v2530 = vpop.f32.mrf.mxu0
        %v2531 = vadd.f32 %v2418, %v2530
        %2532 = vmatmul.f32.gmra.mxu0 %v1450
        %v2533 = vpop.f32.mrf.mxu0
        %v2534 = vadd.f32 %v2421, %v2533
        %2535 = vmatmul.f32.gmra.mxu0 %v1459
        %v2536 = vpop.f32.mrf.mxu0
        %v2537 = vadd.f32 %v2424, %v2536
        %2538 = vmatmul.f32.gmra.mxu0 %v1468
        %v2539 = vpop.f32.mrf.mxu0
        %v2540 = vadd.f32 %v2427, %v2539
        %2541 = vmatmul.f32.gmra.mxu0 %v1477
        %v2542 = vpop.f32.mrf.mxu0
        %v2543 = vadd.f32 %v2430, %v2542
        %2544 = vmatmul.f32.gmra.mxu0 %v1486
        %v2545 = vpop.f32.mrf.mxu0
        %v2546 = vadd.f32 %v2433, %v2545
        %2547 = vmatmul.f32.gmra.mxu0 %v1495
        %v2548 = vpop.f32.mrf.mxu0
        %v2549 = vadd.f32 %v2436, %v2548
        %2550 = vmatmul.f32.gmra.mxu0 %v1504
        %v2551 = vpop.f32.mrf.mxu0
        %v2552 = vadd.f32 %v2439, %v2551
        %2553 = vdwg.mxu0
        %2554 = vmatpush.msra.mxu0 %v1649
        %2555 = vmatpush.msra.mxu0 %v1648
        %2556 = vmatpush.msra.mxu0 %v1647
        %2557 = vmatpush.msra.mxu0 %v1646
        %2558 = vmatpush.msra.mxu0 %v1645
        %2559 = vmatpush.msra.mxu0 %v1644
        %2560 = vmatpush.msra.mxu0 %v1643
        %2561 = vmatpush.msra.mxu0 %v1642
        %2562 = vmatpush.msra.mxu0 %v1641
        %2563 = vmatpush.msra.mxu0 %v1640
        %2564 = vmatpush.msra.mxu0 %v1639
        %2565 = vmatpush.msra.mxu0 %v1638
        %2566 = vmatpush.msra.mxu0 %v1637
        %2567 = vmatpush.msra.mxu0 %v1636
        %2568 = vmatpush.msra.mxu0 %v1635
        %2569 = vmatpush.msra.mxu0 %v1634
        %2570 = vmatmul.f32.gmra.mxu0 %v1226
        %v2571 = vpop.f32.mrf.mxu0
        %v2572 = vadd.f32 %v2459, %v2571
        %2573 = vmatmul.f32.gmra.mxu0 %v1235
        %v2574 = vpop.f32.mrf.mxu0
        %v2575 = vadd.f32 %v2462, %v2574
        %2576 = vmatmul.f32.gmra.mxu0 %v1244
        %v2577 = vpop.f32.mrf.mxu0
        %v2578 = vadd.f32 %v2465, %v2577
        %2579 = vmatmul.f32.gmra.mxu0 %v1253
        %v2580 = vpop.f32.mrf.mxu0
        %v2581 = vadd.f32 %v2468, %v2580
        %2582 = vmatmul.f32.gmra.mxu0 %v1262
        %v2583 = vpop.f32.mrf.mxu0
        %v2584 = vadd.f32 %v2471, %v2583
        %2585 = vmatmul.f32.gmra.mxu0 %v1271
        %v2586 = vpop.f32.mrf.mxu0
        %v2587 = vadd.f32 %v2474, %v2586
        %2588 = vmatmul.f32.gmra.mxu0 %v1280
        %v2589 = vpop.f32.mrf.mxu0
        %v2590 = vadd.f32 %v2477, %v2589
        %2591 = vmatmul.f32.gmra.mxu0 %v1289
        %v2592 = vpop.f32.mrf.mxu0
        %v2593 = vadd.f32 %v2480, %v2592
        %2594 = vmatmul.f32.gmra.mxu0 %v1298
        %v2595 = vpop.f32.mrf.mxu0
        %v2596 = vadd.f32 %v2483, %v2595
        %2597 = vmatmul.f32.gmra.mxu0 %v1307
        %v2598 = vpop.f32.mrf.mxu0
        %v2599 = vadd.f32 %v2486, %v2598
        %2600 = vmatmul.f32.gmra.mxu0 %v1316
        %v2601 = vpop.f32.mrf.mxu0
        %v2602 = vadd.f32 %v2489, %v2601
        %2603 = vmatmul.f32.gmra.mxu0 %v1325
        %v2604 = vpop.f32.mrf.mxu0
        %v2605 = vadd.f32 %v2492, %v2604
        %2606 = vmatmul.f32.gmra.mxu0 %v1334
        %v2607 = vpop.f32.mrf.mxu0
        %v2608 = vadd.f32 %v2495, %v2607
        %2609 = vmatmul.f32.gmra.mxu0 %v1343
        %v2610 = vpop.f32.mrf.mxu0
        %v2611 = vadd.f32 %v2498, %v2610
        %2612 = vmatmul.f32.gmra.mxu0 %v1352
        %v2613 = vpop.f32.mrf.mxu0
        %v2614 = vadd.f32 %v2501, %v2613
        %2615 = vmatmul.f32.gmra.mxu0 %v1361
        %v2616 = vpop.f32.mrf.mxu0
        %v2617 = vadd.f32 %v2504, %v2616
        %2618 = vmatmul.f32.gmra.mxu0 %v1370
        %v2619 = vpop.f32.mrf.mxu0
        %v2620 = vadd.f32 %v2507, %v2619
        %2621 = vmatmul.f32.gmra.mxu0 %v1379
        %v2622 = vpop.f32.mrf.mxu0
        %v2623 = vadd.f32 %v2510, %v2622
        %2624 = vmatmul.f32.gmra.mxu0 %v1388
        %v2625 = vpop.f32.mrf.mxu0
        %v2626 = vadd.f32 %v2513, %v2625
        %2627 = vmatmul.f32.gmra.mxu0 %v1397
        %v2628 = vpop.f32.mrf.mxu0
        %v2629 = vadd.f32 %v2516, %v2628
        %2630 = vmatmul.f32.gmra.mxu0 %v1406
        %v2631 = vpop.f32.mrf.mxu0
        %v2632 = vadd.f32 %v2519, %v2631
        %2633 = vmatmul.f32.gmra.mxu0 %v1415
        %v2634 = vpop.f32.mrf.mxu0
        %v2635 = vadd.f32 %v2522, %v2634
        %2636 = vmatmul.f32.gmra.mxu0 %v1424
        %v2637 = vpop.f32.mrf.mxu0
        %v2638 = vadd.f32 %v2525, %v2637
        %2639 = vmatmul.f32.gmra.mxu0 %v1433
        %v2640 = vpop.f32.mrf.mxu0
        %v2641 = vadd.f32 %v2528, %v2640
        %2642 = vmatmul.f32.gmra.mxu0 %v1442
        %v2643 = vpop.f32.mrf.mxu0
        %v2644 = vadd.f32 %v2531, %v2643
        %2645 = vmatmul.f32.gmra.mxu0 %v1451
        %v2646 = vpop.f32.mrf.mxu0
        %v2647 = vadd.f32 %v2534, %v2646
        %2648 = vmatmul.f32.gmra.mxu0 %v1460
        %v2649 = vpop.f32.mrf.mxu0
        %v2650 = vadd.f32 %v2537, %v2649
        %2651 = vmatmul.f32.gmra.mxu0 %v1469
        %v2652 = vpop.f32.mrf.mxu0
        %v2653 = vadd.f32 %v2540, %v2652
        %2654 = vmatmul.f32.gmra.mxu0 %v1478
        %v2655 = vpop.f32.mrf.mxu0
        %v2656 = vadd.f32 %v2543, %v2655
        %2657 = vmatmul.f32.gmra.mxu0 %v1487
        %v2658 = vpop.f32.mrf.mxu0
        %v2659 = vadd.f32 %v2546, %v2658
        %2660 = vmatmul.f32.gmra.mxu0 %v1496
        %v2661 = vpop.f32.mrf.mxu0
        %v2662 = vadd.f32 %v2549, %v2661
        %2663 = vmatmul.f32.gmra.mxu0 %v1505
        %v2664 = vpop.f32.mrf.mxu0
        %v2665 = vadd.f32 %v2552, %v2664
        %2666 = vdwg.mxu0
        %v2667 = vld [vmem:[%s3] sm:$0x1]
        %v2669 = vperm.slane %v2667, 0
        %v2671 = vmul.f32 %v2572, %v2669
        %v2672 = vmul.f32 %v2575, %v2669
        %v2673 = vmul.f32 %v2578, %v2669
        %v2674 = vmul.f32 %v2581, %v2669
        %v2675 = vmul.f32 %v2584, %v2669
        %v2676 = vmul.f32 %v2587, %v2669
        %v2677 = vmul.f32 %v2590, %v2669
        %v2678 = vmul.f32 %v2593, %v2669
        %v2679 = vmul.f32 %v2596, %v2669
        %v2680 = vmul.f32 %v2599, %v2669
        %v2681 = vmul.f32 %v2602, %v2669
        %v2682 = vmul.f32 %v2605, %v2669
        %v2683 = vmul.f32 %v2608, %v2669
        %v2684 = vmul.f32 %v2611, %v2669
        %v2685 = vmul.f32 %v2614, %v2669
        %v2686 = vmul.f32 %v2617, %v2669
        %v2687 = vmul.f32 %v2620, %v2669
        %v2688 = vmul.f32 %v2623, %v2669
        %v2689 = vmul.f32 %v2626, %v2669
        %v2690 = vmul.f32 %v2629, %v2669
        %v2691 = vmul.f32 %v2632, %v2669
        %v2692 = vmul.f32 %v2635, %v2669
        %v2693 = vmul.f32 %v2638, %v2669
        %v2694 = vmul.f32 %v2641, %v2669
        %v2695 = vmul.f32 %v2644, %v2669
        %v2696 = vmul.f32 %v2647, %v2669
        %v2697 = vmul.f32 %v2650, %v2669
        %v2698 = vmul.f32 %v2653, %v2669
        %v2699 = vmul.f32 %v2656, %v2669
        %v2700 = vmul.f32 %v2659, %v2669
        %v2701 = vmul.f32 %v2662, %v2669
        %v2702 = vmul.f32 %v2665, %v2669
        %v2703 = vld [vmem:[%s4] sm:$0x1]
        %v2705 = vperm.slane %v2703, 0
        %v2707 = vadd.f32 %v2671, %v2705
        %v2708 = vadd.f32 %v2672, %v2705
        %v2709 = vadd.f32 %v2673, %v2705
        %v2710 = vadd.f32 %v2674, %v2705
        %v2711 = vadd.f32 %v2675, %v2705
        %v2712 = vadd.f32 %v2676, %v2705
        %v2713 = vadd.f32 %v2677, %v2705
        %v2714 = vadd.f32 %v2678, %v2705
        %v2715 = vadd.f32 %v2679, %v2705
        %v2716 = vadd.f32 %v2680, %v2705
        %v2717 = vadd.f32 %v2681, %v2705
        %v2718 = vadd.f32 %v2682, %v2705
        %v2719 = vadd.f32 %v2683, %v2705
        %v2720 = vadd.f32 %v2684, %v2705
        %v2721 = vadd.f32 %v2685, %v2705
        %v2722 = vadd.f32 %v2686, %v2705
        %v2723 = vadd.f32 %v2687, %v2705
        %v2724 = vadd.f32 %v2688, %v2705
        %v2725 = vadd.f32 %v2689, %v2705
        %v2726 = vadd.f32 %v2690, %v2705
        %v2727 = vadd.f32 %v2691, %v2705
        %v2728 = vadd.f32 %v2692, %v2705
        %v2729 = vadd.f32 %v2693, %v2705
        %v2730 = vadd.f32 %v2694, %v2705
        %v2731 = vadd.f32 %v2695, %v2705
        %v2732 = vadd.f32 %v2696, %v2705
        %v2733 = vadd.f32 %v2697, %v2705
        %v2734 = vadd.f32 %v2698, %v2705
        %v2735 = vadd.f32 %v2699, %v2705
        %v2736 = vadd.f32 %v2700, %v2705
        %v2737 = vadd.f32 %v2701, %v2705
        %v2738 = vadd.f32 %v2702, %v2705
        %v2739 = vmax.f32 %v2707, 0.0
        %v2740 = vmax.f32 %v2708, 0.0
        %v2741 = vmax.f32 %v2709, 0.0
        %v2742 = vmax.f32 %v2710, 0.0
        %v2743 = vmax.f32 %v2711, 0.0
        %v2744 = vmax.f32 %v2712, 0.0
        %v2745 = vmax.f32 %v2713, 0.0
        %v2746 = vmax.f32 %v2714, 0.0
        %v2747 = vmax.f32 %v2715, 0.0
        %v2748 = vmax.f32 %v2716, 0.0
        %v2749 = vmax.f32 %v2717, 0.0
        %v2750 = vmax.f32 %v2718, 0.0
        %v2751 = vmax.f32 %v2719, 0.0
        %v2752 = vmax.f32 %v2720, 0.0
        %v2753 = vmax.f32 %v2721, 0.0
        %v2754 = vmax.f32 %v2722, 0.0
        %v2755 = vmax.f32 %v2723, 0.0
        %v2756 = vmax.f32 %v2724, 0.0
        %v2757 = vmax.f32 %v2725, 0.0
        %v2758 = vmax.f32 %v2726, 0.0
        %v2759 = vmax.f32 %v2727, 0.0
        %v2760 = vmax.f32 %v2728, 0.0
        %v2761 = vmax.f32 %v2729, 0.0
        %v2762 = vmax.f32 %v2730, 0.0
        %v2763 = vmax.f32 %v2731, 0.0
        %v2764 = vmax.f32 %v2732, 0.0
        %v2765 = vmax.f32 %v2733, 0.0
        %v2766 = vmax.f32 %v2734, 0.0
        %v2767 = vmax.f32 %v2735, 0.0
        %v2768 = vmax.f32 %v2736, 0.0
        %v2769 = vmax.f32 %v2737, 0.0
        %v2770 = vmax.f32 %v2738, 0.0
        %2771 = vst.msk [vmem:[#allocation4] sm:$0xff] %vm344, 0.0
        %2772 = vst.msk [vmem:[#allocation4 + $0x8] sm:$0xff] %vm344, 0.0
        %vm2773 = vcmask 517120
        %2774 = vst.msk [vmem:[#allocation4 + $0x10] sm:$0x3] %vm2773, 0.0
        %2775 = vst.msk [vmem:[#allocation4 + $0x18] sm:$0xff] %vm344, 0.0
        %2776 = vst.msk [vmem:[#allocation4 + $0x20] sm:$0xff] %vm344, 0.0
        %2777 = vst.msk [vmem:[#allocation4 + $0x28] sm:$0x3] %vm2773, 0.0
        %2778 = vst.msk [vmem:[#allocation4 + $0x30] sm:$0xff] %vm344, 0.0
        %2779 = vst.msk [vmem:[#allocation4 + $0x38] sm:$0xff] %vm344, 0.0
        %2780 = vst.msk [vmem:[#allocation4 + $0x40] sm:$0x3] %vm2773, 0.0
        %2781 = vst.msk [vmem:[#allocation4 + $0x48] sm:$0xff] %vm344, 0.0
        %2782 = vst.msk [vmem:[#allocation4 + $0x50] sm:$0xff] %vm344, 0.0
        %2783 = vst.msk [vmem:[#allocation4 + $0x58] sm:$0x3] %vm2773, 0.0
        %2784 = vst.msk [vmem:[#allocation4 + $0x60] sm:$0xff] %vm344, 0.0
        %2785 = vst.msk [vmem:[#allocation4 + $0x68] sm:$0xff] %vm344, 0.0
        %2786 = vst.msk [vmem:[#allocation4 + $0x70] sm:$0x3] %vm2773, 0.0
        %2787 = vst.msk [vmem:[#allocation4 + $0x78] sm:$0xff] %vm344, 0.0
        %2788 = vst.msk [vmem:[#allocation4 + $0x80] sm:$0xff] %vm344, 0.0
        %2789 = vst.msk [vmem:[#allocation4 + $0x88] sm:$0x3] %vm2773, 0.0
        %2790 = vst.msk [vmem:[#allocation4 + $0x90] sm:$0xff] %vm344, 0.0
        %2791 = vst.msk [vmem:[#allocation4 + $0x98] sm:$0xff] %vm344, 0.0
        %2792 = vst.msk [vmem:[#allocation4 + $0xa0] sm:$0x3] %vm2773, 0.0
        %2793 = vst.msk [vmem:[#allocation4 + $0xa8] sm:$0xff] %vm344, 0.0
        %2794 = vst.msk [vmem:[#allocation4 + $0xb0] sm:$0xff] %vm344, 0.0
        %2795 = vst.msk [vmem:[#allocation4 + $0xb8] sm:$0x3] %vm2773, 0.0
        %2796 = vst.msk [vmem:[#allocation4 + $0xc0] sm:$0xff] %vm344, 0.0
        %2797 = vst.msk [vmem:[#allocation4 + $0xc8] sm:$0xff] %vm344, 0.0
        %2798 = vst.msk [vmem:[#allocation4 + $0xd0] sm:$0x3] %vm2773, 0.0
        %2799 = vst.msk [vmem:[#allocation4 + $0xd8] sm:$0xff] %vm344, 0.0
        %2800 = vst.msk [vmem:[#allocation4 + $0xe0] sm:$0xff] %vm344, 0.0
        %2801 = vst.msk [vmem:[#allocation4 + $0xe8] sm:$0x3] %vm2773, 0.0
        %2802 = vst.msk [vmem:[#allocation4 + $0xf0] sm:$0xff] %vm344, 0.0
        %2803 = vst.msk [vmem:[#allocation4 + $0xf8] sm:$0xff] %vm344, 0.0
        %2804 = vst.msk [vmem:[#allocation4 + $0x100] sm:$0x3] %vm2773, 0.0
        %2805 = vst.msk [vmem:[#allocation4 + $0x108] sm:$0xff] %vm344, 0.0
        %2806 = vst.msk [vmem:[#allocation4 + $0x110] sm:$0xff] %vm344, 0.0
        %2807 = vst.msk [vmem:[#allocation4 + $0x118] sm:$0x3] %vm2773, 0.0
        %2808 = vst.msk [vmem:[#allocation4 + $0x120] sm:$0xff] %vm344, 0.0
        %2809 = vst.msk [vmem:[#allocation4 + $0x128] sm:$0xff] %vm344, 0.0
        %2810 = vst.msk [vmem:[#allocation4 + $0x130] sm:$0x3] %vm2773, 0.0
        %2811 = vst.msk [vmem:[#allocation4 + $0x138] sm:$0xff] %vm344, 0.0
        %2812 = vst.msk [vmem:[#allocation4 + $0x140] sm:$0xff] %vm344, 0.0
        %2813 = vst.msk [vmem:[#allocation4 + $0x148] sm:$0x3] %vm2773, 0.0
        %2814 = vst.msk [vmem:[#allocation4 + $0x150] sm:$0xff] %vm344, 0.0
        %2815 = vst.msk [vmem:[#allocation4 + $0x158] sm:$0xff] %vm344, 0.0
        %2816 = vst.msk [vmem:[#allocation4 + $0x160] sm:$0x3] %vm2773, 0.0
        %2817 = vst.msk [vmem:[#allocation4 + $0x168] sm:$0xff] %vm344, 0.0
        %2818 = vst.msk [vmem:[#allocation4 + $0x170] sm:$0xff] %vm344, 0.0
        %2819 = vst.msk [vmem:[#allocation4 + $0x178] sm:$0x3] %vm2773, 0.0
        %2820 = vst.msk [vmem:[#allocation4 + $0x180] sm:$0xff] %vm344, 0.0
        %2821 = vst.msk [vmem:[#allocation4 + $0x188] sm:$0xff] %vm344, 0.0
        %2822 = vst.msk [vmem:[#allocation4 + $0x190] sm:$0x3] %vm2773, 0.0
        %2823 = vst.msk [vmem:[#allocation4 + $0x198] sm:$0xff] %vm344, 0.0
        %2824 = vst.msk [vmem:[#allocation4 + $0x1a0] sm:$0xff] %vm344, 0.0
        %2825 = vst.msk [vmem:[#allocation4 + $0x1a8] sm:$0x3] %vm2773, 0.0
        %s2826 = scalar_lea.vmem [#allocation4], 24
        %2827 = vst.msk [vmem:[%s2826 + $0x1] sm:$0xff] %vm344, %v2739
        %2828 = vst.msk [vmem:[%s2826 + $0x9] sm:$0xff] %vm344, %v2740
        %2829 = vst.msk [vmem:[%s2826 + $0x19] sm:$0xff] %vm344, %v2741
        %2830 = vst.msk [vmem:[%s2826 + $0x21] sm:$0xff] %vm344, %v2742
        %2831 = vst.msk [vmem:[%s2826 + $0x31] sm:$0xff] %vm344, %v2743
        %2832 = vst.msk [vmem:[%s2826 + $0x39] sm:$0xff] %vm344, %v2744
        %2833 = vst.msk [vmem:[%s2826 + $0x49] sm:$0xff] %vm344, %v2745
        %2834 = vst.msk [vmem:[%s2826 + $0x51] sm:$0xff] %vm344, %v2746
        %2835 = vst.msk [vmem:[%s2826 + $0x61] sm:$0xff] %vm344, %v2747
        %2836 = vst.msk [vmem:[%s2826 + $0x69] sm:$0xff] %vm344, %v2748
        %2837 = vst.msk [vmem:[%s2826 + $0x79] sm:$0xff] %vm344, %v2749
        %2838 = vst.msk [vmem:[%s2826 + $0x81] sm:$0xff] %vm344, %v2750
        %2839 = vst.msk [vmem:[%s2826 + $0x91] sm:$0xff] %vm344, %v2751
        %2840 = vst.msk [vmem:[%s2826 + $0x99] sm:$0xff] %vm344, %v2752
        %2841 = vst.msk [vmem:[%s2826 + $0xa9] sm:$0xff] %vm344, %v2753
        %2842 = vst.msk [vmem:[%s2826 + $0xb1] sm:$0xff] %vm344, %v2754
        %2843 = vst.msk [vmem:[%s2826 + $0xc1] sm:$0xff] %vm344, %v2755
        %2844 = vst.msk [vmem:[%s2826 + $0xc9] sm:$0xff] %vm344, %v2756
        %2845 = vst.msk [vmem:[%s2826 + $0xd9] sm:$0xff] %vm344, %v2757
        %2846 = vst.msk [vmem:[%s2826 + $0xe1] sm:$0xff] %vm344, %v2758
        %2847 = vst.msk [vmem:[%s2826 + $0xf1] sm:$0xff] %vm344, %v2759
        %2848 = vst.msk [vmem:[%s2826 + $0xf9] sm:$0xff] %vm344, %v2760
        %2849 = vst.msk [vmem:[%s2826 + $0x109] sm:$0xff] %vm344, %v2761
        %2850 = vst.msk [vmem:[%s2826 + $0x111] sm:$0xff] %vm344, %v2762
        %2851 = vst.msk [vmem:[%s2826 + $0x121] sm:$0xff] %vm344, %v2763
        %2852 = vst.msk [vmem:[%s2826 + $0x129] sm:$0xff] %vm344, %v2764
        %2853 = vst.msk [vmem:[%s2826 + $0x139] sm:$0xff] %vm344, %v2765
        %2854 = vst.msk [vmem:[%s2826 + $0x141] sm:$0xff] %vm344, %v2766
        %2855 = vst.msk [vmem:[%s2826 + $0x151] sm:$0xff] %vm344, %v2767
        %2856 = vst.msk [vmem:[%s2826 + $0x159] sm:$0xff] %vm344, %v2768
        %2857 = vst.msk [vmem:[%s2826 + $0x169] sm:$0xff] %vm344, %v2769
        %2858 = vst.msk [vmem:[%s2826 + $0x171] sm:$0xff] %vm344, %v2770
        %v2859 = vld [vmem:[#allocation4] sm:$0xff]
        %v2860 = vld [vmem:[#allocation4 + $0x8] sm:$0xff]
        %v2861 = vld [vmem:[#allocation4 + $0x18] sm:$0xff]
        %v2862 = vld [vmem:[#allocation4 + $0x20] sm:$0xff]
        %v2863 = vld [vmem:[#allocation4 + $0x30] sm:$0xff]
        %v2864 = vld [vmem:[#allocation4 + $0x38] sm:$0xff]
        %v2865 = vld [vmem:[#allocation4 + $0x48] sm:$0xff]
        %v2866 = vld [vmem:[#allocation4 + $0x50] sm:$0xff]
        %v2867 = vld [vmem:[#allocation4 + $0x60] sm:$0xff]
        %v2868 = vld [vmem:[#allocation4 + $0x68] sm:$0xff]
        %v2869 = vld [vmem:[#allocation4 + $0x78] sm:$0xff]
        %v2870 = vld [vmem:[#allocation4 + $0x80] sm:$0xff]
        %v2871 = vld [vmem:[#allocation4 + $0x90] sm:$0xff]
        %v2872 = vld [vmem:[#allocation4 + $0x98] sm:$0xff]
        %v2873 = vld [vmem:[#allocation4 + $0xa8] sm:$0xff]
        %v2874 = vld [vmem:[#allocation4 + $0xb0] sm:$0xff]
        %v2875 = vld [vmem:[#allocation4 + $0xc0] sm:$0xff]
        %v2876 = vld [vmem:[#allocation4 + $0xc8] sm:$0xff]
        %v2877 = vld [vmem:[#allocation4 + $0xd8] sm:$0xff]
        %v2878 = vld [vmem:[#allocation4 + $0xe0] sm:$0xff]
        %v2879 = vld [vmem:[#allocation4 + $0xf0] sm:$0xff]
        %v2880 = vld [vmem:[#allocation4 + $0xf8] sm:$0xff]
        %v2881 = vld [vmem:[#allocation4 + $0x108] sm:$0xff]
        %v2882 = vld [vmem:[#allocation4 + $0x110] sm:$0xff]
        %v2883 = vld [vmem:[#allocation4 + $0x120] sm:$0xff]
        %v2884 = vld [vmem:[#allocation4 + $0x128] sm:$0xff]
        %v2885 = vld [vmem:[#allocation4 + $0x138] sm:$0xff]
        %v2886 = vld [vmem:[#allocation4 + $0x140] sm:$0xff]
        %v2887 = vld [vmem:[#allocation4 + $0x150] sm:$0xff]
        %v2888 = vld [vmem:[#allocation4 + $0x158] sm:$0xff]
        %v2889 = vld [vmem:[#allocation4 + $0x168] sm:$0xff]
        %v2890 = vld [vmem:[#allocation4 + $0x170] sm:$0xff]
        %2891 = vst.msk [vmem:[#allocation5] sm:$0xff] %vm344, %v2859
        %2892 = vst.msk [vmem:[#allocation5 + $0x28] sm:$0xff] %vm344, %v2860
        %2893 = vst.msk [vmem:[#allocation5 + $0x50] sm:$0xff] %vm344, %v2861
        %2894 = vst.msk [vmem:[#allocation5 + $0x78] sm:$0xff] %vm344, %v2862
        %2895 = vst.msk [vmem:[#allocation5 + $0xa0] sm:$0xff] %vm344, %v2863
        %2896 = vst.msk [vmem:[#allocation5 + $0xc8] sm:$0xff] %vm344, %v2864
        %2897 = vst.msk [vmem:[#allocation5 + $0xf0] sm:$0xff] %vm344, %v2865
        %2898 = vst.msk [vmem:[#allocation5 + $0x118] sm:$0xff] %vm344, %v2866
        %2899 = vst.msk [vmem:[#allocation5 + $0x140] sm:$0xff] %vm344, %v2867
        %2900 = vst.msk [vmem:[#allocation5 + $0x168] sm:$0xff] %vm344, %v2868
        %2901 = vst.msk [vmem:[#allocation5 + $0x190] sm:$0xff] %vm344, %v2869
        %2902 = vst.msk [vmem:[#allocation5 + $0x1b8] sm:$0xff] %vm344, %v2870
        %2903 = vst.msk [vmem:[#allocation5 + $0x1e0] sm:$0xff] %vm344, %v2871
        %2904 = vst.msk [vmem:[#allocation5 + $0x208] sm:$0xff] %vm344, %v2872
        %2905 = vst.msk [vmem:[#allocation5 + $0x230] sm:$0xff] %vm344, %v2873
        %2906 = vst.msk [vmem:[#allocation5 + $0x258] sm:$0xff] %vm344, %v2874
        %2907 = vst.msk [vmem:[#allocation5 + $0x280] sm:$0xff] %vm344, %v2875
        %2908 = vst.msk [vmem:[#allocation5 + $0x2a8] sm:$0xff] %vm344, %v2876
        %2909 = vst.msk [vmem:[#allocation5 + $0x2d0] sm:$0xff] %vm344, %v2877
        %2910 = vst.msk [vmem:[#allocation5 + $0x2f8] sm:$0xff] %vm344, %v2878
        %2911 = vst.msk [vmem:[#allocation5 + $0x320] sm:$0xff] %vm344, %v2879
        %2912 = vst.msk [vmem:[#allocation5 + $0x348] sm:$0xff] %vm344, %v2880
        %2913 = vst.msk [vmem:[#allocation5 + $0x370] sm:$0xff] %vm344, %v2881
        %2914 = vst.msk [vmem:[#allocation5 + $0x398] sm:$0xff] %vm344, %v2882
        %2915 = vst.msk [vmem:[#allocation5 + $0x3c0] sm:$0xff] %vm344, %v2883
        %2916 = vst.msk [vmem:[#allocation5 + $0x3e8] sm:$0xff] %vm344, %v2884
        %2917 = vst.msk [vmem:[#allocation5 + $0x410] sm:$0xff] %vm344, %v2885
        %2918 = vst.msk [vmem:[#allocation5 + $0x438] sm:$0xff] %vm344, %v2886
        %2919 = vst.msk [vmem:[#allocation5 + $0x460] sm:$0xff] %vm344, %v2887
        %2920 = vst.msk [vmem:[#allocation5 + $0x488] sm:$0xff] %vm344, %v2888
        %2921 = vst.msk [vmem:[#allocation5 + $0x4b0] sm:$0xff] %vm344, %v2889
        %2922 = vst.msk [vmem:[#allocation5 + $0x4d8] sm:$0xff] %vm344, %v2890
        %v2923 = vld [vmem:[#allocation4 + $0x1] sm:$0xff]
        %v2924 = vld [vmem:[#allocation4 + $0x9] sm:$0xff]
        %v2925 = vld [vmem:[#allocation4 + $0x19] sm:$0xff]
        %v2926 = vld [vmem:[#allocation4 + $0x21] sm:$0xff]
        %v2927 = vld [vmem:[#allocation4 + $0x31] sm:$0xff]
        %v2928 = vld [vmem:[#allocation4 + $0x39] sm:$0xff]
        %v2929 = vld [vmem:[#allocation4 + $0x49] sm:$0xff]
        %v2930 = vld [vmem:[#allocation4 + $0x51] sm:$0xff]
        %v2931 = vld [vmem:[#allocation4 + $0x61] sm:$0xff]
        %v2932 = vld [vmem:[#allocation4 + $0x69] sm:$0xff]
        %v2933 = vld [vmem:[#allocation4 + $0x79] sm:$0xff]
        %v2934 = vld [vmem:[#allocation4 + $0x81] sm:$0xff]
        %v2935 = vld [vmem:[#allocation4 + $0x91] sm:$0xff]
        %v2936 = vld [vmem:[#allocation4 + $0x99] sm:$0xff]
        %v2937 = vld [vmem:[#allocation4 + $0xa9] sm:$0xff]
        %v2938 = vld [vmem:[#allocation4 + $0xb1] sm:$0xff]
        %v2939 = vld [vmem:[#allocation4 + $0xc1] sm:$0xff]
        %v2940 = vld [vmem:[#allocation4 + $0xc9] sm:$0xff]
        %v2941 = vld [vmem:[#allocation4 + $0xd9] sm:$0xff]
        %v2942 = vld [vmem:[#allocation4 + $0xe1] sm:$0xff]
        %v2943 = vld [vmem:[#allocation4 + $0xf1] sm:$0xff]
        %v2944 = vld [vmem:[#allocation4 + $0xf9] sm:$0xff]
        %v2945 = vld [vmem:[#allocation4 + $0x109] sm:$0xff]
        %v2946 = vld [vmem:[#allocation4 + $0x111] sm:$0xff]
        %v2947 = vld [vmem:[#allocation4 + $0x121] sm:$0xff]
        %v2948 = vld [vmem:[#allocation4 + $0x129] sm:$0xff]
        %v2949 = vld [vmem:[#allocation4 + $0x139] sm:$0xff]
        %v2950 = vld [vmem:[#allocation4 + $0x141] sm:$0xff]
        %v2951 = vld [vmem:[#allocation4 + $0x151] sm:$0xff]
        %v2952 = vld [vmem:[#allocation4 + $0x159] sm:$0xff]
        %v2953 = vld [vmem:[#allocation4 + $0x169] sm:$0xff]
        %v2954 = vld [vmem:[#allocation4 + $0x171] sm:$0xff]
        %2987 = vrot.lane.b32.xlu0 %v2923, 64
        %v2988 = vpop.permute.xlu0 %2987
        %2989 = vrot.lane.b32.xlu0 %v2924, 64
        %v2990 = vpop.permute.xlu0 %2989
        %2991 = vrot.lane.b32.xlu0 %v2925, 64
        %v2992 = vpop.permute.xlu0 %2991
        %2993 = vrot.lane.b32.xlu0 %v2926, 64
        %v2994 = vpop.permute.xlu0 %2993
        %2995 = vrot.lane.b32.xlu0 %v2927, 64
        %v2996 = vpop.permute.xlu0 %2995
        %2997 = vrot.lane.b32.xlu0 %v2928, 64
        %v2998 = vpop.permute.xlu0 %2997
        %2999 = vrot.lane.b32.xlu0 %v2929, 64
        %v3000 = vpop.permute.xlu0 %2999
        %3001 = vrot.lane.b32.xlu0 %v2930, 64
        %v3002 = vpop.permute.xlu0 %3001
        %3003 = vrot.lane.b32.xlu0 %v2931, 64
        %v3004 = vpop.permute.xlu0 %3003
        %3005 = vrot.lane.b32.xlu0 %v2932, 64
        %v3006 = vpop.permute.xlu0 %3005
        %3007 = vrot.lane.b32.xlu0 %v2933, 64
        %v3008 = vpop.permute.xlu0 %3007
        %3009 = vrot.lane.b32.xlu0 %v2934, 64
        %v3010 = vpop.permute.xlu0 %3009
        %3011 = vrot.lane.b32.xlu0 %v2935, 64
        %v3012 = vpop.permute.xlu0 %3011
        %3013 = vrot.lane.b32.xlu0 %v2936, 64
        %v3014 = vpop.permute.xlu0 %3013
        %3015 = vrot.lane.b32.xlu0 %v2937, 64
        %v3016 = vpop.permute.xlu0 %3015
        %3017 = vrot.lane.b32.xlu0 %v2938, 64
        %v3018 = vpop.permute.xlu0 %3017
        %3019 = vrot.lane.b32.xlu0 %v2939, 64
        %v3020 = vpop.permute.xlu0 %3019
        %3021 = vrot.lane.b32.xlu0 %v2940, 64
        %v3022 = vpop.permute.xlu0 %3021
        %3023 = vrot.lane.b32.xlu0 %v2941, 64
        %v3024 = vpop.permute.xlu0 %3023
        %3025 = vrot.lane.b32.xlu0 %v2942, 64
        %v3026 = vpop.permute.xlu0 %3025
        %3027 = vrot.lane.b32.xlu0 %v2943, 64
        %v3028 = vpop.permute.xlu0 %3027
        %3029 = vrot.lane.b32.xlu0 %v2944, 64
        %v3030 = vpop.permute.xlu0 %3029
        %3031 = vrot.lane.b32.xlu0 %v2945, 64
        %v3032 = vpop.permute.xlu0 %3031
        %3033 = vrot.lane.b32.xlu0 %v2946, 64
        %v3034 = vpop.permute.xlu0 %3033
        %3035 = vrot.lane.b32.xlu0 %v2947, 64
        %v3036 = vpop.permute.xlu0 %3035
        %3037 = vrot.lane.b32.xlu0 %v2948, 64
        %v3038 = vpop.permute.xlu0 %3037
        %3039 = vrot.lane.b32.xlu0 %v2949, 64
        %v3040 = vpop.permute.xlu0 %3039
        %3041 = vrot.lane.b32.xlu0 %v2950, 64
        %v3042 = vpop.permute.xlu0 %3041
        %3043 = vrot.lane.b32.xlu0 %v2951, 64
        %v3044 = vpop.permute.xlu0 %3043
        %3045 = vrot.lane.b32.xlu0 %v2952, 64
        %v3046 = vpop.permute.xlu0 %3045
        %3047 = vrot.lane.b32.xlu0 %v2953, 64
        %v3048 = vpop.permute.xlu0 %3047
        %3049 = vrot.lane.b32.xlu0 %v2954, 64
        %v3050 = vpop.permute.xlu0 %3049
        %vm3083 = vcmask 1048064
        %3084 = vst.msk [vmem:[#allocation5] sm:$0xff] %vm3083, %v2988
        %3085 = vst.msk [vmem:[#allocation5 + $0x28] sm:$0xff] %vm3083, %v2990
        %3086 = vst.msk [vmem:[#allocation5 + $0x50] sm:$0xff] %vm3083, %v2992
        %3087 = vst.msk [vmem:[#allocation5 + $0x78] sm:$0xff] %vm3083, %v2994
        %3088 = vst.msk [vmem:[#allocation5 + $0xa0] sm:$0xff] %vm3083, %v2996
        %3089 = vst.msk [vmem:[#allocation5 + $0xc8] sm:$0xff] %vm3083, %v2998
        %3090 = vst.msk [vmem:[#allocation5 + $0xf0] sm:$0xff] %vm3083, %v3000
        %3091 = vst.msk [vmem:[#allocation5 + $0x118] sm:$0xff] %vm3083, %v3002
        %3092 = vst.msk [vmem:[#allocation5 + $0x140] sm:$0xff] %vm3083, %v3004
        %3093 = vst.msk [vmem:[#allocation5 + $0x168] sm:$0xff] %vm3083, %v3006
        %3094 = vst.msk [vmem:[#allocation5 + $0x190] sm:$0xff] %vm3083, %v3008
        %3095 = vst.msk [vmem:[#allocation5 + $0x1b8] sm:$0xff] %vm3083, %v3010
        %3096 = vst.msk [vmem:[#allocation5 + $0x1e0] sm:$0xff] %vm3083, %v3012
        %3097 = vst.msk [vmem:[#allocation5 + $0x208] sm:$0xff] %vm3083, %v3014
        %3098 = vst.msk [vmem:[#allocation5 + $0x230] sm:$0xff] %vm3083, %v3016
        %3099 = vst.msk [vmem:[#allocation5 + $0x258] sm:$0xff] %vm3083, %v3018
        %3100 = vst.msk [vmem:[#allocation5 + $0x280] sm:$0xff] %vm3083, %v3020
        %3101 = vst.msk [vmem:[#allocation5 + $0x2a8] sm:$0xff] %vm3083, %v3022
        %3102 = vst.msk [vmem:[#allocation5 + $0x2d0] sm:$0xff] %vm3083, %v3024
        %3103 = vst.msk [vmem:[#allocation5 + $0x2f8] sm:$0xff] %vm3083, %v3026
        %3104 = vst.msk [vmem:[#allocation5 + $0x320] sm:$0xff] %vm3083, %v3028
        %3105 = vst.msk [vmem:[#allocation5 + $0x348] sm:$0xff] %vm3083, %v3030
        %3106 = vst.msk [vmem:[#allocation5 + $0x370] sm:$0xff] %vm3083, %v3032
        %3107 = vst.msk [vmem:[#allocation5 + $0x398] sm:$0xff] %vm3083, %v3034
        %3108 = vst.msk [vmem:[#allocation5 + $0x3c0] sm:$0xff] %vm3083, %v3036
        %3109 = vst.msk [vmem:[#allocation5 + $0x3e8] sm:$0xff] %vm3083, %v3038
        %3110 = vst.msk [vmem:[#allocation5 + $0x410] sm:$0xff] %vm3083, %v3040
        %3111 = vst.msk [vmem:[#allocation5 + $0x438] sm:$0xff] %vm3083, %v3042
        %3112 = vst.msk [vmem:[#allocation5 + $0x460] sm:$0xff] %vm3083, %v3044
        %3113 = vst.msk [vmem:[#allocation5 + $0x488] sm:$0xff] %vm3083, %v3046
        %3114 = vst.msk [vmem:[#allocation5 + $0x4b0] sm:$0xff] %vm3083, %v3048
        %3115 = vst.msk [vmem:[#allocation5 + $0x4d8] sm:$0xff] %vm3083, %v3050
        %v3116 = vld [vmem:[#allocation4 + $0x2] sm:$0xff]
        %v3117 = vld [vmem:[#allocation4 + $0xa] sm:$0xff]
        %v3118 = vld [vmem:[#allocation4 + $0x1a] sm:$0xff]
        %v3119 = vld [vmem:[#allocation4 + $0x22] sm:$0xff]
        %v3120 = vld [vmem:[#allocation4 + $0x32] sm:$0xff]
        %v3121 = vld [vmem:[#allocation4 + $0x3a] sm:$0xff]
        %v3122 = vld [vmem:[#allocation4 + $0x4a] sm:$0xff]
        %v3123 = vld [vmem:[#allocation4 + $0x52] sm:$0xff]
        %v3124 = vld [vmem:[#allocation4 + $0x62] sm:$0xff]
        %v3125 = vld [vmem:[#allocation4 + $0x6a] sm:$0xff]
        %v3126 = vld [vmem:[#allocation4 + $0x7a] sm:$0xff]
        %v3127 = vld [vmem:[#allocation4 + $0x82] sm:$0xff]
        %v3128 = vld [vmem:[#allocation4 + $0x92] sm:$0xff]
        %v3129 = vld [vmem:[#allocation4 + $0x9a] sm:$0xff]
        %v3130 = vld [vmem:[#allocation4 + $0xaa] sm:$0xff]
        %v3131 = vld [vmem:[#allocation4 + $0xb2] sm:$0xff]
        %v3132 = vld [vmem:[#allocation4 + $0xc2] sm:$0xff]
        %v3133 = vld [vmem:[#allocation4 + $0xca] sm:$0xff]
        %v3134 = vld [vmem:[#allocation4 + $0xda] sm:$0xff]
        %v3135 = vld [vmem:[#allocation4 + $0xe2] sm:$0xff]
        %v3136 = vld [vmem:[#allocation4 + $0xf2] sm:$0xff]
        %v3137 = vld [vmem:[#allocation4 + $0xfa] sm:$0xff]
        %v3138 = vld [vmem:[#allocation4 + $0x10a] sm:$0xff]
        %v3139 = vld [vmem:[#allocation4 + $0x112] sm:$0xff]
        %v3140 = vld [vmem:[#allocation4 + $0x122] sm:$0xff]
        %v3141 = vld [vmem:[#allocation4 + $0x12a] sm:$0xff]
        %v3142 = vld [vmem:[#allocation4 + $0x13a] sm:$0xff]
        %v3143 = vld [vmem:[#allocation4 + $0x142] sm:$0xff]
        %v3144 = vld [vmem:[#allocation4 + $0x152] sm:$0xff]
        %v3145 = vld [vmem:[#allocation4 + $0x15a] sm:$0xff]
        %v3146 = vld [vmem:[#allocation4 + $0x16a] sm:$0xff]
        %v3147 = vld [vmem:[#allocation4 + $0x172] sm:$0xff]
        %3148 = vst.msk [vmem:[#allocation5 + $0x8] sm:$0xff] %vm344, %v3116
        %3149 = vst.msk [vmem:[#allocation5 + $0x30] sm:$0xff] %vm344, %v3117
        %3150 = vst.msk [vmem:[#allocation5 + $0x58] sm:$0xff] %vm344, %v3118
        %3151 = vst.msk [vmem:[#allocation5 + $0x80] sm:$0xff] %vm344, %v3119
        %3152 = vst.msk [vmem:[#allocation5 + $0xa8] sm:$0xff] %vm344, %v3120
        %3153 = vst.msk [vmem:[#allocation5 + $0xd0] sm:$0xff] %vm344, %v3121
        %3154 = vst.msk [vmem:[#allocation5 + $0xf8] sm:$0xff] %vm344, %v3122
        %3155 = vst.msk [vmem:[#allocation5 + $0x120] sm:$0xff] %vm344, %v3123
        %3156 = vst.msk [vmem:[#allocation5 + $0x148] sm:$0xff] %vm344, %v3124
        %3157 = vst.msk [vmem:[#allocation5 + $0x170] sm:$0xff] %vm344, %v3125
        %3158 = vst.msk [vmem:[#allocation5 + $0x198] sm:$0xff] %vm344, %v3126
        %3159 = vst.msk [vmem:[#allocation5 + $0x1c0] sm:$0xff] %vm344, %v3127
        %3160 = vst.msk [vmem:[#allocation5 + $0x1e8] sm:$0xff] %vm344, %v3128
        %3161 = vst.msk [vmem:[#allocation5 + $0x210] sm:$0xff] %vm344, %v3129
        %3162 = vst.msk [vmem:[#allocation5 + $0x238] sm:$0xff] %vm344, %v3130
        %3163 = vst.msk [vmem:[#allocation5 + $0x260] sm:$0xff] %vm344, %v3131
        %3164 = vst.msk [vmem:[#allocation5 + $0x288] sm:$0xff] %vm344, %v3132
        %3165 = vst.msk [vmem:[#allocation5 + $0x2b0] sm:$0xff] %vm344, %v3133
        %3166 = vst.msk [vmem:[#allocation5 + $0x2d8] sm:$0xff] %vm344, %v3134
        %3167 = vst.msk [vmem:[#allocation5 + $0x300] sm:$0xff] %vm344, %v3135
        %3168 = vst.msk [vmem:[#allocation5 + $0x328] sm:$0xff] %vm344, %v3136
        %3169 = vst.msk [vmem:[#allocation5 + $0x350] sm:$0xff] %vm344, %v3137
        %3170 = vst.msk [vmem:[#allocation5 + $0x378] sm:$0xff] %vm344, %v3138
        %3171 = vst.msk [vmem:[#allocation5 + $0x3a0] sm:$0xff] %vm344, %v3139
        %3172 = vst.msk [vmem:[#allocation5 + $0x3c8] sm:$0xff] %vm344, %v3140
        %3173 = vst.msk [vmem:[#allocation5 + $0x3f0] sm:$0xff] %vm344, %v3141
        %3174 = vst.msk [vmem:[#allocation5 + $0x418] sm:$0xff] %vm344, %v3142
        %3175 = vst.msk [vmem:[#allocation5 + $0x440] sm:$0xff] %vm344, %v3143
        %3176 = vst.msk [vmem:[#allocation5 + $0x468] sm:$0xff] %vm344, %v3144
        %3177 = vst.msk [vmem:[#allocation5 + $0x490] sm:$0xff] %vm344, %v3145
        %3178 = vst.msk [vmem:[#allocation5 + $0x4b8] sm:$0xff] %vm344, %v3146
        %3179 = vst.msk [vmem:[#allocation5 + $0x4e0] sm:$0xff] %vm344, %v3147
        %v3180 = vld [vmem:[%s2826] sm:$0xff]
        %v3181 = vld [vmem:[%s2826 + $0x8] sm:$0xff]
        %v3182 = vld [vmem:[%s2826 + $0x18] sm:$0xff]
        %v3183 = vld [vmem:[%s2826 + $0x20] sm:$0xff]
        %v3184 = vld [vmem:[%s2826 + $0x30] sm:$0xff]
        %v3185 = vld [vmem:[%s2826 + $0x38] sm:$0xff]
        %v3186 = vld [vmem:[%s2826 + $0x48] sm:$0xff]
        %v3187 = vld [vmem:[%s2826 + $0x50] sm:$0xff]
        %v3188 = vld [vmem:[%s2826 + $0x60] sm:$0xff]
        %v3189 = vld [vmem:[%s2826 + $0x68] sm:$0xff]
        %v3190 = vld [vmem:[%s2826 + $0x78] sm:$0xff]
        %v3191 = vld [vmem:[%s2826 + $0x80] sm:$0xff]
        %v3192 = vld [vmem:[%s2826 + $0x90] sm:$0xff]
        %v3193 = vld [vmem:[%s2826 + $0x98] sm:$0xff]
        %v3194 = vld [vmem:[%s2826 + $0xa8] sm:$0xff]
        %v3195 = vld [vmem:[%s2826 + $0xb0] sm:$0xff]
        %v3196 = vld [vmem:[%s2826 + $0xc0] sm:$0xff]
        %v3197 = vld [vmem:[%s2826 + $0xc8] sm:$0xff]
        %v3198 = vld [vmem:[%s2826 + $0xd8] sm:$0xff]
        %v3199 = vld [vmem:[%s2826 + $0xe0] sm:$0xff]
        %v3200 = vld [vmem:[%s2826 + $0xf0] sm:$0xff]
        %v3201 = vld [vmem:[%s2826 + $0xf8] sm:$0xff]
        %v3202 = vld [vmem:[%s2826 + $0x108] sm:$0xff]
        %v3203 = vld [vmem:[%s2826 + $0x110] sm:$0xff]
        %v3204 = vld [vmem:[%s2826 + $0x120] sm:$0xff]
        %v3205 = vld [vmem:[%s2826 + $0x128] sm:$0xff]
        %v3206 = vld [vmem:[%s2826 + $0x138] sm:$0xff]
        %v3207 = vld [vmem:[%s2826 + $0x140] sm:$0xff]
        %v3208 = vld [vmem:[%s2826 + $0x150] sm:$0xff]
        %v3209 = vld [vmem:[%s2826 + $0x158] sm:$0xff]
        %v3210 = vld [vmem:[%s2826 + $0x168] sm:$0xff]
        %v3211 = vld [vmem:[%s2826 + $0x170] sm:$0xff]
        %3244 = vrot.lane.b32.xlu0 %v3180, 64
        %v3245 = vpop.permute.xlu0 %3244
        %3246 = vrot.lane.b32.xlu0 %v3181, 64
        %v3247 = vpop.permute.xlu0 %3246
        %3248 = vrot.lane.b32.xlu0 %v3182, 64
        %v3249 = vpop.permute.xlu0 %3248
        %3250 = vrot.lane.b32.xlu0 %v3183, 64
        %v3251 = vpop.permute.xlu0 %3250
        %3252 = vrot.lane.b32.xlu0 %v3184, 64
        %v3253 = vpop.permute.xlu0 %3252
        %3254 = vrot.lane.b32.xlu0 %v3185, 64
        %v3255 = vpop.permute.xlu0 %3254
        %3256 = vrot.lane.b32.xlu0 %v3186, 64
        %v3257 = vpop.permute.xlu0 %3256
        %3258 = vrot.lane.b32.xlu0 %v3187, 64
        %v3259 = vpop.permute.xlu0 %3258
        %3260 = vrot.lane.b32.xlu0 %v3188, 64
        %v3261 = vpop.permute.xlu0 %3260
        %3262 = vrot.lane.b32.xlu0 %v3189, 64
        %v3263 = vpop.permute.xlu0 %3262
        %3264 = vrot.lane.b32.xlu0 %v3190, 64
        %v3265 = vpop.permute.xlu0 %3264
        %3266 = vrot.lane.b32.xlu0 %v3191, 64
        %v3267 = vpop.permute.xlu0 %3266
        %3268 = vrot.lane.b32.xlu0 %v3192, 64
        %v3269 = vpop.permute.xlu0 %3268
        %3270 = vrot.lane.b32.xlu0 %v3193, 64
        %v3271 = vpop.permute.xlu0 %3270
        %3272 = vrot.lane.b32.xlu0 %v3194, 64
        %v3273 = vpop.permute.xlu0 %3272
        %3274 = vrot.lane.b32.xlu0 %v3195, 64
        %v3275 = vpop.permute.xlu0 %3274
        %3276 = vrot.lane.b32.xlu0 %v3196, 64
        %v3277 = vpop.permute.xlu0 %3276
        %3278 = vrot.lane.b32.xlu0 %v3197, 64
        %v3279 = vpop.permute.xlu0 %3278
        %3280 = vrot.lane.b32.xlu0 %v3198, 64
        %v3281 = vpop.permute.xlu0 %3280
        %3282 = vrot.lane.b32.xlu0 %v3199, 64
        %v3283 = vpop.permute.xlu0 %3282
        %3284 = vrot.lane.b32.xlu0 %v3200, 64
        %v3285 = vpop.permute.xlu0 %3284
        %3286 = vrot.lane.b32.xlu0 %v3201, 64
        %v3287 = vpop.permute.xlu0 %3286
        %3288 = vrot.lane.b32.xlu0 %v3202, 64
        %v3289 = vpop.permute.xlu0 %3288
        %3290 = vrot.lane.b32.xlu0 %v3203, 64
        %v3291 = vpop.permute.xlu0 %3290
        %3292 = vrot.lane.b32.xlu0 %v3204, 64
        %v3293 = vpop.permute.xlu0 %3292
        %3294 = vrot.lane.b32.xlu0 %v3205, 64
        %v3295 = vpop.permute.xlu0 %3294
        %3296 = vrot.lane.b32.xlu0 %v3206, 64
        %v3297 = vpop.permute.xlu0 %3296
        %3298 = vrot.lane.b32.xlu0 %v3207, 64
        %v3299 = vpop.permute.xlu0 %3298
        %3300 = vrot.lane.b32.xlu0 %v3208, 64
        %v3301 = vpop.permute.xlu0 %3300
        %3302 = vrot.lane.b32.xlu0 %v3209, 64
        %v3303 = vpop.permute.xlu0 %3302
        %3304 = vrot.lane.b32.xlu0 %v3210, 64
        %v3305 = vpop.permute.xlu0 %3304
        %3306 = vrot.lane.b32.xlu0 %v3211, 64
        %v3307 = vpop.permute.xlu0 %3306
        %3340 = vst.msk [vmem:[#allocation5 + $0x8] sm:$0xff] %vm3083, %v3245
        %3341 = vst.msk [vmem:[#allocation5 + $0x30] sm:$0xff] %vm3083, %v3247
        %3342 = vst.msk [vmem:[#allocation5 + $0x58] sm:$0xff] %vm3083, %v3249
        %3343 = vst.msk [vmem:[#allocation5 + $0x80] sm:$0xff] %vm3083, %v3251
        %3344 = vst.msk [vmem:[#allocation5 + $0xa8] sm:$0xff] %vm3083, %v3253
        %3345 = vst.msk [vmem:[#allocation5 + $0xd0] sm:$0xff] %vm3083, %v3255
        %3346 = vst.msk [vmem:[#allocation5 + $0xf8] sm:$0xff] %vm3083, %v3257
        %3347 = vst.msk [vmem:[#allocation5 + $0x120] sm:$0xff] %vm3083, %v3259
        %3348 = vst.msk [vmem:[#allocation5 + $0x148] sm:$0xff] %vm3083, %v3261
        %3349 = vst.msk [vmem:[#allocation5 + $0x170] sm:$0xff] %vm3083, %v3263
        %3350 = vst.msk [vmem:[#allocation5 + $0x198] sm:$0xff] %vm3083, %v3265
        %3351 = vst.msk [vmem:[#allocation5 + $0x1c0] sm:$0xff] %vm3083, %v3267
        %3352 = vst.msk [vmem:[#allocation5 + $0x1e8] sm:$0xff] %vm3083, %v3269
        %3353 = vst.msk [vmem:[#allocation5 + $0x210] sm:$0xff] %vm3083, %v3271
        %3354 = vst.msk [vmem:[#allocation5 + $0x238] sm:$0xff] %vm3083, %v3273
        %3355 = vst.msk [vmem:[#allocation5 + $0x260] sm:$0xff] %vm3083, %v3275
        %3356 = vst.msk [vmem:[#allocation5 + $0x288] sm:$0xff] %vm3083, %v3277
        %3357 = vst.msk [vmem:[#allocation5 + $0x2b0] sm:$0xff] %vm3083, %v3279
        %3358 = vst.msk [vmem:[#allocation5 + $0x2d8] sm:$0xff] %vm3083, %v3281
        %3359 = vst.msk [vmem:[#allocation5 + $0x300] sm:$0xff] %vm3083, %v3283
        %3360 = vst.msk [vmem:[#allocation5 + $0x328] sm:$0xff] %vm3083, %v3285
        %3361 = vst.msk [vmem:[#allocation5 + $0x350] sm:$0xff] %vm3083, %v3287
        %3362 = vst.msk [vmem:[#allocation5 + $0x378] sm:$0xff] %vm3083, %v3289
        %3363 = vst.msk [vmem:[#allocation5 + $0x3a0] sm:$0xff] %vm3083, %v3291
        %3364 = vst.msk [vmem:[#allocation5 + $0x3c8] sm:$0xff] %vm3083, %v3293
        %3365 = vst.msk [vmem:[#allocation5 + $0x3f0] sm:$0xff] %vm3083, %v3295
        %3366 = vst.msk [vmem:[#allocation5 + $0x418] sm:$0xff] %vm3083, %v3297
        %3367 = vst.msk [vmem:[#allocation5 + $0x440] sm:$0xff] %vm3083, %v3299
        %3368 = vst.msk [vmem:[#allocation5 + $0x468] sm:$0xff] %vm3083, %v3301
        %3369 = vst.msk [vmem:[#allocation5 + $0x490] sm:$0xff] %vm3083, %v3303
        %3370 = vst.msk [vmem:[#allocation5 + $0x4b8] sm:$0xff] %vm3083, %v3305
        %3371 = vst.msk [vmem:[#allocation5 + $0x4e0] sm:$0xff] %vm3083, %v3307
        %v3372 = vld [vmem:[%s2826 + $0x1] sm:$0xff]
        %v3373 = vld [vmem:[%s2826 + $0x9] sm:$0xff]
        %v3374 = vld [vmem:[%s2826 + $0x19] sm:$0xff]
        %v3375 = vld [vmem:[%s2826 + $0x21] sm:$0xff]
        %v3376 = vld [vmem:[%s2826 + $0x31] sm:$0xff]
        %v3377 = vld [vmem:[%s2826 + $0x39] sm:$0xff]
        %v3378 = vld [vmem:[%s2826 + $0x49] sm:$0xff]
        %v3379 = vld [vmem:[%s2826 + $0x51] sm:$0xff]
        %v3380 = vld [vmem:[%s2826 + $0x61] sm:$0xff]
        %v3381 = vld [vmem:[%s2826 + $0x69] sm:$0xff]
        %v3382 = vld [vmem:[%s2826 + $0x79] sm:$0xff]
        %v3383 = vld [vmem:[%s2826 + $0x81] sm:$0xff]
        %v3384 = vld [vmem:[%s2826 + $0x91] sm:$0xff]
        %v3385 = vld [vmem:[%s2826 + $0x99] sm:$0xff]
        %v3386 = vld [vmem:[%s2826 + $0xa9] sm:$0xff]
        %v3387 = vld [vmem:[%s2826 + $0xb1] sm:$0xff]
        %v3388 = vld [vmem:[%s2826 + $0xc1] sm:$0xff]
        %v3389 = vld [vmem:[%s2826 + $0xc9] sm:$0xff]
        %v3390 = vld [vmem:[%s2826 + $0xd9] sm:$0xff]
        %v3391 = vld [vmem:[%s2826 + $0xe1] sm:$0xff]
        %v3392 = vld [vmem:[%s2826 + $0xf1] sm:$0xff]
        %v3393 = vld [vmem:[%s2826 + $0xf9] sm:$0xff]
        %v3394 = vld [vmem:[%s2826 + $0x109] sm:$0xff]
        %v3395 = vld [vmem:[%s2826 + $0x111] sm:$0xff]
        %v3396 = vld [vmem:[%s2826 + $0x121] sm:$0xff]
        %v3397 = vld [vmem:[%s2826 + $0x129] sm:$0xff]
        %v3398 = vld [vmem:[%s2826 + $0x139] sm:$0xff]
        %v3399 = vld [vmem:[%s2826 + $0x141] sm:$0xff]
        %v3400 = vld [vmem:[%s2826 + $0x151] sm:$0xff]
        %v3401 = vld [vmem:[%s2826 + $0x159] sm:$0xff]
        %v3402 = vld [vmem:[%s2826 + $0x169] sm:$0xff]
        %v3403 = vld [vmem:[%s2826 + $0x171] sm:$0xff]
        %3404 = vst.msk [vmem:[#allocation5 + $0x10] sm:$0xff] %vm344, %v3372
        %3405 = vst.msk [vmem:[#allocation5 + $0x38] sm:$0xff] %vm344, %v3373
        %3406 = vst.msk [vmem:[#allocation5 + $0x60] sm:$0xff] %vm344, %v3374
        %3407 = vst.msk [vmem:[#allocation5 + $0x88] sm:$0xff] %vm344, %v3375
        %3408 = vst.msk [vmem:[#allocation5 + $0xb0] sm:$0xff] %vm344, %v3376
        %3409 = vst.msk [vmem:[#allocation5 + $0xd8] sm:$0xff] %vm344, %v3377
        %3410 = vst.msk [vmem:[#allocation5 + $0x100] sm:$0xff] %vm344, %v3378
        %3411 = vst.msk [vmem:[#allocation5 + $0x128] sm:$0xff] %vm344, %v3379
        %3412 = vst.msk [vmem:[#allocation5 + $0x150] sm:$0xff] %vm344, %v3380
        %3413 = vst.msk [vmem:[#allocation5 + $0x178] sm:$0xff] %vm344, %v3381
        %3414 = vst.msk [vmem:[#allocation5 + $0x1a0] sm:$0xff] %vm344, %v3382
        %3415 = vst.msk [vmem:[#allocation5 + $0x1c8] sm:$0xff] %vm344, %v3383
        %3416 = vst.msk [vmem:[#allocation5 + $0x1f0] sm:$0xff] %vm344, %v3384
        %3417 = vst.msk [vmem:[#allocation5 + $0x218] sm:$0xff] %vm344, %v3385
        %3418 = vst.msk [vmem:[#allocation5 + $0x240] sm:$0xff] %vm344, %v3386
        %3419 = vst.msk [vmem:[#allocation5 + $0x268] sm:$0xff] %vm344, %v3387
        %3420 = vst.msk [vmem:[#allocation5 + $0x290] sm:$0xff] %vm344, %v3388
        %3421 = vst.msk [vmem:[#allocation5 + $0x2b8] sm:$0xff] %vm344, %v3389
        %3422 = vst.msk [vmem:[#allocation5 + $0x2e0] sm:$0xff] %vm344, %v3390
        %3423 = vst.msk [vmem:[#allocation5 + $0x308] sm:$0xff] %vm344, %v3391
        %3424 = vst.msk [vmem:[#allocation5 + $0x330] sm:$0xff] %vm344, %v3392
        %3425 = vst.msk [vmem:[#allocation5 + $0x358] sm:$0xff] %vm344, %v3393
        %3426 = vst.msk [vmem:[#allocation5 + $0x380] sm:$0xff] %vm344, %v3394
        %3427 = vst.msk [vmem:[#allocation5 + $0x3a8] sm:$0xff] %vm344, %v3395
        %3428 = vst.msk [vmem:[#allocation5 + $0x3d0] sm:$0xff] %vm344, %v3396
        %3429 = vst.msk [vmem:[#allocation5 + $0x3f8] sm:$0xff] %vm344, %v3397
        %3430 = vst.msk [vmem:[#allocation5 + $0x420] sm:$0xff] %vm344, %v3398
        %3431 = vst.msk [vmem:[#allocation5 + $0x448] sm:$0xff] %vm344, %v3399
        %3432 = vst.msk [vmem:[#allocation5 + $0x470] sm:$0xff] %vm344, %v3400
        %3433 = vst.msk [vmem:[#allocation5 + $0x498] sm:$0xff] %vm344, %v3401
        %3434 = vst.msk [vmem:[#allocation5 + $0x4c0] sm:$0xff] %vm344, %v3402
        %3435 = vst.msk [vmem:[#allocation5 + $0x4e8] sm:$0xff] %vm344, %v3403
        %v3436 = vld [vmem:[%s2826 + $0x2] sm:$0xff]
        %v3437 = vld [vmem:[%s2826 + $0xa] sm:$0xff]
        %v3438 = vld [vmem:[%s2826 + $0x1a] sm:$0xff]
        %v3439 = vld [vmem:[%s2826 + $0x22] sm:$0xff]
        %v3440 = vld [vmem:[%s2826 + $0x32] sm:$0xff]
        %v3441 = vld [vmem:[%s2826 + $0x3a] sm:$0xff]
        %v3442 = vld [vmem:[%s2826 + $0x4a] sm:$0xff]
        %v3443 = vld [vmem:[%s2826 + $0x52] sm:$0xff]
        %v3444 = vld [vmem:[%s2826 + $0x62] sm:$0xff]
        %v3445 = vld [vmem:[%s2826 + $0x6a] sm:$0xff]
        %v3446 = vld [vmem:[%s2826 + $0x7a] sm:$0xff]
        %v3447 = vld [vmem:[%s2826 + $0x82] sm:$0xff]
        %v3448 = vld [vmem:[%s2826 + $0x92] sm:$0xff]
        %v3449 = vld [vmem:[%s2826 + $0x9a] sm:$0xff]
        %v3450 = vld [vmem:[%s2826 + $0xaa] sm:$0xff]
        %v3451 = vld [vmem:[%s2826 + $0xb2] sm:$0xff]
        %v3452 = vld [vmem:[%s2826 + $0xc2] sm:$0xff]
        %v3453 = vld [vmem:[%s2826 + $0xca] sm:$0xff]
        %v3454 = vld [vmem:[%s2826 + $0xda] sm:$0xff]
        %v3455 = vld [vmem:[%s2826 + $0xe2] sm:$0xff]
        %v3456 = vld [vmem:[%s2826 + $0xf2] sm:$0xff]
        %v3457 = vld [vmem:[%s2826 + $0xfa] sm:$0xff]
        %v3458 = vld [vmem:[%s2826 + $0x10a] sm:$0xff]
        %v3459 = vld [vmem:[%s2826 + $0x112] sm:$0xff]
        %v3460 = vld [vmem:[%s2826 + $0x122] sm:$0xff]
        %v3461 = vld [vmem:[%s2826 + $0x12a] sm:$0xff]
        %v3462 = vld [vmem:[%s2826 + $0x13a] sm:$0xff]
        %v3463 = vld [vmem:[%s2826 + $0x142] sm:$0xff]
        %v3464 = vld [vmem:[%s2826 + $0x152] sm:$0xff]
        %v3465 = vld [vmem:[%s2826 + $0x15a] sm:$0xff]
        %v3466 = vld [vmem:[%s2826 + $0x16a] sm:$0xff]
        %v3467 = vld [vmem:[%s2826 + $0x172] sm:$0xff]
        %3500 = vrot.lane.b32.xlu0 %v3436, 64
        %v3501 = vpop.permute.xlu0 %3500
        %3502 = vrot.lane.b32.xlu0 %v3437, 64
        %v3503 = vpop.permute.xlu0 %3502
        %3504 = vrot.lane.b32.xlu0 %v3438, 64
        %v3505 = vpop.permute.xlu0 %3504
        %3506 = vrot.lane.b32.xlu0 %v3439, 64
        %v3507 = vpop.permute.xlu0 %3506
        %3508 = vrot.lane.b32.xlu0 %v3440, 64
        %v3509 = vpop.permute.xlu0 %3508
        %3510 = vrot.lane.b32.xlu0 %v3441, 64
        %v3511 = vpop.permute.xlu0 %3510
        %3512 = vrot.lane.b32.xlu0 %v3442, 64
        %v3513 = vpop.permute.xlu0 %3512
        %3514 = vrot.lane.b32.xlu0 %v3443, 64
        %v3515 = vpop.permute.xlu0 %3514
        %3516 = vrot.lane.b32.xlu0 %v3444, 64
        %v3517 = vpop.permute.xlu0 %3516
        %3518 = vrot.lane.b32.xlu0 %v3445, 64
        %v3519 = vpop.permute.xlu0 %3518
        %3520 = vrot.lane.b32.xlu0 %v3446, 64
        %v3521 = vpop.permute.xlu0 %3520
        %3522 = vrot.lane.b32.xlu0 %v3447, 64
        %v3523 = vpop.permute.xlu0 %3522
        %3524 = vrot.lane.b32.xlu0 %v3448, 64
        %v3525 = vpop.permute.xlu0 %3524
        %3526 = vrot.lane.b32.xlu0 %v3449, 64
        %v3527 = vpop.permute.xlu0 %3526
        %3528 = vrot.lane.b32.xlu0 %v3450, 64
        %v3529 = vpop.permute.xlu0 %3528
        %3530 = vrot.lane.b32.xlu0 %v3451, 64
        %v3531 = vpop.permute.xlu0 %3530
        %3532 = vrot.lane.b32.xlu0 %v3452, 64
        %v3533 = vpop.permute.xlu0 %3532
        %3534 = vrot.lane.b32.xlu0 %v3453, 64
        %v3535 = vpop.permute.xlu0 %3534
        %3536 = vrot.lane.b32.xlu0 %v3454, 64
        %v3537 = vpop.permute.xlu0 %3536
        %3538 = vrot.lane.b32.xlu0 %v3455, 64
        %v3539 = vpop.permute.xlu0 %3538
        %3540 = vrot.lane.b32.xlu0 %v3456, 64
        %v3541 = vpop.permute.xlu0 %3540
        %3542 = vrot.lane.b32.xlu0 %v3457, 64
        %v3543 = vpop.permute.xlu0 %3542
        %3544 = vrot.lane.b32.xlu0 %v3458, 64
        %v3545 = vpop.permute.xlu0 %3544
        %3546 = vrot.lane.b32.xlu0 %v3459, 64
        %v3547 = vpop.permute.xlu0 %3546
        %3548 = vrot.lane.b32.xlu0 %v3460, 64
        %v3549 = vpop.permute.xlu0 %3548
        %3550 = vrot.lane.b32.xlu0 %v3461, 64
        %v3551 = vpop.permute.xlu0 %3550
        %3552 = vrot.lane.b32.xlu0 %v3462, 64
        %v3553 = vpop.permute.xlu0 %3552
        %3554 = vrot.lane.b32.xlu0 %v3463, 64
        %v3555 = vpop.permute.xlu0 %3554
        %3556 = vrot.lane.b32.xlu0 %v3464, 64
        %v3557 = vpop.permute.xlu0 %3556
        %3558 = vrot.lane.b32.xlu0 %v3465, 64
        %v3559 = vpop.permute.xlu0 %3558
        %3560 = vrot.lane.b32.xlu0 %v3466, 64
        %v3561 = vpop.permute.xlu0 %3560
        %3562 = vrot.lane.b32.xlu0 %v3467, 64
        %v3563 = vpop.permute.xlu0 %3562
        %3596 = vst.msk [vmem:[#allocation5 + $0x10] sm:$0xff] %vm3083, %v3501
        %3597 = vst.msk [vmem:[#allocation5 + $0x38] sm:$0xff] %vm3083, %v3503
        %3598 = vst.msk [vmem:[#allocation5 + $0x60] sm:$0xff] %vm3083, %v3505
        %3599 = vst.msk [vmem:[#allocation5 + $0x88] sm:$0xff] %vm3083, %v3507
        %3600 = vst.msk [vmem:[#allocation5 + $0xb0] sm:$0xff] %vm3083, %v3509
        %3601 = vst.msk [vmem:[#allocation5 + $0xd8] sm:$0xff] %vm3083, %v3511
        %3602 = vst.msk [vmem:[#allocation5 + $0x100] sm:$0xff] %vm3083, %v3513
        %3603 = vst.msk [vmem:[#allocation5 + $0x128] sm:$0xff] %vm3083, %v3515
        %3604 = vst.msk [vmem:[#allocation5 + $0x150] sm:$0xff] %vm3083, %v3517
        %3605 = vst.msk [vmem:[#allocation5 + $0x178] sm:$0xff] %vm3083, %v3519
        %3606 = vst.msk [vmem:[#allocation5 + $0x1a0] sm:$0xff] %vm3083, %v3521
        %3607 = vst.msk [vmem:[#allocation5 + $0x1c8] sm:$0xff] %vm3083, %v3523
        %3608 = vst.msk [vmem:[#allocation5 + $0x1f0] sm:$0xff] %vm3083, %v3525
        %3609 = vst.msk [vmem:[#allocation5 + $0x218] sm:$0xff] %vm3083, %v3527
        %3610 = vst.msk [vmem:[#allocation5 + $0x240] sm:$0xff] %vm3083, %v3529
        %3611 = vst.msk [vmem:[#allocation5 + $0x268] sm:$0xff] %vm3083, %v3531
        %3612 = vst.msk [vmem:[#allocation5 + $0x290] sm:$0xff] %vm3083, %v3533
        %3613 = vst.msk [vmem:[#allocation5 + $0x2b8] sm:$0xff] %vm3083, %v3535
        %3614 = vst.msk [vmem:[#allocation5 + $0x2e0] sm:$0xff] %vm3083, %v3537
        %3615 = vst.msk [vmem:[#allocation5 + $0x308] sm:$0xff] %vm3083, %v3539
        %3616 = vst.msk [vmem:[#allocation5 + $0x330] sm:$0xff] %vm3083, %v3541
        %3617 = vst.msk [vmem:[#allocation5 + $0x358] sm:$0xff] %vm3083, %v3543
        %3618 = vst.msk [vmem:[#allocation5 + $0x380] sm:$0xff] %vm3083, %v3545
        %3619 = vst.msk [vmem:[#allocation5 + $0x3a8] sm:$0xff] %vm3083, %v3547
        %3620 = vst.msk [vmem:[#allocation5 + $0x3d0] sm:$0xff] %vm3083, %v3549
        %3621 = vst.msk [vmem:[#allocation5 + $0x3f8] sm:$0xff] %vm3083, %v3551
        %3622 = vst.msk [vmem:[#allocation5 + $0x420] sm:$0xff] %vm3083, %v3553
        %3623 = vst.msk [vmem:[#allocation5 + $0x448] sm:$0xff] %vm3083, %v3555
        %3624 = vst.msk [vmem:[#allocation5 + $0x470] sm:$0xff] %vm3083, %v3557
        %3625 = vst.msk [vmem:[#allocation5 + $0x498] sm:$0xff] %vm3083, %v3559
        %3626 = vst.msk [vmem:[#allocation5 + $0x4c0] sm:$0xff] %vm3083, %v3561
        %3627 = vst.msk [vmem:[#allocation5 + $0x4e8] sm:$0xff] %vm3083, %v3563
        %s3628 = scalar_lea.vmem [#allocation4], 48
        %v3629 = vld [vmem:[%s3628] sm:$0xff]
        %v3630 = vld [vmem:[%s3628 + $0x8] sm:$0xff]
        %v3631 = vld [vmem:[%s3628 + $0x18] sm:$0xff]
        %v3632 = vld [vmem:[%s3628 + $0x20] sm:$0xff]
        %v3633 = vld [vmem:[%s3628 + $0x30] sm:$0xff]
        %v3634 = vld [vmem:[%s3628 + $0x38] sm:$0xff]
        %v3635 = vld [vmem:[%s3628 + $0x48] sm:$0xff]
        %v3636 = vld [vmem:[%s3628 + $0x50] sm:$0xff]
        %v3637 = vld [vmem:[%s3628 + $0x60] sm:$0xff]
        %v3638 = vld [vmem:[%s3628 + $0x68] sm:$0xff]
        %v3639 = vld [vmem:[%s3628 + $0x78] sm:$0xff]
        %v3640 = vld [vmem:[%s3628 + $0x80] sm:$0xff]
        %v3641 = vld [vmem:[%s3628 + $0x90] sm:$0xff]
        %v3642 = vld [vmem:[%s3628 + $0x98] sm:$0xff]
        %v3643 = vld [vmem:[%s3628 + $0xa8] sm:$0xff]
        %v3644 = vld [vmem:[%s3628 + $0xb0] sm:$0xff]
        %v3645 = vld [vmem:[%s3628 + $0xc0] sm:$0xff]
        %v3646 = vld [vmem:[%s3628 + $0xc8] sm:$0xff]
        %v3647 = vld [vmem:[%s3628 + $0xd8] sm:$0xff]
        %v3648 = vld [vmem:[%s3628 + $0xe0] sm:$0xff]
        %v3649 = vld [vmem:[%s3628 + $0xf0] sm:$0xff]
        %v3650 = vld [vmem:[%s3628 + $0xf8] sm:$0xff]
        %v3651 = vld [vmem:[%s3628 + $0x108] sm:$0xff]
        %v3652 = vld [vmem:[%s3628 + $0x110] sm:$0xff]
        %v3653 = vld [vmem:[%s3628 + $0x120] sm:$0xff]
        %v3654 = vld [vmem:[%s3628 + $0x128] sm:$0xff]
        %v3655 = vld [vmem:[%s3628 + $0x138] sm:$0xff]
        %v3656 = vld [vmem:[%s3628 + $0x140] sm:$0xff]
        %v3657 = vld [vmem:[%s3628 + $0x150] sm:$0xff]
        %v3658 = vld [vmem:[%s3628 + $0x158] sm:$0xff]
        %v3659 = vld [vmem:[%s3628 + $0x168] sm:$0xff]
        %v3660 = vld [vmem:[%s3628 + $0x170] sm:$0xff]
        %3661 = vst.msk [vmem:[#allocation5 + $0x18] sm:$0xff] %vm344, %v3629
        %3662 = vst.msk [vmem:[#allocation5 + $0x40] sm:$0xff] %vm344, %v3630
        %3663 = vst.msk [vmem:[#allocation5 + $0x68] sm:$0xff] %vm344, %v3631
        %3664 = vst.msk [vmem:[#allocation5 + $0x90] sm:$0xff] %vm344, %v3632
        %3665 = vst.msk [vmem:[#allocation5 + $0xb8] sm:$0xff] %vm344, %v3633
        %3666 = vst.msk [vmem:[#allocation5 + $0xe0] sm:$0xff] %vm344, %v3634
        %3667 = vst.msk [vmem:[#allocation5 + $0x108] sm:$0xff] %vm344, %v3635
        %3668 = vst.msk [vmem:[#allocation5 + $0x130] sm:$0xff] %vm344, %v3636
        %3669 = vst.msk [vmem:[#allocation5 + $0x158] sm:$0xff] %vm344, %v3637
        %3670 = vst.msk [vmem:[#allocation5 + $0x180] sm:$0xff] %vm344, %v3638
        %3671 = vst.msk [vmem:[#allocation5 + $0x1a8] sm:$0xff] %vm344, %v3639
        %3672 = vst.msk [vmem:[#allocation5 + $0x1d0] sm:$0xff] %vm344, %v3640
        %3673 = vst.msk [vmem:[#allocation5 + $0x1f8] sm:$0xff] %vm344, %v3641
        %3674 = vst.msk [vmem:[#allocation5 + $0x220] sm:$0xff] %vm344, %v3642
        %3675 = vst.msk [vmem:[#allocation5 + $0x248] sm:$0xff] %vm344, %v3643
        %3676 = vst.msk [vmem:[#allocation5 + $0x270] sm:$0xff] %vm344, %v3644
        %3677 = vst.msk [vmem:[#allocation5 + $0x298] sm:$0xff] %vm344, %v3645
        %3678 = vst.msk [vmem:[#allocation5 + $0x2c0] sm:$0xff] %vm344, %v3646
        %3679 = vst.msk [vmem:[#allocation5 + $0x2e8] sm:$0xff] %vm344, %v3647
        %3680 = vst.msk [vmem:[#allocation5 + $0x310] sm:$0xff] %vm344, %v3648
        %3681 = vst.msk [vmem:[#allocation5 + $0x338] sm:$0xff] %vm344, %v3649
        %3682 = vst.msk [vmem:[#allocation5 + $0x360] sm:$0xff] %vm344, %v3650
        %3683 = vst.msk [vmem:[#allocation5 + $0x388] sm:$0xff] %vm344, %v3651
        %3684 = vst.msk [vmem:[#allocation5 + $0x3b0] sm:$0xff] %vm344, %v3652
        %3685 = vst.msk [vmem:[#allocation5 + $0x3d8] sm:$0xff] %vm344, %v3653
        %3686 = vst.msk [vmem:[#allocation5 + $0x400] sm:$0xff] %vm344, %v3654
        %3687 = vst.msk [vmem:[#allocation5 + $0x428] sm:$0xff] %vm344, %v3655
        %3688 = vst.msk [vmem:[#allocation5 + $0x450] sm:$0xff] %vm344, %v3656
        %3689 = vst.msk [vmem:[#allocation5 + $0x478] sm:$0xff] %vm344, %v3657
        %3690 = vst.msk [vmem:[#allocation5 + $0x4a0] sm:$0xff] %vm344, %v3658
        %3691 = vst.msk [vmem:[#allocation5 + $0x4c8] sm:$0xff] %vm344, %v3659
        %3692 = vst.msk [vmem:[#allocation5 + $0x4f0] sm:$0xff] %vm344, %v3660
        %v3693 = vld [vmem:[%s3628 + $0x1] sm:$0xff]
        %v3694 = vld [vmem:[%s3628 + $0x9] sm:$0xff]
        %v3695 = vld [vmem:[%s3628 + $0x19] sm:$0xff]
        %v3696 = vld [vmem:[%s3628 + $0x21] sm:$0xff]
        %v3697 = vld [vmem:[%s3628 + $0x31] sm:$0xff]
        %v3698 = vld [vmem:[%s3628 + $0x39] sm:$0xff]
        %v3699 = vld [vmem:[%s3628 + $0x49] sm:$0xff]
        %v3700 = vld [vmem:[%s3628 + $0x51] sm:$0xff]
        %v3701 = vld [vmem:[%s3628 + $0x61] sm:$0xff]
        %v3702 = vld [vmem:[%s3628 + $0x69] sm:$0xff]
        %v3703 = vld [vmem:[%s3628 + $0x79] sm:$0xff]
        %v3704 = vld [vmem:[%s3628 + $0x81] sm:$0xff]
        %v3705 = vld [vmem:[%s3628 + $0x91] sm:$0xff]
        %v3706 = vld [vmem:[%s3628 + $0x99] sm:$0xff]
        %v3707 = vld [vmem:[%s3628 + $0xa9] sm:$0xff]
        %v3708 = vld [vmem:[%s3628 + $0xb1] sm:$0xff]
        %v3709 = vld [vmem:[%s3628 + $0xc1] sm:$0xff]
        %v3710 = vld [vmem:[%s3628 + $0xc9] sm:$0xff]
        %v3711 = vld [vmem:[%s3628 + $0xd9] sm:$0xff]
        %v3712 = vld [vmem:[%s3628 + $0xe1] sm:$0xff]
        %v3713 = vld [vmem:[%s3628 + $0xf1] sm:$0xff]
        %v3714 = vld [vmem:[%s3628 + $0xf9] sm:$0xff]
        %v3715 = vld [vmem:[%s3628 + $0x109] sm:$0xff]
        %v3716 = vld [vmem:[%s3628 + $0x111] sm:$0xff]
        %v3717 = vld [vmem:[%s3628 + $0x121] sm:$0xff]
        %v3718 = vld [vmem:[%s3628 + $0x129] sm:$0xff]
        %v3719 = vld [vmem:[%s3628 + $0x139] sm:$0xff]
        %v3720 = vld [vmem:[%s3628 + $0x141] sm:$0xff]
        %v3721 = vld [vmem:[%s3628 + $0x151] sm:$0xff]
        %v3722 = vld [vmem:[%s3628 + $0x159] sm:$0xff]
        %v3723 = vld [vmem:[%s3628 + $0x169] sm:$0xff]
        %v3724 = vld [vmem:[%s3628 + $0x171] sm:$0xff]
        %3757 = vrot.lane.b32.xlu0 %v3693, 64
        %v3758 = vpop.permute.xlu0 %3757
        %3759 = vrot.lane.b32.xlu0 %v3694, 64
        %v3760 = vpop.permute.xlu0 %3759
        %3761 = vrot.lane.b32.xlu0 %v3695, 64
        %v3762 = vpop.permute.xlu0 %3761
        %3763 = vrot.lane.b32.xlu0 %v3696, 64
        %v3764 = vpop.permute.xlu0 %3763
        %3765 = vrot.lane.b32.xlu0 %v3697, 64
        %v3766 = vpop.permute.xlu0 %3765
        %3767 = vrot.lane.b32.xlu0 %v3698, 64
        %v3768 = vpop.permute.xlu0 %3767
        %3769 = vrot.lane.b32.xlu0 %v3699, 64
        %v3770 = vpop.permute.xlu0 %3769
        %3771 = vrot.lane.b32.xlu0 %v3700, 64
        %v3772 = vpop.permute.xlu0 %3771
        %3773 = vrot.lane.b32.xlu0 %v3701, 64
        %v3774 = vpop.permute.xlu0 %3773
        %3775 = vrot.lane.b32.xlu0 %v3702, 64
        %v3776 = vpop.permute.xlu0 %3775
        %3777 = vrot.lane.b32.xlu0 %v3703, 64
        %v3778 = vpop.permute.xlu0 %3777
        %3779 = vrot.lane.b32.xlu0 %v3704, 64
        %v3780 = vpop.permute.xlu0 %3779
        %3781 = vrot.lane.b32.xlu0 %v3705, 64
        %v3782 = vpop.permute.xlu0 %3781
        %3783 = vrot.lane.b32.xlu0 %v3706, 64
        %v3784 = vpop.permute.xlu0 %3783
        %3785 = vrot.lane.b32.xlu0 %v3707, 64
        %v3786 = vpop.permute.xlu0 %3785
        %3787 = vrot.lane.b32.xlu0 %v3708, 64
        %v3788 = vpop.permute.xlu0 %3787
        %3789 = vrot.lane.b32.xlu0 %v3709, 64
        %v3790 = vpop.permute.xlu0 %3789
        %3791 = vrot.lane.b32.xlu0 %v3710, 64
        %v3792 = vpop.permute.xlu0 %3791
        %3793 = vrot.lane.b32.xlu0 %v3711, 64
        %v3794 = vpop.permute.xlu0 %3793
        %3795 = vrot.lane.b32.xlu0 %v3712, 64
        %v3796 = vpop.permute.xlu0 %3795
        %3797 = vrot.lane.b32.xlu0 %v3713, 64
        %v3798 = vpop.permute.xlu0 %3797
        %3799 = vrot.lane.b32.xlu0 %v3714, 64
        %v3800 = vpop.permute.xlu0 %3799
        %3801 = vrot.lane.b32.xlu0 %v3715, 64
        %v3802 = vpop.permute.xlu0 %3801
        %3803 = vrot.lane.b32.xlu0 %v3716, 64
        %v3804 = vpop.permute.xlu0 %3803
        %3805 = vrot.lane.b32.xlu0 %v3717, 64
        %v3806 = vpop.permute.xlu0 %3805
        %3807 = vrot.lane.b32.xlu0 %v3718, 64
        %v3808 = vpop.permute.xlu0 %3807
        %3809 = vrot.lane.b32.xlu0 %v3719, 64
        %v3810 = vpop.permute.xlu0 %3809
        %3811 = vrot.lane.b32.xlu0 %v3720, 64
        %v3812 = vpop.permute.xlu0 %3811
        %3813 = vrot.lane.b32.xlu0 %v3721, 64
        %v3814 = vpop.permute.xlu0 %3813
        %3815 = vrot.lane.b32.xlu0 %v3722, 64
        %v3816 = vpop.permute.xlu0 %3815
        %3817 = vrot.lane.b32.xlu0 %v3723, 64
        %v3818 = vpop.permute.xlu0 %3817
        %3819 = vrot.lane.b32.xlu0 %v3724, 64
        %v3820 = vpop.permute.xlu0 %3819
        %3853 = vst.msk [vmem:[#allocation5 + $0x18] sm:$0xff] %vm3083, %v3758
        %3854 = vst.msk [vmem:[#allocation5 + $0x40] sm:$0xff] %vm3083, %v3760
        %3855 = vst.msk [vmem:[#allocation5 + $0x68] sm:$0xff] %vm3083, %v3762
        %3856 = vst.msk [vmem:[#allocation5 + $0x90] sm:$0xff] %vm3083, %v3764
        %3857 = vst.msk [vmem:[#allocation5 + $0xb8] sm:$0xff] %vm3083, %v3766
        %3858 = vst.msk [vmem:[#allocation5 + $0xe0] sm:$0xff] %vm3083, %v3768
        %3859 = vst.msk [vmem:[#allocation5 + $0x108] sm:$0xff] %vm3083, %v3770
        %3860 = vst.msk [vmem:[#allocation5 + $0x130] sm:$0xff] %vm3083, %v3772
        %3861 = vst.msk [vmem:[#allocation5 + $0x158] sm:$0xff] %vm3083, %v3774
        %3862 = vst.msk [vmem:[#allocation5 + $0x180] sm:$0xff] %vm3083, %v3776
        %3863 = vst.msk [vmem:[#allocation5 + $0x1a8] sm:$0xff] %vm3083, %v3778
        %3864 = vst.msk [vmem:[#allocation5 + $0x1d0] sm:$0xff] %vm3083, %v3780
        %3865 = vst.msk [vmem:[#allocation5 + $0x1f8] sm:$0xff] %vm3083, %v3782
        %3866 = vst.msk [vmem:[#allocation5 + $0x220] sm:$0xff] %vm3083, %v3784
        %3867 = vst.msk [vmem:[#allocation5 + $0x248] sm:$0xff] %vm3083, %v3786
        %3868 = vst.msk [vmem:[#allocation5 + $0x270] sm:$0xff] %vm3083, %v3788
        %3869 = vst.msk [vmem:[#allocation5 + $0x298] sm:$0xff] %vm3083, %v3790
        %3870 = vst.msk [vmem:[#allocation5 + $0x2c0] sm:$0xff] %vm3083, %v3792
        %3871 = vst.msk [vmem:[#allocation5 + $0x2e8] sm:$0xff] %vm3083, %v3794
        %3872 = vst.msk [vmem:[#allocation5 + $0x310] sm:$0xff] %vm3083, %v3796
        %3873 = vst.msk [vmem:[#allocation5 + $0x338] sm:$0xff] %vm3083, %v3798
        %3874 = vst.msk [vmem:[#allocation5 + $0x360] sm:$0xff] %vm3083, %v3800
        %3875 = vst.msk [vmem:[#allocation5 + $0x388] sm:$0xff] %vm3083, %v3802
        %3876 = vst.msk [vmem:[#allocation5 + $0x3b0] sm:$0xff] %vm3083, %v3804
        %3877 = vst.msk [vmem:[#allocation5 + $0x3d8] sm:$0xff] %vm3083, %v3806
        %3878 = vst.msk [vmem:[#allocation5 + $0x400] sm:$0xff] %vm3083, %v3808
        %3879 = vst.msk [vmem:[#allocation5 + $0x428] sm:$0xff] %vm3083, %v3810
        %3880 = vst.msk [vmem:[#allocation5 + $0x450] sm:$0xff] %vm3083, %v3812
        %3881 = vst.msk [vmem:[#allocation5 + $0x478] sm:$0xff] %vm3083, %v3814
        %3882 = vst.msk [vmem:[#allocation5 + $0x4a0] sm:$0xff] %vm3083, %v3816
        %3883 = vst.msk [vmem:[#allocation5 + $0x4c8] sm:$0xff] %vm3083, %v3818
        %3884 = vst.msk [vmem:[#allocation5 + $0x4f0] sm:$0xff] %vm3083, %v3820
        %v3885 = vld [vmem:[%s3628 + $0x2] sm:$0xff]
        %v3886 = vld [vmem:[%s3628 + $0xa] sm:$0xff]
        %v3887 = vld [vmem:[%s3628 + $0x1a] sm:$0xff]
        %v3888 = vld [vmem:[%s3628 + $0x22] sm:$0xff]
        %v3889 = vld [vmem:[%s3628 + $0x32] sm:$0xff]
        %v3890 = vld [vmem:[%s3628 + $0x3a] sm:$0xff]
        %v3891 = vld [vmem:[%s3628 + $0x4a] sm:$0xff]
        %v3892 = vld [vmem:[%s3628 + $0x52] sm:$0xff]
        %v3893 = vld [vmem:[%s3628 + $0x62] sm:$0xff]
        %v3894 = vld [vmem:[%s3628 + $0x6a] sm:$0xff]
        %v3895 = vld [vmem:[%s3628 + $0x7a] sm:$0xff]
        %v3896 = vld [vmem:[%s3628 + $0x82] sm:$0xff]
        %v3897 = vld [vmem:[%s3628 + $0x92] sm:$0xff]
        %v3898 = vld [vmem:[%s3628 + $0x9a] sm:$0xff]
        %v3899 = vld [vmem:[%s3628 + $0xaa] sm:$0xff]
        %v3900 = vld [vmem:[%s3628 + $0xb2] sm:$0xff]
        %v3901 = vld [vmem:[%s3628 + $0xc2] sm:$0xff]
        %v3902 = vld [vmem:[%s3628 + $0xca] sm:$0xff]
        %v3903 = vld [vmem:[%s3628 + $0xda] sm:$0xff]
        %v3904 = vld [vmem:[%s3628 + $0xe2] sm:$0xff]
        %v3905 = vld [vmem:[%s3628 + $0xf2] sm:$0xff]
        %v3906 = vld [vmem:[%s3628 + $0xfa] sm:$0xff]
        %v3907 = vld [vmem:[%s3628 + $0x10a] sm:$0xff]
        %v3908 = vld [vmem:[%s3628 + $0x112] sm:$0xff]
        %v3909 = vld [vmem:[%s3628 + $0x122] sm:$0xff]
        %v3910 = vld [vmem:[%s3628 + $0x12a] sm:$0xff]
        %v3911 = vld [vmem:[%s3628 + $0x13a] sm:$0xff]
        %v3912 = vld [vmem:[%s3628 + $0x142] sm:$0xff]
        %v3913 = vld [vmem:[%s3628 + $0x152] sm:$0xff]
        %v3914 = vld [vmem:[%s3628 + $0x15a] sm:$0xff]
        %v3915 = vld [vmem:[%s3628 + $0x16a] sm:$0xff]
        %v3916 = vld [vmem:[%s3628 + $0x172] sm:$0xff]
        %3917 = vst.msk [vmem:[#allocation5 + $0x20] sm:$0xff] %vm344, %v3885
        %3918 = vst.msk [vmem:[#allocation5 + $0x48] sm:$0xff] %vm344, %v3886
        %3919 = vst.msk [vmem:[#allocation5 + $0x70] sm:$0xff] %vm344, %v3887
        %3920 = vst.msk [vmem:[#allocation5 + $0x98] sm:$0xff] %vm344, %v3888
        %3921 = vst.msk [vmem:[#allocation5 + $0xc0] sm:$0xff] %vm344, %v3889
        %3922 = vst.msk [vmem:[#allocation5 + $0xe8] sm:$0xff] %vm344, %v3890
        %3923 = vst.msk [vmem:[#allocation5 + $0x110] sm:$0xff] %vm344, %v3891
        %3924 = vst.msk [vmem:[#allocation5 + $0x138] sm:$0xff] %vm344, %v3892
        %3925 = vst.msk [vmem:[#allocation5 + $0x160] sm:$0xff] %vm344, %v3893
        %3926 = vst.msk [vmem:[#allocation5 + $0x188] sm:$0xff] %vm344, %v3894
        %3927 = vst.msk [vmem:[#allocation5 + $0x1b0] sm:$0xff] %vm344, %v3895
        %3928 = vst.msk [vmem:[#allocation5 + $0x1d8] sm:$0xff] %vm344, %v3896
        %3929 = vst.msk [vmem:[#allocation5 + $0x200] sm:$0xff] %vm344, %v3897
        %3930 = vst.msk [vmem:[#allocation5 + $0x228] sm:$0xff] %vm344, %v3898
        %3931 = vst.msk [vmem:[#allocation5 + $0x250] sm:$0xff] %vm344, %v3899
        %3932 = vst.msk [vmem:[#allocation5 + $0x278] sm:$0xff] %vm344, %v3900
        %3933 = vst.msk [vmem:[#allocation5 + $0x2a0] sm:$0xff] %vm344, %v3901
        %3934 = vst.msk [vmem:[#allocation5 + $0x2c8] sm:$0xff] %vm344, %v3902
        %3935 = vst.msk [vmem:[#allocation5 + $0x2f0] sm:$0xff] %vm344, %v3903
        %3936 = vst.msk [vmem:[#allocation5 + $0x318] sm:$0xff] %vm344, %v3904
        %3937 = vst.msk [vmem:[#allocation5 + $0x340] sm:$0xff] %vm344, %v3905
        %3938 = vst.msk [vmem:[#allocation5 + $0x368] sm:$0xff] %vm344, %v3906
        %3939 = vst.msk [vmem:[#allocation5 + $0x390] sm:$0xff] %vm344, %v3907
        %3940 = vst.msk [vmem:[#allocation5 + $0x3b8] sm:$0xff] %vm344, %v3908
        %3941 = vst.msk [vmem:[#allocation5 + $0x3e0] sm:$0xff] %vm344, %v3909
        %3942 = vst.msk [vmem:[#allocation5 + $0x408] sm:$0xff] %vm344, %v3910
        %3943 = vst.msk [vmem:[#allocation5 + $0x430] sm:$0xff] %vm344, %v3911
        %3944 = vst.msk [vmem:[#allocation5 + $0x458] sm:$0xff] %vm344, %v3912
        %3945 = vst.msk [vmem:[#allocation5 + $0x480] sm:$0xff] %vm344, %v3913
        %3946 = vst.msk [vmem:[#allocation5 + $0x4a8] sm:$0xff] %vm344, %v3914
        %3947 = vst.msk [vmem:[#allocation5 + $0x4d0] sm:$0xff] %vm344, %v3915
        %3948 = vst.msk [vmem:[#allocation5 + $0x4f8] sm:$0xff] %vm344, %v3916
        %v3949 = vld [vmem:[#allocation5] sm:$0xff]
        %v3950 = vld [vmem:[#allocation5 + $0x8] sm:$0xff]
        %v3951 = vld [vmem:[#allocation5 + $0x10] sm:$0xff]
        %v3952 = vld [vmem:[#allocation5 + $0x18] sm:$0xff]
        %v3953 = vld [vmem:[#allocation5 + $0x20] sm:$0xff]
        %v3954 = vld [vmem:[#allocation5 + $0x28] sm:$0xff]
        %v3955 = vld [vmem:[#allocation5 + $0x30] sm:$0xff]
        %v3956 = vld [vmem:[#allocation5 + $0x38] sm:$0xff]
        %v3957 = vld [vmem:[#allocation5 + $0x40] sm:$0xff]
        %v3958 = vld [vmem:[#allocation5 + $0x48] sm:$0xff]
        %v3959 = vld [vmem:[#allocation5 + $0x50] sm:$0xff]
        %v3960 = vld [vmem:[#allocation5 + $0x58] sm:$0xff]
        %v3961 = vld [vmem:[#allocation5 + $0x60] sm:$0xff]
        %v3962 = vld [vmem:[#allocation5 + $0x68] sm:$0xff]
        %v3963 = vld [vmem:[#allocation5 + $0x70] sm:$0xff]
        %v3964 = vld [vmem:[#allocation5 + $0x78] sm:$0xff]
        %v3965 = vld [vmem:[#allocation5 + $0x80] sm:$0xff]
        %v3966 = vld [vmem:[#allocation5 + $0x88] sm:$0xff]
        %v3967 = vld [vmem:[#allocation5 + $0x90] sm:$0xff]
        %v3968 = vld [vmem:[#allocation5 + $0x98] sm:$0xff]
        %v3969 = vld [vmem:[#allocation5 + $0xa0] sm:$0xff]
        %v3970 = vld [vmem:[#allocation5 + $0xa8] sm:$0xff]
        %v3971 = vld [vmem:[#allocation5 + $0xb0] sm:$0xff]
        %v3972 = vld [vmem:[#allocation5 + $0xb8] sm:$0xff]
        %v3973 = vld [vmem:[#allocation5 + $0xc0] sm:$0xff]
        %v3974 = vld [vmem:[#allocation5 + $0xc8] sm:$0xff]
        %v3975 = vld [vmem:[#allocation5 + $0xd0] sm:$0xff]
        %v3976 = vld [vmem:[#allocation5 + $0xd8] sm:$0xff]
        %v3977 = vld [vmem:[#allocation5 + $0xe0] sm:$0xff]
        %v3978 = vld [vmem:[#allocation5 + $0xe8] sm:$0xff]
        %v3979 = vld [vmem:[#allocation5 + $0xf0] sm:$0xff]
        %v3980 = vld [vmem:[#allocation5 + $0xf8] sm:$0xff]
        %v3981 = vld [vmem:[#allocation5 + $0x100] sm:$0xff]
        %v3982 = vld [vmem:[#allocation5 + $0x108] sm:$0xff]
        %v3983 = vld [vmem:[#allocation5 + $0x110] sm:$0xff]
        %v3984 = vld [vmem:[#allocation5 + $0x118] sm:$0xff]
        %v3985 = vld [vmem:[#allocation5 + $0x120] sm:$0xff]
        %v3986 = vld [vmem:[#allocation5 + $0x128] sm:$0xff]
        %v3987 = vld [vmem:[#allocation5 + $0x130] sm:$0xff]
        %v3988 = vld [vmem:[#allocation5 + $0x138] sm:$0xff]
        %v3989 = vld [vmem:[#allocation5 + $0x140] sm:$0xff]
        %v3990 = vld [vmem:[#allocation5 + $0x148] sm:$0xff]
        %v3991 = vld [vmem:[#allocation5 + $0x150] sm:$0xff]
        %v3992 = vld [vmem:[#allocation5 + $0x158] sm:$0xff]
        %v3993 = vld [vmem:[#allocation5 + $0x160] sm:$0xff]
        %v3994 = vld [vmem:[#allocation5 + $0x168] sm:$0xff]
        %v3995 = vld [vmem:[#allocation5 + $0x170] sm:$0xff]
        %v3996 = vld [vmem:[#allocation5 + $0x178] sm:$0xff]
        %v3997 = vld [vmem:[#allocation5 + $0x180] sm:$0xff]
        %v3998 = vld [vmem:[#allocation5 + $0x188] sm:$0xff]
        %v3999 = vld [vmem:[#allocation5 + $0x190] sm:$0xff]
        %v4000 = vld [vmem:[#allocation5 + $0x198] sm:$0xff]
        %v4001 = vld [vmem:[#allocation5 + $0x1a0] sm:$0xff]
        %v4002 = vld [vmem:[#allocation5 + $0x1a8] sm:$0xff]
        %v4003 = vld [vmem:[#allocation5 + $0x1b0] sm:$0xff]
        %v4004 = vld [vmem:[#allocation5 + $0x1b8] sm:$0xff]
        %v4005 = vld [vmem:[#allocation5 + $0x1c0] sm:$0xff]
        %v4006 = vld [vmem:[#allocation5 + $0x1c8] sm:$0xff]
        %v4007 = vld [vmem:[#allocation5 + $0x1d0] sm:$0xff]
        %v4008 = vld [vmem:[#allocation5 + $0x1d8] sm:$0xff]
        %v4009 = vld [vmem:[#allocation5 + $0x1e0] sm:$0xff]
        %v4010 = vld [vmem:[#allocation5 + $0x1e8] sm:$0xff]
        %v4011 = vld [vmem:[#allocation5 + $0x1f0] sm:$0xff]
        %v4012 = vld [vmem:[#allocation5 + $0x1f8] sm:$0xff]
        %v4013 = vld [vmem:[#allocation5 + $0x200] sm:$0xff]
        %v4014 = vld [vmem:[#allocation5 + $0x208] sm:$0xff]
        %v4015 = vld [vmem:[#allocation5 + $0x210] sm:$0xff]
        %v4016 = vld [vmem:[#allocation5 + $0x218] sm:$0xff]
        %v4017 = vld [vmem:[#allocation5 + $0x220] sm:$0xff]
        %v4018 = vld [vmem:[#allocation5 + $0x228] sm:$0xff]
        %v4019 = vld [vmem:[#allocation5 + $0x230] sm:$0xff]
        %v4020 = vld [vmem:[#allocation5 + $0x238] sm:$0xff]
        %v4021 = vld [vmem:[#allocation5 + $0x240] sm:$0xff]
        %v4022 = vld [vmem:[#allocation5 + $0x248] sm:$0xff]
        %v4023 = vld [vmem:[#allocation5 + $0x250] sm:$0xff]
        %v4024 = vld [vmem:[#allocation5 + $0x258] sm:$0xff]
        %v4025 = vld [vmem:[#allocation5 + $0x260] sm:$0xff]
        %v4026 = vld [vmem:[#allocation5 + $0x268] sm:$0xff]
        %v4027 = vld [vmem:[#allocation5 + $0x270] sm:$0xff]
        %v4028 = vld [vmem:[#allocation5 + $0x278] sm:$0xff]
        %v4029 = vld [vmem:[#allocation5 + $0x280] sm:$0xff]
        %v4030 = vld [vmem:[#allocation5 + $0x288] sm:$0xff]
        %v4031 = vld [vmem:[#allocation5 + $0x290] sm:$0xff]
        %v4032 = vld [vmem:[#allocation5 + $0x298] sm:$0xff]
        %v4033 = vld [vmem:[#allocation5 + $0x2a0] sm:$0xff]
        %v4034 = vld [vmem:[#allocation5 + $0x2a8] sm:$0xff]
        %v4035 = vld [vmem:[#allocation5 + $0x2b0] sm:$0xff]
        %v4036 = vld [vmem:[#allocation5 + $0x2b8] sm:$0xff]
        %v4037 = vld [vmem:[#allocation5 + $0x2c0] sm:$0xff]
        %v4038 = vld [vmem:[#allocation5 + $0x2c8] sm:$0xff]
        %v4039 = vld [vmem:[#allocation5 + $0x2d0] sm:$0xff]
        %v4040 = vld [vmem:[#allocation5 + $0x2d8] sm:$0xff]
        %v4041 = vld [vmem:[#allocation5 + $0x2e0] sm:$0xff]
        %v4042 = vld [vmem:[#allocation5 + $0x2e8] sm:$0xff]
        %v4043 = vld [vmem:[#allocation5 + $0x2f0] sm:$0xff]
        %v4044 = vld [vmem:[#allocation5 + $0x2f8] sm:$0xff]
        %v4045 = vld [vmem:[#allocation5 + $0x300] sm:$0xff]
        %v4046 = vld [vmem:[#allocation5 + $0x308] sm:$0xff]
        %v4047 = vld [vmem:[#allocation5 + $0x310] sm:$0xff]
        %v4048 = vld [vmem:[#allocation5 + $0x318] sm:$0xff]
        %v4049 = vld [vmem:[#allocation5 + $0x320] sm:$0xff]
        %v4050 = vld [vmem:[#allocation5 + $0x328] sm:$0xff]
        %v4051 = vld [vmem:[#allocation5 + $0x330] sm:$0xff]
        %v4052 = vld [vmem:[#allocation5 + $0x338] sm:$0xff]
        %v4053 = vld [vmem:[#allocation5 + $0x340] sm:$0xff]
        %v4054 = vld [vmem:[#allocation5 + $0x348] sm:$0xff]
        %v4055 = vld [vmem:[#allocation5 + $0x350] sm:$0xff]
        %v4056 = vld [vmem:[#allocation5 + $0x358] sm:$0xff]
        %v4057 = vld [vmem:[#allocation5 + $0x360] sm:$0xff]
        %v4058 = vld [vmem:[#allocation5 + $0x368] sm:$0xff]
        %v4059 = vld [vmem:[#allocation5 + $0x370] sm:$0xff]
        %v4060 = vld [vmem:[#allocation5 + $0x378] sm:$0xff]
        %v4061 = vld [vmem:[#allocation5 + $0x380] sm:$0xff]
        %v4062 = vld [vmem:[#allocation5 + $0x388] sm:$0xff]
        %v4063 = vld [vmem:[#allocation5 + $0x390] sm:$0xff]
        %v4064 = vld [vmem:[#allocation5 + $0x398] sm:$0xff]
        %v4065 = vld [vmem:[#allocation5 + $0x3a0] sm:$0xff]
        %v4066 = vld [vmem:[#allocation5 + $0x3a8] sm:$0xff]
        %v4067 = vld [vmem:[#allocation5 + $0x3b0] sm:$0xff]
        %v4068 = vld [vmem:[#allocation5 + $0x3b8] sm:$0xff]
        %v4069 = vld [vmem:[#allocation5 + $0x3c0] sm:$0xff]
        %v4070 = vld [vmem:[#allocation5 + $0x3c8] sm:$0xff]
        %v4071 = vld [vmem:[#allocation5 + $0x3d0] sm:$0xff]
        %v4072 = vld [vmem:[#allocation5 + $0x3d8] sm:$0xff]
        %v4073 = vld [vmem:[#allocation5 + $0x3e0] sm:$0xff]
        %v4074 = vld [vmem:[#allocation5 + $0x3e8] sm:$0xff]
        %v4075 = vld [vmem:[#allocation5 + $0x3f0] sm:$0xff]
        %v4076 = vld [vmem:[#allocation5 + $0x3f8] sm:$0xff]
        %v4077 = vld [vmem:[#allocation5 + $0x400] sm:$0xff]
        %v4078 = vld [vmem:[#allocation5 + $0x408] sm:$0xff]
        %v4079 = vld [vmem:[#allocation5 + $0x410] sm:$0xff]
        %v4080 = vld [vmem:[#allocation5 + $0x418] sm:$0xff]
        %v4081 = vld [vmem:[#allocation5 + $0x420] sm:$0xff]
        %v4082 = vld [vmem:[#allocation5 + $0x428] sm:$0xff]
        %v4083 = vld [vmem:[#allocation5 + $0x430] sm:$0xff]
        %v4084 = vld [vmem:[#allocation5 + $0x438] sm:$0xff]
        %v4085 = vld [vmem:[#allocation5 + $0x440] sm:$0xff]
        %v4086 = vld [vmem:[#allocation5 + $0x448] sm:$0xff]
        %v4087 = vld [vmem:[#allocation5 + $0x450] sm:$0xff]
        %v4088 = vld [vmem:[#allocation5 + $0x458] sm:$0xff]
        %v4089 = vld [vmem:[#allocation5 + $0x460] sm:$0xff]
        %v4090 = vld [vmem:[#allocation5 + $0x468] sm:$0xff]
        %v4091 = vld [vmem:[#allocation5 + $0x470] sm:$0xff]
        %v4092 = vld [vmem:[#allocation5 + $0x478] sm:$0xff]
        %v4093 = vld [vmem:[#allocation5 + $0x480] sm:$0xff]
        %v4094 = vld [vmem:[#allocation5 + $0x488] sm:$0xff]
        %v4095 = vld [vmem:[#allocation5 + $0x490] sm:$0xff]
        %v4096 = vld [vmem:[#allocation5 + $0x498] sm:$0xff]
        %v4097 = vld [vmem:[#allocation5 + $0x4a0] sm:$0xff]
        %v4098 = vld [vmem:[#allocation5 + $0x4a8] sm:$0xff]
        %v4099 = vld [vmem:[#allocation5 + $0x4b0] sm:$0xff]
        %v4100 = vld [vmem:[#allocation5 + $0x4b8] sm:$0xff]
        %v4101 = vld [vmem:[#allocation5 + $0x4c0] sm:$0xff]
        %v4102 = vld [vmem:[#allocation5 + $0x4c8] sm:$0xff]
        %v4103 = vld [vmem:[#allocation5 + $0x4d0] sm:$0xff]
        %v4104 = vld [vmem:[#allocation5 + $0x4d8] sm:$0xff]
        %v4105 = vld [vmem:[#allocation5 + $0x4e0] sm:$0xff]
        %v4106 = vld [vmem:[#allocation5 + $0x4e8] sm:$0xff]
        %v4107 = vld [vmem:[#allocation5 + $0x4f0] sm:$0xff]
        %v4108 = vld [vmem:[#allocation5 + $0x4f8] sm:$0xff]
        %v4109 = vld [vmem:[%s5] sm:$0xff]
        %v4110 = vld [vmem:[%s5 + $0x8] sm:$0xff]
        %v4111 = vld [vmem:[%s5 + $0x10] sm:$0xff]
        %v4112 = vld [vmem:[%s5 + $0x18] sm:$0xff]
        %v4113 = vld [vmem:[%s5 + $0x20] sm:$0xff]
        %v4114 = vld [vmem:[%s5 + $0x28] sm:$0xff]
        %v4115 = vld [vmem:[%s5 + $0x30] sm:$0xff]
        %v4116 = vld [vmem:[%s5 + $0x38] sm:$0xff]
        %v4117 = vld [vmem:[%s5 + $0x40] sm:$0xff]
        %v4118 = vld [vmem:[%s5 + $0x48] sm:$0xff]
        %v4119 = vld [vmem:[%s5 + $0x50] sm:$0xff]
        %v4120 = vld [vmem:[%s5 + $0x58] sm:$0xff]
        %v4121 = vld [vmem:[%s5 + $0x60] sm:$0xff]
        %v4122 = vld [vmem:[%s5 + $0x68] sm:$0xff]
        %v4123 = vld [vmem:[%s5 + $0x70] sm:$0xff]
        %v4124 = vld [vmem:[%s5 + $0x78] sm:$0xff]
        %v4125 = vld [vmem:[%s5 + $0x80] sm:$0xff]
        %v4126 = vld [vmem:[%s5 + $0x88] sm:$0xff]
        %v4127 = vld [vmem:[%s5 + $0x90] sm:$0xff]
        %v4128 = vld [vmem:[%s5 + $0x98] sm:$0xff]
        %v4129 = vld [vmem:[%s5 + $0xa0] sm:$0xff]
        %v4130 = vld [vmem:[%s5 + $0xa8] sm:$0xff]
        %v4131 = vld [vmem:[%s5 + $0xb0] sm:$0xff]
        %v4132 = vld [vmem:[%s5 + $0xb8] sm:$0xff]
        %v4133 = vld [vmem:[%s5 + $0xc0] sm:$0xff]
        %v4134 = vld [vmem:[%s5 + $0xc8] sm:$0xff]
        %v4135 = vld [vmem:[%s5 + $0xd0] sm:$0xff]
        %v4136 = vld [vmem:[%s5 + $0xd8] sm:$0xff]
        %v4137 = vld [vmem:[%s5 + $0xe0] sm:$0xff]
        %v4138 = vld [vmem:[%s5 + $0xe8] sm:$0xff]
        %v4139 = vld [vmem:[%s5 + $0xf0] sm:$0xff]
        %v4140 = vld [vmem:[%s5 + $0xf8] sm:$0xff]
        %v4141 = vld [vmem:[%s5 + $0x100] sm:$0xff]
        %v4142 = vld [vmem:[%s5 + $0x108] sm:$0xff]
        %v4143 = vld [vmem:[%s5 + $0x110] sm:$0xff]
        %v4144 = vld [vmem:[%s5 + $0x118] sm:$0xff]
        %v4145 = vld [vmem:[%s5 + $0x120] sm:$0xff]
        %v4146 = vld [vmem:[%s5 + $0x128] sm:$0xff]
        %v4147 = vld [vmem:[%s5 + $0x130] sm:$0xff]
        %v4148 = vld [vmem:[%s5 + $0x138] sm:$0xff]
        %v4149 = vld [vmem:[%s5 + $0x140] sm:$0xff]
        %v4150 = vld [vmem:[%s5 + $0x148] sm:$0xff]
        %v4151 = vld [vmem:[%s5 + $0x150] sm:$0xff]
        %v4152 = vld [vmem:[%s5 + $0x158] sm:$0xff]
        %v4153 = vld [vmem:[%s5 + $0x160] sm:$0xff]
        %v4154 = vld [vmem:[%s5 + $0x168] sm:$0xff]
        %v4155 = vld [vmem:[%s5 + $0x170] sm:$0xff]
        %v4156 = vld [vmem:[%s5 + $0x178] sm:$0xff]
        %v4157 = vld [vmem:[%s5 + $0x180] sm:$0xff]
        %v4158 = vld [vmem:[%s5 + $0x188] sm:$0xff]
        %v4159 = vld [vmem:[%s5 + $0x190] sm:$0xff]
        %v4160 = vld [vmem:[%s5 + $0x198] sm:$0xff]
        %v4161 = vld [vmem:[%s5 + $0x1a0] sm:$0xff]
        %v4162 = vld [vmem:[%s5 + $0x1a8] sm:$0xff]
        %v4163 = vld [vmem:[%s5 + $0x1b0] sm:$0xff]
        %v4164 = vld [vmem:[%s5 + $0x1b8] sm:$0xff]
        %v4165 = vld [vmem:[%s5 + $0x1c0] sm:$0xff]
        %v4166 = vld [vmem:[%s5 + $0x1c8] sm:$0xff]
        %v4167 = vld [vmem:[%s5 + $0x1d0] sm:$0xff]
        %v4168 = vld [vmem:[%s5 + $0x1d8] sm:$0xff]
        %v4169 = vld [vmem:[%s5 + $0x1e0] sm:$0xff]
        %v4170 = vld [vmem:[%s5 + $0x1e8] sm:$0xff]
        %v4171 = vld [vmem:[%s5 + $0x1f0] sm:$0xff]
        %v4172 = vld [vmem:[%s5 + $0x1f8] sm:$0xff]
        %v4173 = vld [vmem:[%s5 + $0x200] sm:$0xff]
        %v4174 = vld [vmem:[%s5 + $0x208] sm:$0xff]
        %v4175 = vld [vmem:[%s5 + $0x210] sm:$0xff]
        %v4176 = vld [vmem:[%s5 + $0x218] sm:$0xff]
        %v4177 = vld [vmem:[%s5 + $0x220] sm:$0xff]
        %v4178 = vld [vmem:[%s5 + $0x228] sm:$0xff]
        %v4179 = vld [vmem:[%s5 + $0x230] sm:$0xff]
        %v4180 = vld [vmem:[%s5 + $0x238] sm:$0xff]
        %v4182 = vsel %vm344, %v3953, 0
        %v4185 = vsel %vm344, %v3958, 0
        %v4188 = vsel %vm344, %v3963, 0
        %v4191 = vsel %vm344, %v3968, 0
        %v4194 = vsel %vm344, %v3973, 0
        %v4197 = vsel %vm344, %v3978, 0
        %v4200 = vsel %vm344, %v3983, 0
        %v4203 = vsel %vm344, %v3988, 0
        %v4206 = vsel %vm344, %v3993, 0
        %v4209 = vsel %vm344, %v3998, 0
        %v4212 = vsel %vm344, %v4003, 0
        %v4215 = vsel %vm344, %v4008, 0
        %v4218 = vsel %vm344, %v4013, 0
        %v4221 = vsel %vm344, %v4018, 0
        %v4224 = vsel %vm344, %v4023, 0
        %v4227 = vsel %vm344, %v4028, 0
        %v4230 = vsel %vm344, %v4033, 0
        %v4233 = vsel %vm344, %v4038, 0
        %v4236 = vsel %vm344, %v4043, 0
        %v4239 = vsel %vm344, %v4048, 0
        %v4242 = vsel %vm344, %v4053, 0
        %v4245 = vsel %vm344, %v4058, 0
        %v4248 = vsel %vm344, %v4063, 0
        %v4251 = vsel %vm344, %v4068, 0
        %v4254 = vsel %vm344, %v4073, 0
        %v4257 = vsel %vm344, %v4078, 0
        %v4260 = vsel %vm344, %v4083, 0
        %v4263 = vsel %vm344, %v4088, 0
        %v4266 = vsel %vm344, %v4093, 0
        %v4269 = vsel %vm344, %v4098, 0
        %v4272 = vsel %vm344, %v4103, 0
        %v4275 = vsel %vm344, %v4108, 0
        %4277 = vmatpush.msra.mxu0 %v4124
        %4278 = vmatpush.msra.mxu0 %v4123
        %4279 = vmatpush.msra.mxu0 %v4122
        %4280 = vmatpush.msra.mxu0 %v4121
        %4281 = vmatpush.msra.mxu0 %v4120
        %4282 = vmatpush.msra.mxu0 %v4119
        %4283 = vmatpush.msra.mxu0 %v4118
        %4284 = vmatpush.msra.mxu0 %v4117
        %4285 = vmatpush.msra.mxu0 %v4116
        %4286 = vmatpush.msra.mxu0 %v4115
        %4287 = vmatpush.msra.mxu0 %v4114
        %4288 = vmatpush.msra.mxu0 %v4113
        %4289 = vmatpush.msra.mxu0 %v4112
        %4290 = vmatpush.msra.mxu0 %v4111
        %4291 = vmatpush.msra.mxu0 %v4110
        %4292 = vmatpush.msra.mxu0 %v4109
        %4293 = vmatmul.f32.gmra.mxu0 %v3949
        %v4294 = vpop.f32.mrf.mxu0
        %v4295 = vadd.f32 0.0, %v4294
        %4296 = vmatmul.f32.gmra.mxu0 %v3954
        %v4297 = vpop.f32.mrf.mxu0
        %v4298 = vadd.f32 0.0, %v4297
        %4299 = vmatmul.f32.gmra.mxu0 %v3959
        %v4300 = vpop.f32.mrf.mxu0
        %v4301 = vadd.f32 0.0, %v4300
        %4302 = vmatmul.f32.gmra.mxu0 %v3964
        %v4303 = vpop.f32.mrf.mxu0
        %v4304 = vadd.f32 0.0, %v4303
        %4305 = vmatmul.f32.gmra.mxu0 %v3969
        %v4306 = vpop.f32.mrf.mxu0
        %v4307 = vadd.f32 0.0, %v4306
        %4308 = vmatmul.f32.gmra.mxu0 %v3974
        %v4309 = vpop.f32.mrf.mxu0
        %v4310 = vadd.f32 0.0, %v4309
        %4311 = vmatmul.f32.gmra.mxu0 %v3979
        %v4312 = vpop.f32.mrf.mxu0
        %v4313 = vadd.f32 0.0, %v4312
        %4314 = vmatmul.f32.gmra.mxu0 %v3984
        %v4315 = vpop.f32.mrf.mxu0
        %v4316 = vadd.f32 0.0, %v4315
        %4317 = vmatmul.f32.gmra.mxu0 %v3989
        %v4318 = vpop.f32.mrf.mxu0
        %v4319 = vadd.f32 0.0, %v4318
        %4320 = vmatmul.f32.gmra.mxu0 %v3994
        %v4321 = vpop.f32.mrf.mxu0
        %v4322 = vadd.f32 0.0, %v4321
        %4323 = vmatmul.f32.gmra.mxu0 %v3999
        %v4324 = vpop.f32.mrf.mxu0
        %v4325 = vadd.f32 0.0, %v4324
        %4326 = vmatmul.f32.gmra.mxu0 %v4004
        %v4327 = vpop.f32.mrf.mxu0
        %v4328 = vadd.f32 0.0, %v4327
        %4329 = vmatmul.f32.gmra.mxu0 %v4009
        %v4330 = vpop.f32.mrf.mxu0
        %v4331 = vadd.f32 0.0, %v4330
        %4332 = vmatmul.f32.gmra.mxu0 %v4014
        %v4333 = vpop.f32.mrf.mxu0
        %v4334 = vadd.f32 0.0, %v4333
        %4335 = vmatmul.f32.gmra.mxu0 %v4019
        %v4336 = vpop.f32.mrf.mxu0
        %v4337 = vadd.f32 0.0, %v4336
        %4338 = vmatmul.f32.gmra.mxu0 %v4024
        %v4339 = vpop.f32.mrf.mxu0
        %v4340 = vadd.f32 0.0, %v4339
        %4341 = vmatmul.f32.gmra.mxu0 %v4029
        %v4342 = vpop.f32.mrf.mxu0
        %v4343 = vadd.f32 0.0, %v4342
        %4344 = vmatmul.f32.gmra.mxu0 %v4034
        %v4345 = vpop.f32.mrf.mxu0
        %v4346 = vadd.f32 0.0, %v4345
        %4347 = vmatmul.f32.gmra.mxu0 %v4039
        %v4348 = vpop.f32.mrf.mxu0
        %v4349 = vadd.f32 0.0, %v4348
        %4350 = vmatmul.f32.gmra.mxu0 %v4044
        %v4351 = vpop.f32.mrf.mxu0
        %v4352 = vadd.f32 0.0, %v4351
        %4353 = vmatmul.f32.gmra.mxu0 %v4049
        %v4354 = vpop.f32.mrf.mxu0
        %v4355 = vadd.f32 0.0, %v4354
        %4356 = vmatmul.f32.gmra.mxu0 %v4054
        %v4357 = vpop.f32.mrf.mxu0
        %v4358 = vadd.f32 0.0, %v4357
        %4359 = vmatmul.f32.gmra.mxu0 %v4059
        %v4360 = vpop.f32.mrf.mxu0
        %v4361 = vadd.f32 0.0, %v4360
        %4362 = vmatmul.f32.gmra.mxu0 %v4064
        %v4363 = vpop.f32.mrf.mxu0
        %v4364 = vadd.f32 0.0, %v4363
        %4365 = vmatmul.f32.gmra.mxu0 %v4069
        %v4366 = vpop.f32.mrf.mxu0
        %v4367 = vadd.f32 0.0, %v4366
        %4368 = vmatmul.f32.gmra.mxu0 %v4074
        %v4369 = vpop.f32.mrf.mxu0
        %v4370 = vadd.f32 0.0, %v4369
        %4371 = vmatmul.f32.gmra.mxu0 %v4079
        %v4372 = vpop.f32.mrf.mxu0
        %v4373 = vadd.f32 0.0, %v4372
        %4374 = vmatmul.f32.gmra.mxu0 %v4084
        %v4375 = vpop.f32.mrf.mxu0
        %v4376 = vadd.f32 0.0, %v4375
        %4377 = vmatmul.f32.gmra.mxu0 %v4089
        %v4378 = vpop.f32.mrf.mxu0
        %v4379 = vadd.f32 0.0, %v4378
        %4380 = vmatmul.f32.gmra.mxu0 %v4094
        %v4381 = vpop.f32.mrf.mxu0
        %v4382 = vadd.f32 0.0, %v4381
        %4383 = vmatmul.f32.gmra.mxu0 %v4099
        %v4384 = vpop.f32.mrf.mxu0
        %v4385 = vadd.f32 0.0, %v4384
        %4386 = vmatmul.f32.gmra.mxu0 %v4104
        %v4387 = vpop.f32.mrf.mxu0
        %v4388 = vadd.f32 0.0, %v4387
        %4389 = vdwg.mxu0
        %4390 = vmatpush.msra.mxu0 %v4140
        %4391 = vmatpush.msra.mxu0 %v4139
        %4392 = vmatpush.msra.mxu0 %v4138
        %4393 = vmatpush.msra.mxu0 %v4137
        %4394 = vmatpush.msra.mxu0 %v4136
        %4395 = vmatpush.msra.mxu0 %v4135
        %4396 = vmatpush.msra.mxu0 %v4134
        %4397 = vmatpush.msra.mxu0 %v4133
        %4398 = vmatpush.msra.mxu0 %v4132
        %4399 = vmatpush.msra.mxu0 %v4131
        %4400 = vmatpush.msra.mxu0 %v4130
        %4401 = vmatpush.msra.mxu0 %v4129
        %4402 = vmatpush.msra.mxu0 %v4128
        %4403 = vmatpush.msra.mxu0 %v4127
        %4404 = vmatpush.msra.mxu0 %v4126
        %4405 = vmatpush.msra.mxu0 %v4125
        %4406 = vmatmul.f32.gmra.mxu0 %v3950
        %v4407 = vpop.f32.mrf.mxu0
        %v4408 = vadd.f32 %v4295, %v4407
        %4409 = vmatmul.f32.gmra.mxu0 %v3955
        %v4410 = vpop.f32.mrf.mxu0
        %v4411 = vadd.f32 %v4298, %v4410
        %4412 = vmatmul.f32.gmra.mxu0 %v3960
        %v4413 = vpop.f32.mrf.mxu0
        %v4414 = vadd.f32 %v4301, %v4413
        %4415 = vmatmul.f32.gmra.mxu0 %v3965
        %v4416 = vpop.f32.mrf.mxu0
        %v4417 = vadd.f32 %v4304, %v4416
        %4418 = vmatmul.f32.gmra.mxu0 %v3970
        %v4419 = vpop.f32.mrf.mxu0
        %v4420 = vadd.f32 %v4307, %v4419
        %4421 = vmatmul.f32.gmra.mxu0 %v3975
        %v4422 = vpop.f32.mrf.mxu0
        %v4423 = vadd.f32 %v4310, %v4422
        %4424 = vmatmul.f32.gmra.mxu0 %v3980
        %v4425 = vpop.f32.mrf.mxu0
        %v4426 = vadd.f32 %v4313, %v4425
        %4427 = vmatmul.f32.gmra.mxu0 %v3985
        %v4428 = vpop.f32.mrf.mxu0
        %v4429 = vadd.f32 %v4316, %v4428
        %4430 = vmatmul.f32.gmra.mxu0 %v3990
        %v4431 = vpop.f32.mrf.mxu0
        %v4432 = vadd.f32 %v4319, %v4431
        %4433 = vmatmul.f32.gmra.mxu0 %v3995
        %v4434 = vpop.f32.mrf.mxu0
        %v4435 = vadd.f32 %v4322, %v4434
        %4436 = vmatmul.f32.gmra.mxu0 %v4000
        %v4437 = vpop.f32.mrf.mxu0
        %v4438 = vadd.f32 %v4325, %v4437
        %4439 = vmatmul.f32.gmra.mxu0 %v4005
        %v4440 = vpop.f32.mrf.mxu0
        %v4441 = vadd.f32 %v4328, %v4440
        %4442 = vmatmul.f32.gmra.mxu0 %v4010
        %v4443 = vpop.f32.mrf.mxu0
        %v4444 = vadd.f32 %v4331, %v4443
        %4445 = vmatmul.f32.gmra.mxu0 %v4015
        %v4446 = vpop.f32.mrf.mxu0
        %v4447 = vadd.f32 %v4334, %v4446
        %4448 = vmatmul.f32.gmra.mxu0 %v4020
        %v4449 = vpop.f32.mrf.mxu0
        %v4450 = vadd.f32 %v4337, %v4449
        %4451 = vmatmul.f32.gmra.mxu0 %v4025
        %v4452 = vpop.f32.mrf.mxu0
        %v4453 = vadd.f32 %v4340, %v4452
        %4454 = vmatmul.f32.gmra.mxu0 %v4030
        %v4455 = vpop.f32.mrf.mxu0
        %v4456 = vadd.f32 %v4343, %v4455
        %4457 = vmatmul.f32.gmra.mxu0 %v4035
        %v4458 = vpop.f32.mrf.mxu0
        %v4459 = vadd.f32 %v4346, %v4458
        %4460 = vmatmul.f32.gmra.mxu0 %v4040
        %v4461 = vpop.f32.mrf.mxu0
        %v4462 = vadd.f32 %v4349, %v4461
        %4463 = vmatmul.f32.gmra.mxu0 %v4045
        %v4464 = vpop.f32.mrf.mxu0
        %v4465 = vadd.f32 %v4352, %v4464
        %4466 = vmatmul.f32.gmra.mxu0 %v4050
        %v4467 = vpop.f32.mrf.mxu0
        %v4468 = vadd.f32 %v4355, %v4467
        %4469 = vmatmul.f32.gmra.mxu0 %v4055
        %v4470 = vpop.f32.mrf.mxu0
        %v4471 = vadd.f32 %v4358, %v4470
        %4472 = vmatmul.f32.gmra.mxu0 %v4060
        %v4473 = vpop.f32.mrf.mxu0
        %v4474 = vadd.f32 %v4361, %v4473
        %4475 = vmatmul.f32.gmra.mxu0 %v4065
        %v4476 = vpop.f32.mrf.mxu0
        %v4477 = vadd.f32 %v4364, %v4476
        %4478 = vmatmul.f32.gmra.mxu0 %v4070
        %v4479 = vpop.f32.mrf.mxu0
        %v4480 = vadd.f32 %v4367, %v4479
        %4481 = vmatmul.f32.gmra.mxu0 %v4075
        %v4482 = vpop.f32.mrf.mxu0
        %v4483 = vadd.f32 %v4370, %v4482
        %4484 = vmatmul.f32.gmra.mxu0 %v4080
        %v4485 = vpop.f32.mrf.mxu0
        %v4486 = vadd.f32 %v4373, %v4485
        %4487 = vmatmul.f32.gmra.mxu0 %v4085
        %v4488 = vpop.f32.mrf.mxu0
        %v4489 = vadd.f32 %v4376, %v4488
        %4490 = vmatmul.f32.gmra.mxu0 %v4090
        %v4491 = vpop.f32.mrf.mxu0
        %v4492 = vadd.f32 %v4379, %v4491
        %4493 = vmatmul.f32.gmra.mxu0 %v4095
        %v4494 = vpop.f32.mrf.mxu0
        %v4495 = vadd.f32 %v4382, %v4494
        %4496 = vmatmul.f32.gmra.mxu0 %v4100
        %v4497 = vpop.f32.mrf.mxu0
        %v4498 = vadd.f32 %v4385, %v4497
        %4499 = vmatmul.f32.gmra.mxu0 %v4105
        %v4500 = vpop.f32.mrf.mxu0
        %v4501 = vadd.f32 %v4388, %v4500
        %4502 = vdwg.mxu0
        %4503 = vmatpush.msra.mxu0 %v4156
        %4504 = vmatpush.msra.mxu0 %v4155
        %4505 = vmatpush.msra.mxu0 %v4154
        %4506 = vmatpush.msra.mxu0 %v4153
        %4507 = vmatpush.msra.mxu0 %v4152
        %4508 = vmatpush.msra.mxu0 %v4151
        %4509 = vmatpush.msra.mxu0 %v4150
        %4510 = vmatpush.msra.mxu0 %v4149
        %4511 = vmatpush.msra.mxu0 %v4148
        %4512 = vmatpush.msra.mxu0 %v4147
        %4513 = vmatpush.msra.mxu0 %v4146
        %4514 = vmatpush.msra.mxu0 %v4145
        %4515 = vmatpush.msra.mxu0 %v4144
        %4516 = vmatpush.msra.mxu0 %v4143
        %4517 = vmatpush.msra.mxu0 %v4142
        %4518 = vmatpush.msra.mxu0 %v4141
        %4519 = vmatmul.f32.gmra.mxu0 %v3951
        %v4520 = vpop.f32.mrf.mxu0
        %v4521 = vadd.f32 %v4408, %v4520
        %4522 = vmatmul.f32.gmra.mxu0 %v3956
        %v4523 = vpop.f32.mrf.mxu0
        %v4524 = vadd.f32 %v4411, %v4523
        %4525 = vmatmul.f32.gmra.mxu0 %v3961
        %v4526 = vpop.f32.mrf.mxu0
        %v4527 = vadd.f32 %v4414, %v4526
        %4528 = vmatmul.f32.gmra.mxu0 %v3966
        %v4529 = vpop.f32.mrf.mxu0
        %v4530 = vadd.f32 %v4417, %v4529
        %4531 = vmatmul.f32.gmra.mxu0 %v3971
        %v4532 = vpop.f32.mrf.mxu0
        %v4533 = vadd.f32 %v4420, %v4532
        %4534 = vmatmul.f32.gmra.mxu0 %v3976
        %v4535 = vpop.f32.mrf.mxu0
        %v4536 = vadd.f32 %v4423, %v4535
        %4537 = vmatmul.f32.gmra.mxu0 %v3981
        %v4538 = vpop.f32.mrf.mxu0
        %v4539 = vadd.f32 %v4426, %v4538
        %4540 = vmatmul.f32.gmra.mxu0 %v3986
        %v4541 = vpop.f32.mrf.mxu0
        %v4542 = vadd.f32 %v4429, %v4541
        %4543 = vmatmul.f32.gmra.mxu0 %v3991
        %v4544 = vpop.f32.mrf.mxu0
        %v4545 = vadd.f32 %v4432, %v4544
        %4546 = vmatmul.f32.gmra.mxu0 %v3996
        %v4547 = vpop.f32.mrf.mxu0
        %v4548 = vadd.f32 %v4435, %v4547
        %4549 = vmatmul.f32.gmra.mxu0 %v4001
        %v4550 = vpop.f32.mrf.mxu0
        %v4551 = vadd.f32 %v4438, %v4550
        %4552 = vmatmul.f32.gmra.mxu0 %v4006
        %v4553 = vpop.f32.mrf.mxu0
        %v4554 = vadd.f32 %v4441, %v4553
        %4555 = vmatmul.f32.gmra.mxu0 %v4011
        %v4556 = vpop.f32.mrf.mxu0
        %v4557 = vadd.f32 %v4444, %v4556
        %4558 = vmatmul.f32.gmra.mxu0 %v4016
        %v4559 = vpop.f32.mrf.mxu0
        %v4560 = vadd.f32 %v4447, %v4559
        %4561 = vmatmul.f32.gmra.mxu0 %v4021
        %v4562 = vpop.f32.mrf.mxu0
        %v4563 = vadd.f32 %v4450, %v4562
        %4564 = vmatmul.f32.gmra.mxu0 %v4026
        %v4565 = vpop.f32.mrf.mxu0
        %v4566 = vadd.f32 %v4453, %v4565
        %4567 = vmatmul.f32.gmra.mxu0 %v4031
        %v4568 = vpop.f32.mrf.mxu0
        %v4569 = vadd.f32 %v4456, %v4568
        %4570 = vmatmul.f32.gmra.mxu0 %v4036
        %v4571 = vpop.f32.mrf.mxu0
        %v4572 = vadd.f32 %v4459, %v4571
        %4573 = vmatmul.f32.gmra.mxu0 %v4041
        %v4574 = vpop.f32.mrf.mxu0
        %v4575 = vadd.f32 %v4462, %v4574
        %4576 = vmatmul.f32.gmra.mxu0 %v4046
        %v4577 = vpop.f32.mrf.mxu0
        %v4578 = vadd.f32 %v4465, %v4577
        %4579 = vmatmul.f32.gmra.mxu0 %v4051
        %v4580 = vpop.f32.mrf.mxu0
        %v4581 = vadd.f32 %v4468, %v4580
        %4582 = vmatmul.f32.gmra.mxu0 %v4056
        %v4583 = vpop.f32.mrf.mxu0
        %v4584 = vadd.f32 %v4471, %v4583
        %4585 = vmatmul.f32.gmra.mxu0 %v4061
        %v4586 = vpop.f32.mrf.mxu0
        %v4587 = vadd.f32 %v4474, %v4586
        %4588 = vmatmul.f32.gmra.mxu0 %v4066
        %v4589 = vpop.f32.mrf.mxu0
        %v4590 = vadd.f32 %v4477, %v4589
        %4591 = vmatmul.f32.gmra.mxu0 %v4071
        %v4592 = vpop.f32.mrf.mxu0
        %v4593 = vadd.f32 %v4480, %v4592
        %4594 = vmatmul.f32.gmra.mxu0 %v4076
        %v4595 = vpop.f32.mrf.mxu0
        %v4596 = vadd.f32 %v4483, %v4595
        %4597 = vmatmul.f32.gmra.mxu0 %v4081
        %v4598 = vpop.f32.mrf.mxu0
        %v4599 = vadd.f32 %v4486, %v4598
        %4600 = vmatmul.f32.gmra.mxu0 %v4086
        %v4601 = vpop.f32.mrf.mxu0
        %v4602 = vadd.f32 %v4489, %v4601
        %4603 = vmatmul.f32.gmra.mxu0 %v4091
        %v4604 = vpop.f32.mrf.mxu0
        %v4605 = vadd.f32 %v4492, %v4604
        %4606 = vmatmul.f32.gmra.mxu0 %v4096
        %v4607 = vpop.f32.mrf.mxu0
        %v4608 = vadd.f32 %v4495, %v4607
        %4609 = vmatmul.f32.gmra.mxu0 %v4101
        %v4610 = vpop.f32.mrf.mxu0
        %v4611 = vadd.f32 %v4498, %v4610
        %4612 = vmatmul.f32.gmra.mxu0 %v4106
        %v4613 = vpop.f32.mrf.mxu0
        %v4614 = vadd.f32 %v4501, %v4613
        %4615 = vdwg.mxu0
        %4616 = vmatpush.msra.mxu0 %v4172
        %4617 = vmatpush.msra.mxu0 %v4171
        %4618 = vmatpush.msra.mxu0 %v4170
        %4619 = vmatpush.msra.mxu0 %v4169
        %4620 = vmatpush.msra.mxu0 %v4168
        %4621 = vmatpush.msra.mxu0 %v4167
        %4622 = vmatpush.msra.mxu0 %v4166
        %4623 = vmatpush.msra.mxu0 %v4165
        %4624 = vmatpush.msra.mxu0 %v4164
        %4625 = vmatpush.msra.mxu0 %v4163
        %4626 = vmatpush.msra.mxu0 %v4162
        %4627 = vmatpush.msra.mxu0 %v4161
        %4628 = vmatpush.msra.mxu0 %v4160
        %4629 = vmatpush.msra.mxu0 %v4159
        %4630 = vmatpush.msra.mxu0 %v4158
        %4631 = vmatpush.msra.mxu0 %v4157
        %4632 = vmatmul.f32.gmra.mxu0 %v3952
        %v4633 = vpop.f32.mrf.mxu0
        %v4634 = vadd.f32 %v4521, %v4633
        %4635 = vmatmul.f32.gmra.mxu0 %v3957
        %v4636 = vpop.f32.mrf.mxu0
        %v4637 = vadd.f32 %v4524, %v4636
        %4638 = vmatmul.f32.gmra.mxu0 %v3962
        %v4639 = vpop.f32.mrf.mxu0
        %v4640 = vadd.f32 %v4527, %v4639
        %4641 = vmatmul.f32.gmra.mxu0 %v3967
        %v4642 = vpop.f32.mrf.mxu0
        %v4643 = vadd.f32 %v4530, %v4642
        %4644 = vmatmul.f32.gmra.mxu0 %v3972
        %v4645 = vpop.f32.mrf.mxu0
        %v4646 = vadd.f32 %v4533, %v4645
        %4647 = vmatmul.f32.gmra.mxu0 %v3977
        %v4648 = vpop.f32.mrf.mxu0
        %v4649 = vadd.f32 %v4536, %v4648
        %4650 = vmatmul.f32.gmra.mxu0 %v3982
        %v4651 = vpop.f32.mrf.mxu0
        %v4652 = vadd.f32 %v4539, %v4651
        %4653 = vmatmul.f32.gmra.mxu0 %v3987
        %v4654 = vpop.f32.mrf.mxu0
        %v4655 = vadd.f32 %v4542, %v4654
        %4656 = vmatmul.f32.gmra.mxu0 %v3992
        %v4657 = vpop.f32.mrf.mxu0
        %v4658 = vadd.f32 %v4545, %v4657
        %4659 = vmatmul.f32.gmra.mxu0 %v3997
        %v4660 = vpop.f32.mrf.mxu0
        %v4661 = vadd.f32 %v4548, %v4660
        %4662 = vmatmul.f32.gmra.mxu0 %v4002
        %v4663 = vpop.f32.mrf.mxu0
        %v4664 = vadd.f32 %v4551, %v4663
        %4665 = vmatmul.f32.gmra.mxu0 %v4007
        %v4666 = vpop.f32.mrf.mxu0
        %v4667 = vadd.f32 %v4554, %v4666
        %4668 = vmatmul.f32.gmra.mxu0 %v4012
        %v4669 = vpop.f32.mrf.mxu0
        %v4670 = vadd.f32 %v4557, %v4669
        %4671 = vmatmul.f32.gmra.mxu0 %v4017
        %v4672 = vpop.f32.mrf.mxu0
        %v4673 = vadd.f32 %v4560, %v4672
        %4674 = vmatmul.f32.gmra.mxu0 %v4022
        %v4675 = vpop.f32.mrf.mxu0
        %v4676 = vadd.f32 %v4563, %v4675
        %4677 = vmatmul.f32.gmra.mxu0 %v4027
        %v4678 = vpop.f32.mrf.mxu0
        %v4679 = vadd.f32 %v4566, %v4678
        %4680 = vmatmul.f32.gmra.mxu0 %v4032
        %v4681 = vpop.f32.mrf.mxu0
        %v4682 = vadd.f32 %v4569, %v4681
        %4683 = vmatmul.f32.gmra.mxu0 %v4037
        %v4684 = vpop.f32.mrf.mxu0
        %v4685 = vadd.f32 %v4572, %v4684
        %4686 = vmatmul.f32.gmra.mxu0 %v4042
        %v4687 = vpop.f32.mrf.mxu0
        %v4688 = vadd.f32 %v4575, %v4687
        %4689 = vmatmul.f32.gmra.mxu0 %v4047
        %v4690 = vpop.f32.mrf.mxu0
        %v4691 = vadd.f32 %v4578, %v4690
        %4692 = vmatmul.f32.gmra.mxu0 %v4052
        %v4693 = vpop.f32.mrf.mxu0
        %v4694 = vadd.f32 %v4581, %v4693
        %4695 = vmatmul.f32.gmra.mxu0 %v4057
        %v4696 = vpop.f32.mrf.mxu0
        %v4697 = vadd.f32 %v4584, %v4696
        %4698 = vmatmul.f32.gmra.mxu0 %v4062
        %v4699 = vpop.f32.mrf.mxu0
        %v4700 = vadd.f32 %v4587, %v4699
        %4701 = vmatmul.f32.gmra.mxu0 %v4067
        %v4702 = vpop.f32.mrf.mxu0
        %v4703 = vadd.f32 %v4590, %v4702
        %4704 = vmatmul.f32.gmra.mxu0 %v4072
        %v4705 = vpop.f32.mrf.mxu0
        %v4706 = vadd.f32 %v4593, %v4705
        %4707 = vmatmul.f32.gmra.mxu0 %v4077
        %v4708 = vpop.f32.mrf.mxu0
        %v4709 = vadd.f32 %v4596, %v4708
        %4710 = vmatmul.f32.gmra.mxu0 %v4082
        %v4711 = vpop.f32.mrf.mxu0
        %v4712 = vadd.f32 %v4599, %v4711
        %4713 = vmatmul.f32.gmra.mxu0 %v4087
        %v4714 = vpop.f32.mrf.mxu0
        %v4715 = vadd.f32 %v4602, %v4714
        %4716 = vmatmul.f32.gmra.mxu0 %v4092
        %v4717 = vpop.f32.mrf.mxu0
        %v4718 = vadd.f32 %v4605, %v4717
        %4719 = vmatmul.f32.gmra.mxu0 %v4097
        %v4720 = vpop.f32.mrf.mxu0
        %v4721 = vadd.f32 %v4608, %v4720
        %4722 = vmatmul.f32.gmra.mxu0 %v4102
        %v4723 = vpop.f32.mrf.mxu0
        %v4724 = vadd.f32 %v4611, %v4723
        %4725 = vmatmul.f32.gmra.mxu0 %v4107
        %v4726 = vpop.f32.mrf.mxu0
        %v4727 = vadd.f32 %v4614, %v4726
        %4728 = vdwg.mxu0
        %4729 = vmatpush.msra.mxu0 0.0
        %4730 = vmatpush.msra.mxu0 0.0
        %4731 = vmatpush.msra.mxu0 0.0
        %4732 = vmatpush.msra.mxu0 0.0
        %4733 = vmatpush.msra.mxu0 0.0
        %4734 = vmatpush.msra.mxu0 0.0
        %4735 = vmatpush.msra.mxu0 0.0
        %4736 = vmatpush.msra.mxu0 0.0
        %4737 = vmatpush.msra.mxu0 %v4180
        %4738 = vmatpush.msra.mxu0 %v4179
        %4739 = vmatpush.msra.mxu0 %v4178
        %4740 = vmatpush.msra.mxu0 %v4177
        %4741 = vmatpush.msra.mxu0 %v4176
        %4742 = vmatpush.msra.mxu0 %v4175
        %4743 = vmatpush.msra.mxu0 %v4174
        %4744 = vmatpush.msra.mxu0 %v4173
        %4745 = vmatmul.f32.gmra.mxu0 %v4182
        %v4746 = vpop.f32.mrf.mxu0
        %v4747 = vadd.f32 %v4634, %v4746
        %4748 = vmatmul.f32.gmra.mxu0 %v4185
        %v4749 = vpop.f32.mrf.mxu0
        %v4750 = vadd.f32 %v4637, %v4749
        %4751 = vmatmul.f32.gmra.mxu0 %v4188
        %v4752 = vpop.f32.mrf.mxu0
        %v4753 = vadd.f32 %v4640, %v4752
        %4754 = vmatmul.f32.gmra.mxu0 %v4191
        %v4755 = vpop.f32.mrf.mxu0
        %v4756 = vadd.f32 %v4643, %v4755
        %4757 = vmatmul.f32.gmra.mxu0 %v4194
        %v4758 = vpop.f32.mrf.mxu0
        %v4759 = vadd.f32 %v4646, %v4758
        %4760 = vmatmul.f32.gmra.mxu0 %v4197
        %v4761 = vpop.f32.mrf.mxu0
        %v4762 = vadd.f32 %v4649, %v4761
        %4763 = vmatmul.f32.gmra.mxu0 %v4200
        %v4764 = vpop.f32.mrf.mxu0
        %v4765 = vadd.f32 %v4652, %v4764
        %4766 = vmatmul.f32.gmra.mxu0 %v4203
        %v4767 = vpop.f32.mrf.mxu0
        %v4768 = vadd.f32 %v4655, %v4767
        %4769 = vmatmul.f32.gmra.mxu0 %v4206
        %v4770 = vpop.f32.mrf.mxu0
        %v4771 = vadd.f32 %v4658, %v4770
        %4772 = vmatmul.f32.gmra.mxu0 %v4209
        %v4773 = vpop.f32.mrf.mxu0
        %v4774 = vadd.f32 %v4661, %v4773
        %4775 = vmatmul.f32.gmra.mxu0 %v4212
        %v4776 = vpop.f32.mrf.mxu0
        %v4777 = vadd.f32 %v4664, %v4776
        %4778 = vmatmul.f32.gmra.mxu0 %v4215
        %v4779 = vpop.f32.mrf.mxu0
        %v4780 = vadd.f32 %v4667, %v4779
        %4781 = vmatmul.f32.gmra.mxu0 %v4218
        %v4782 = vpop.f32.mrf.mxu0
        %v4783 = vadd.f32 %v4670, %v4782
        %4784 = vmatmul.f32.gmra.mxu0 %v4221
        %v4785 = vpop.f32.mrf.mxu0
        %v4786 = vadd.f32 %v4673, %v4785
        %4787 = vmatmul.f32.gmra.mxu0 %v4224
        %v4788 = vpop.f32.mrf.mxu0
        %v4789 = vadd.f32 %v4676, %v4788
        %4790 = vmatmul.f32.gmra.mxu0 %v4227
        %v4791 = vpop.f32.mrf.mxu0
        %v4792 = vadd.f32 %v4679, %v4791
        %4793 = vmatmul.f32.gmra.mxu0 %v4230
        %v4794 = vpop.f32.mrf.mxu0
        %v4795 = vadd.f32 %v4682, %v4794
        %4796 = vmatmul.f32.gmra.mxu0 %v4233
        %v4797 = vpop.f32.mrf.mxu0
        %v4798 = vadd.f32 %v4685, %v4797
        %4799 = vmatmul.f32.gmra.mxu0 %v4236
        %v4800 = vpop.f32.mrf.mxu0
        %v4801 = vadd.f32 %v4688, %v4800
        %4802 = vmatmul.f32.gmra.mxu0 %v4239
        %v4803 = vpop.f32.mrf.mxu0
        %v4804 = vadd.f32 %v4691, %v4803
        %4805 = vmatmul.f32.gmra.mxu0 %v4242
        %v4806 = vpop.f32.mrf.mxu0
        %v4807 = vadd.f32 %v4694, %v4806
        %4808 = vmatmul.f32.gmra.mxu0 %v4245
        %v4809 = vpop.f32.mrf.mxu0
        %v4810 = vadd.f32 %v4697, %v4809
        %4811 = vmatmul.f32.gmra.mxu0 %v4248
        %v4812 = vpop.f32.mrf.mxu0
        %v4813 = vadd.f32 %v4700, %v4812
        %4814 = vmatmul.f32.gmra.mxu0 %v4251
        %v4815 = vpop.f32.mrf.mxu0
        %v4816 = vadd.f32 %v4703, %v4815
        %4817 = vmatmul.f32.gmra.mxu0 %v4254
        %v4818 = vpop.f32.mrf.mxu0
        %v4819 = vadd.f32 %v4706, %v4818
        %4820 = vmatmul.f32.gmra.mxu0 %v4257
        %v4821 = vpop.f32.mrf.mxu0
        %v4822 = vadd.f32 %v4709, %v4821
        %4823 = vmatmul.f32.gmra.mxu0 %v4260
        %v4824 = vpop.f32.mrf.mxu0
        %v4825 = vadd.f32 %v4712, %v4824
        %4826 = vmatmul.f32.gmra.mxu0 %v4263
        %v4827 = vpop.f32.mrf.mxu0
        %v4828 = vadd.f32 %v4715, %v4827
        %4829 = vmatmul.f32.gmra.mxu0 %v4266
        %v4830 = vpop.f32.mrf.mxu0
        %v4831 = vadd.f32 %v4718, %v4830
        %4832 = vmatmul.f32.gmra.mxu0 %v4269
        %v4833 = vpop.f32.mrf.mxu0
        %v4834 = vadd.f32 %v4721, %v4833
        %4835 = vmatmul.f32.gmra.mxu0 %v4272
        %v4836 = vpop.f32.mrf.mxu0
        %v4837 = vadd.f32 %v4724, %v4836
        %4838 = vmatmul.f32.gmra.mxu0 %v4275
        %v4839 = vpop.f32.mrf.mxu0
        %v4840 = vadd.f32 %v4727, %v4839
        %4841 = vdwg.mxu0
        %v4842 = vld [vmem:[%s6] sm:$0x1]
        %v4844 = vperm.slane %v4842, 0
        %v4846 = vmul.f32 %v4747, %v4844
        %v4847 = vmul.f32 %v4750, %v4844
        %v4848 = vmul.f32 %v4753, %v4844
        %v4849 = vmul.f32 %v4756, %v4844
        %v4850 = vmul.f32 %v4759, %v4844
        %v4851 = vmul.f32 %v4762, %v4844
        %v4852 = vmul.f32 %v4765, %v4844
        %v4853 = vmul.f32 %v4768, %v4844
        %v4854 = vmul.f32 %v4771, %v4844
        %v4855 = vmul.f32 %v4774, %v4844
        %v4856 = vmul.f32 %v4777, %v4844
        %v4857 = vmul.f32 %v4780, %v4844
        %v4858 = vmul.f32 %v4783, %v4844
        %v4859 = vmul.f32 %v4786, %v4844
        %v4860 = vmul.f32 %v4789, %v4844
        %v4861 = vmul.f32 %v4792, %v4844
        %v4862 = vmul.f32 %v4795, %v4844
        %v4863 = vmul.f32 %v4798, %v4844
        %v4864 = vmul.f32 %v4801, %v4844
        %v4865 = vmul.f32 %v4804, %v4844
        %v4866 = vmul.f32 %v4807, %v4844
        %v4867 = vmul.f32 %v4810, %v4844
        %v4868 = vmul.f32 %v4813, %v4844
        %v4869 = vmul.f32 %v4816, %v4844
        %v4870 = vmul.f32 %v4819, %v4844
        %v4871 = vmul.f32 %v4822, %v4844
        %v4872 = vmul.f32 %v4825, %v4844
        %v4873 = vmul.f32 %v4828, %v4844
        %v4874 = vmul.f32 %v4831, %v4844
        %v4875 = vmul.f32 %v4834, %v4844
        %v4876 = vmul.f32 %v4837, %v4844
        %v4877 = vmul.f32 %v4840, %v4844
        %v4878 = vld [vmem:[%s7] sm:$0x1]
        %v4880 = vperm.slane %v4878, 0
        %v4882 = vadd.f32 %v4846, %v4880
        %v4883 = vadd.f32 %v4847, %v4880
        %v4884 = vadd.f32 %v4848, %v4880
        %v4885 = vadd.f32 %v4849, %v4880
        %v4886 = vadd.f32 %v4850, %v4880
        %v4887 = vadd.f32 %v4851, %v4880
        %v4888 = vadd.f32 %v4852, %v4880
        %v4889 = vadd.f32 %v4853, %v4880
        %v4890 = vadd.f32 %v4854, %v4880
        %v4891 = vadd.f32 %v4855, %v4880
        %v4892 = vadd.f32 %v4856, %v4880
        %v4893 = vadd.f32 %v4857, %v4880
        %v4894 = vadd.f32 %v4858, %v4880
        %v4895 = vadd.f32 %v4859, %v4880
        %v4896 = vadd.f32 %v4860, %v4880
        %v4897 = vadd.f32 %v4861, %v4880
        %v4898 = vadd.f32 %v4862, %v4880
        %v4899 = vadd.f32 %v4863, %v4880
        %v4900 = vadd.f32 %v4864, %v4880
        %v4901 = vadd.f32 %v4865, %v4880
        %v4902 = vadd.f32 %v4866, %v4880
        %v4903 = vadd.f32 %v4867, %v4880
        %v4904 = vadd.f32 %v4868, %v4880
        %v4905 = vadd.f32 %v4869, %v4880
        %v4906 = vadd.f32 %v4870, %v4880
        %v4907 = vadd.f32 %v4871, %v4880
        %v4908 = vadd.f32 %v4872, %v4880
        %v4909 = vadd.f32 %v4873, %v4880
        %v4910 = vadd.f32 %v4874, %v4880
        %v4911 = vadd.f32 %v4875, %v4880
        %v4912 = vadd.f32 %v4876, %v4880
        %v4913 = vadd.f32 %v4877, %v4880
        %v4914 = vmax.f32 %v4882, 0.0
        %v4915 = vmax.f32 %v4883, 0.0
        %v4916 = vmax.f32 %v4884, 0.0
        %v4917 = vmax.f32 %v4885, 0.0
        %v4918 = vmax.f32 %v4886, 0.0
        %v4919 = vmax.f32 %v4887, 0.0
        %v4920 = vmax.f32 %v4888, 0.0
        %v4921 = vmax.f32 %v4889, 0.0
        %v4922 = vmax.f32 %v4890, 0.0
        %v4923 = vmax.f32 %v4891, 0.0
        %v4924 = vmax.f32 %v4892, 0.0
        %v4925 = vmax.f32 %v4893, 0.0
        %v4926 = vmax.f32 %v4894, 0.0
        %v4927 = vmax.f32 %v4895, 0.0
        %v4928 = vmax.f32 %v4896, 0.0
        %v4929 = vmax.f32 %v4897, 0.0
        %v4930 = vmax.f32 %v4898, 0.0
        %v4931 = vmax.f32 %v4899, 0.0
        %v4932 = vmax.f32 %v4900, 0.0
        %v4933 = vmax.f32 %v4901, 0.0
        %v4934 = vmax.f32 %v4902, 0.0
        %v4935 = vmax.f32 %v4903, 0.0
        %v4936 = vmax.f32 %v4904, 0.0
        %v4937 = vmax.f32 %v4905, 0.0
        %v4938 = vmax.f32 %v4906, 0.0
        %v4939 = vmax.f32 %v4907, 0.0
        %v4940 = vmax.f32 %v4908, 0.0
        %v4941 = vmax.f32 %v4909, 0.0
        %v4942 = vmax.f32 %v4910, 0.0
        %v4943 = vmax.f32 %v4911, 0.0
        %v4944 = vmax.f32 %v4912, 0.0
        %v4945 = vmax.f32 %v4913, 0.0
        %4946 = vst.msk [vmem:[%s298] sm:$0xff] %vm344, %v4914
        %4947 = vst.msk [vmem:[%s298 + $0x8] sm:$0xff] %vm344, %v4915
        %4948 = vst.msk [vmem:[%s298 + $0x10] sm:$0xff] %vm344, %v4916
        %4949 = vst.msk [vmem:[%s298 + $0x18] sm:$0xff] %vm344, %v4917
        %4950 = vst.msk [vmem:[%s298 + $0x20] sm:$0xff] %vm344, %v4918
        %4951 = vst.msk [vmem:[%s298 + $0x28] sm:$0xff] %vm344, %v4919
        %4952 = vst.msk [vmem:[%s298 + $0x30] sm:$0xff] %vm344, %v4920
        %4953 = vst.msk [vmem:[%s298 + $0x38] sm:$0xff] %vm344, %v4921
        %4954 = vst.msk [vmem:[%s298 + $0x40] sm:$0xff] %vm344, %v4922
        %4955 = vst.msk [vmem:[%s298 + $0x48] sm:$0xff] %vm344, %v4923
        %4956 = vst.msk [vmem:[%s298 + $0x50] sm:$0xff] %vm344, %v4924
        %4957 = vst.msk [vmem:[%s298 + $0x58] sm:$0xff] %vm344, %v4925
        %4958 = vst.msk [vmem:[%s298 + $0x60] sm:$0xff] %vm344, %v4926
        %4959 = vst.msk [vmem:[%s298 + $0x68] sm:$0xff] %vm344, %v4927
        %4960 = vst.msk [vmem:[%s298 + $0x70] sm:$0xff] %vm344, %v4928
        %4961 = vst.msk [vmem:[%s298 + $0x78] sm:$0xff] %vm344, %v4929
        %4962 = vst.msk [vmem:[%s298 + $0x80] sm:$0xff] %vm344, %v4930
        %4963 = vst.msk [vmem:[%s298 + $0x88] sm:$0xff] %vm344, %v4931
        %4964 = vst.msk [vmem:[%s298 + $0x90] sm:$0xff] %vm344, %v4932
        %4965 = vst.msk [vmem:[%s298 + $0x98] sm:$0xff] %vm344, %v4933
        %4966 = vst.msk [vmem:[%s298 + $0xa0] sm:$0xff] %vm344, %v4934
        %4967 = vst.msk [vmem:[%s298 + $0xa8] sm:$0xff] %vm344, %v4935
        %4968 = vst.msk [vmem:[%s298 + $0xb0] sm:$0xff] %vm344, %v4936
        %4969 = vst.msk [vmem:[%s298 + $0xb8] sm:$0xff] %vm344, %v4937
        %4970 = vst.msk [vmem:[%s298 + $0xc0] sm:$0xff] %vm344, %v4938
        %4971 = vst.msk [vmem:[%s298 + $0xc8] sm:$0xff] %vm344, %v4939
        %4972 = vst.msk [vmem:[%s298 + $0xd0] sm:$0xff] %vm344, %v4940
        %4973 = vst.msk [vmem:[%s298 + $0xd8] sm:$0xff] %vm344, %v4941
        %4974 = vst.msk [vmem:[%s298 + $0xe0] sm:$0xff] %vm344, %v4942
        %4975 = vst.msk [vmem:[%s298 + $0xe8] sm:$0xff] %vm344, %v4943
        %4976 = vst.msk [vmem:[%s298 + $0xf0] sm:$0xff] %vm344, %v4944
        %4977 = vst.msk [vmem:[%s298 + $0xf8] sm:$0xff] %vm344, %v4945
        %s4978 = sand.u32 %s203, 1
        %s4979 = scalar_lea.sflag [#allocation7], %s4978
        %s4980 = sand.u32 %s203, 1
        %s4981 = smul.addr %s4980, 256
        %s4982 = scalar_lea.vmem [#allocation6], %s4981
        // Predicated region
        $region53: #{up_forward.1} parent=51 // pred_check
          %p4983 = pneg %p213
        $region54: #{up_forward.1} parent=51 // pred_check_branch
          %4985 = sbr.rel (%p4983) target = $region56
        $region55: #{up_forward.1} parent=51 // pred_region
          %4987 = vsyncadd %s4979, 0
          %s4988 = smul.addr %s22, 32
          %s4989 = smul.addr %s4988, 8
          %s4990 = scalar_lea.hbm %s8, %s4989
          %s4991 = sshll.u32 %s4982, 4
          %s4992 = int_to_ptr.vmem [resolvable:$true] %s4991
          %s4993 = sshll.u32 %s4990, 4
          %s4994 = int_to_ptr.hbm [resolvable:$true] %s4993
          %4999 = dma.vmem_to_hbm [thread:$0]  %s4992, 4096, %s4994, %s4979, 128, 128, 8
        $region56: #{up_forward.1} parent=51 // pred_fallthru
          _
      $region52: #{up_forward.1} parent=5 // pred_fallthru
        _
      %p5000 = scmp.le.s32.totalorder 2, %s17
      // Predicated region
      $region57: #{up_forward.1} parent=5 // pred_check
        %p5001 = pneg %p5000
      $region58: #{up_forward.1} parent=5 // pred_check_branch
        %5003 = sbr.rel (%p5001) target = $region60
      $region59: #{up_forward.1} parent=5 // pred_region
        %s5004 = ssub.s32 %s17, 2
        // Predicated region
        $region61: #{up_forward.1} parent=59 // pred_check
          %p5005 = pneg %p219
        $region62: #{up_forward.1} parent=59 // pred_check_branch
          %5007 = sbr.rel (%p5005) target = $region64
        $region63: #{up_forward.1} parent=59 // pred_region
          %s5008 = sand.u32 %s204, 1
          %s5009 = scalar_lea.sflag [#allocation7], %s5008
          %s5010 = sand.u32 %s204, 1
          %s5011 = smul.addr %s5010, 256
          %s5012 = scalar_lea.vmem [#allocation6], %s5011
          %5014 = dma.done %s5009, 4096
        $region64: #{up_forward.1} parent=59 // pred_fallthru
          _
      $region60: #{up_forward.1} parent=5 // pred_fallthru
        _
    $region6: #{up_forward.1} parent=1 // loop_footer
      %s21 = sadd.s32 1, %s17
    $region7: #{up_forward.1} parent=1 // loop_footer_branch
      %16 = sbr.rel target = $region3
    $region8: #{up_forward.1} parent=1 // loop_exit
      _
    %5015 = vsyncpa [#allocation7], 1
    %s5016 = scalar_lea.sflag [#allocation7], 1
    %5017 = vsyncpa %s5016, 1

</llo_original>
